<compile_context>
chip_gen: v5e
topology: v5e:2x2
jax: 0.10.0
libtpu: 0.0.40
codegen_flags: <defaults>
</compile_context>

<pallas_src>
import functools

import numpy as np
import jax
import jax.numpy as jnp
from jax import lax
from jax.experimental import pallas as pl
from jax.experimental.pallas import tpu as pltpu


# ----------------------------------------------------------------------------
# natten-style neighborhood window start (border-clamped, dilated) -- host + jnp
# ----------------------------------------------------------------------------
def _window_start(index, length, kernel_size, dilation):
    nb = kernel_size // 2
    if dilation <= 1:
        start = max(index - nb, 0)
        if index + nb >= length:
            start += length - index - nb - 1
        return start
    ni = index - nb * dilation
    if ni < 0:
        return index % dilation
    if index + nb * dilation >= length:
        imodd = index % dilation
        a = (length // dilation) * dilation
        b = length - a
        if imodd < b:
            return length - b + imodd - 2 * nb * dilation
        return a + imodd - kernel_size * dilation
    return ni


def _div_const(x, c):
    """x // c for non-negative int32 arrays; shift when c is a power of two."""
    if c & (c - 1) == 0:
        return jnp.right_shift(x, c.bit_length() - 1)
    return x // c


def _mod_const(x, c):
    """x % c; bitwise-and when c is a power of two (cheap on the VPU)."""
    if c & (c - 1) == 0:
        return jnp.bitwise_and(x, c - 1)
    return lax.rem(x, c)


def _window_start_jnp(idx, length, kernel_size, dilation):
    """Vectorized window start; semantics identical to _window_start above."""
    nb = kernel_size // 2
    if dilation <= 1:
        return jnp.clip(idx - nb, 0, length - kernel_size)
    ni = idx - nb * dilation
    imodd = _mod_const(idx, dilation)
    a = (length // dilation) * dilation
    b = length - a
    clamped_hi = jnp.where(imodd < b,
                           length - b + imodd - 2 * nb * dilation,
                           a + imodd - kernel_size * dilation)
    return jnp.where(ni < 0, imodd,
                     jnp.where(idx + nb * dilation >= length, clamped_hi, ni))


@functools.lru_cache(maxsize=None)
def build_neighbor_indices(H, W, kernel_size, dilation):
    """Flat (H*W, K*K) index table of each pixel's neighborhood (reference only)."""
    k2 = kernel_size * kernel_size
    idx = np.zeros((H * W, k2), dtype=np.int32)
    for h in range(H):
        hs = _window_start(h, H, kernel_size, dilation)
        for w in range(W):
            ws = _window_start(w, W, kernel_size, dilation)
            n = 0
            for kh in range(kernel_size):
                for kw in range(kernel_size):
                    idx[h * W + w, n] = (hs + kh * dilation) * W + (ws + kw * dilation)
                    n += 1
    return idx


# ----------------------------------------------------------------------------
# Generation-aware VMEM budgeting + row-tile chooser
# ----------------------------------------------------------------------------
def _vmem_budget():
    """Returns (tile VMEM budget, scoped vmem_limit_bytes, target query pixels)."""
    cap = 64 * 1024 * 1024
    try:
        cap = int(getattr(pltpu.get_tpu_info(), "vmem_capacity_bytes", cap))
    except Exception:
        pass
    if cap >= 100 * 1024 * 1024:
        # v5e / v6e: 128 MiB physical VMEM -> big tiles, high scoped limit.
        return 80 * 1024 * 1024, 100 * 1024 * 1024, 2048
    # v7x: 64 MiB per TensorCore -> leave headroom for compiler scratch / spills.
    return 36 * 1024 * 1024, 52 * 1024 * 1024, 1024


def _choose_row_tile(H, W, cin, cout, halo, target_pixels, vmem_budget):
    """Largest row-tile (divisor of H, tile*W % 8 == 0) within pixel/VMEM targets."""
    cands = [th for th in range(1, H + 1) if H % th == 0 and (th * W) % 8 == 0]
    if not cands:
        raise ValueError(
            f"No valid row tile for H={H}, W={W}: need a divisor th of H with "
            f"(th*W) % 8 == 0 (sublane tiling).")

    def footprint(th):
        tq = th * W
        ww = min(H, th + 2 * halo) * W
        img = 2 * H * W * cin * 4            # resident image block (double-buffered)
        outb = 2 * tq * cout * 4             # output tile (double-buffered)
        kv = ww * 2 * cout * 4 + 2 * ww * cout * 4
        big = 4 * tq * ww * 4                # scores / probs / mask temporaries
        return img + outb + kv + big + tq * cout * 8

    good = [th for th in cands
            if th * W <= target_pixels and footprint(th) <= vmem_budget]
    if good:
        return max(good)
    ok = [th for th in cands if footprint(th) <= vmem_budget]
    return min(ok) if ok else min(cands)


# ----------------------------------------------------------------------------
# Fused kernel: resident image -> QKV projection (MXU) -> masked local attention
# ----------------------------------------------------------------------------
def _fused_na_kernel(x_ref, wq_ref, bq_ref, wkv_ref, bkv_ref, o_ref, *,
                     H, W, TH, TH_win, K, dil, Cout):
    i = pl.program_id(1)                      # row-tile index (inner grid axis)
    halo = (K - 1) * dil
    TQ = TH * W                               # query pixels in this tile
    WW = TH_win * W                           # window pixels attended over

    row0 = i * TH                                                  # first query row
    rs = jnp.minimum(jnp.maximum(row0 - halo, 0), H - TH_win)      # window start row

    # --- projections on the MXU (f32 accumulation).  K/V fused (Cin, 2*Cout) over
    #     the halo window; Q (scale folded into weights) over the query rows only.
    xw = x_ref[pl.ds(rs * W, WW), :]                               # (WW, Cin)
    kv = jnp.dot(xw, wkv_ref[...],
                 preferred_element_type=jnp.float32) + bkv_ref[...]
    k = kv[:, :Cout]
    v = kv[:, Cout:]

    xq = x_ref[pl.ds(row0 * W, TQ), :]                             # (TQ, Cin)
    q = jnp.dot(xq, wq_ref[...],
                preferred_element_type=jnp.float32) + bq_ref[...]

    # --- dense local scores (MXU) over the window.
    s = lax.dot_general(q, k, (((1,), (1,)), ((), ())),
                        preferred_element_type=jnp.float32)        # (TQ, WW)

    # --- separable neighborhood mask, built in-register (no HBM, no scratch).
    qi = lax.broadcasted_iota(jnp.int32, (TQ, 1), 0)               # query flat idx
    ni = lax.broadcasted_iota(jnp.int32, (1, WW), 1)               # window flat idx
    hq = row0 + _div_const(qi, W)                                  # abs query row
    wq_c = _mod_const(qi, W)                                       # query col
    hn = rs + _div_const(ni, W)                                    # abs window row
    wn_c = _mod_const(ni, W)                                       # window col

    hs = _window_start_jnp(hq, H, K, dil)                          # (TQ, 1)
    ws = _window_start_jnp(wq_c, W, K, dil)                        # (TQ, 1)
    span = (K - 1) * dil
    row_ok = (hn >= hs) & (hn <= hs + span)
    col_ok = (wn_c >= ws) & (wn_c <= ws + span)
    if dil > 1:
        row_ok = row_ok & (_mod_const(hn - hs, dil) == 0)
        col_ok = col_ok & (_mod_const(wn_c - ws, dil) == 0)
    neighbor = row_ok & col_ok                                     # (TQ, WW)

    s = jnp.where(neighbor, s, jnp.float32(-1e30))

    # --- numerically stable softmax (exact normalization) + PV on the MXU.
    m = jnp.max(s, axis=-1, keepdims=True)
    p = jnp.exp(s - m)
    denom = jnp.sum(p, axis=-1, keepdims=True)
    attn = p * (1.0 / denom)

    o_ref[...] = jnp.dot(attn, v,
                         preferred_element_type=jnp.float32).astype(o_ref.dtype)


# ----------------------------------------------------------------------------
# Full module forward
# ----------------------------------------------------------------------------
def neighborhood_attention_2d(x, params, kernel_size, dilation, *, row_tile=None):
    """x: (B, Cin, H, W) NCHW (PyTorch convention).  Returns (B, Cout, H, W)."""
    B, Cin, H, W = x.shape
    Cout = params["wq"].shape[1]
    halo = (kernel_size - 1) * dilation

    tile_budget, vmem_limit, target_px = _vmem_budget()
    if row_tile is None:
        row_tile = _choose_row_tile(H, W, Cin, Cout, halo, target_px, tile_budget)
    TH = row_tile
    assert H % TH == 0, "row_tile must divide H"
    assert (TH * W) % 8 == 0, "row_tile * W must be a multiple of 8 (sublane tiling)"
    assert (H * W) % 8 == 0, "H * W must be a multiple of 8 (sublane tiling)"

    TH_win = min(H, TH + 2 * halo)
    n_tiles = H // TH
    HW = H * W
    N = B * HW

    # Channels-last, pixels flattened; per-batch image block stays VMEM-resident.
    x_flat = jnp.transpose(x, (0, 2, 3, 1)).reshape(N, Cin)

    # Fold the softmax scale into Q's projection; fuse K/V weights and biases.
    scale = float(Cout) ** -0.5               # natten na2d default: head_dim**-0.5
    wq = params["wq"] * scale
    bq = (params["bq"] * scale).reshape(1, Cout)
    wkv = jnp.concatenate([params["wk"], params["wv"]], axis=1)
    bkv = jnp.concatenate([params["bk"], params["bv"]]).reshape(1, 2 * Cout)

    kernel = functools.partial(
        _fused_na_kernel,
        H=H, W=W, TH=TH, TH_win=TH_win, K=kernel_size, dil=dilation, Cout=Cout)

    out = pl.pallas_call(
        kernel,
        out_shape=jax.ShapeDtypeStruct((N, Cout), jnp.float32),
        grid_spec=pltpu.PrefetchScalarGridSpec(
            num_scalar_prefetch=0,
            grid=(B, n_tiles),                 # tile axis inner -> x block resident
            in_specs=[
                pl.BlockSpec((HW, Cin), lambda b, i: (b, 0)),          # x image
                pl.BlockSpec((Cin, Cout), lambda b, i: (0, 0)),        # wq (scaled)
                pl.BlockSpec((1, Cout), lambda b, i: (0, 0)),          # bq (scaled)
                pl.BlockSpec((Cin, 2 * Cout), lambda b, i: (0, 0)),    # [wk | wv]
                pl.BlockSpec((1, 2 * Cout), lambda b, i: (0, 0)),      # [bk | bv]
            ],
            out_specs=pl.BlockSpec((TH * W, Cout),
                                   lambda b, i: (b * n_tiles + i, 0)),
        ),
        compiler_params=pltpu.CompilerParams(
            dimension_semantics=("parallel", "parallel"),
            vmem_limit_bytes=vmem_limit,
        ),
    )(x_flat, wq, bq, wkv, bkv)

    return out.reshape(B, H, W, Cout).transpose(0, 3, 1, 2)


# ----------------------------------------------------------------------------
# Pure-JAX reference (for correctness check only)
# ----------------------------------------------------------------------------
def reference_forward(x, params, kernel_size, dilation):
    B, Cin, H, W = x.shape
    Cout = params["wq"].shape[1]
    K2 = kernel_size * kernel_size
    xc = jnp.transpose(x, (0, 2, 3, 1)).reshape(B * H * W, Cin)
    q = xc @ params["wq"] + params["bq"]
    k = xc @ params["wk"] + params["bk"]
    v = xc @ params["wv"] + params["bv"]
    idx = jnp.asarray(build_neighbor_indices(H, W, kernel_size, dilation))
    k_nbr = jnp.take(k.reshape(B, H * W, Cout), idx, axis=1).reshape(-1, K2, Cout)
    v_nbr = jnp.take(v.reshape(B, H * W, Cout), idx, axis=1).reshape(-1, K2, Cout)
    s = jnp.einsum("nc,njc->nj", q * (float(Cout) ** -0.5), k_nbr)
    attn = jax.nn.softmax(s, axis=-1)
    out = jnp.einsum("nj,njc->nc", attn, v_nbr)
    return out.reshape(B, H, W, Cout).transpose(0, 3, 1, 2)


if __name__ == "__main__":
    B, Cin, Cout, H, W = 2, 4, 32, 16, 16

    key = jax.random.PRNGKey(0)
    keys = jax.random.split(key, 7)
    x = jax.random.normal(keys[0], (B, Cin, H, W), jnp.float32)
    params = {
        "wq": 0.1 * jax.random.normal(keys[1], (Cin, Cout), jnp.float32),
        "wk": 0.1 * jax.random.normal(keys[2], (Cin, Cout), jnp.float32),
        "wv": 0.1 * jax.random.normal(keys[3], (Cin, Cout), jnp.float32),
        "bq": 0.1 * jax.random.normal(keys[4], (Cout,), jnp.float32),
        "bk": 0.1 * jax.random.normal(keys[5], (Cout,), jnp.float32),
        "bv": 0.1 * jax.random.normal(keys[6], (Cout,), jnp.float32),
    }

    # Auto tile (whole image), explicit halo-tiled path, and a dilated config.
    configs = [
        dict(kernel_size=3, dilation=1, row_tile=None),
        dict(kernel_size=3, dilation=1, row_tile=4),
        dict(kernel_size=5, dilation=2, row_tile=8),
    ]
    for cfg in configs:
        out = jax.block_until_ready(
            neighborhood_attention_2d(x, params, cfg["kernel_size"],
                                      cfg["dilation"], row_tile=cfg["row_tile"]))
        assert out.shape == (B, Cout, H, W)
        ref = reference_forward(x, params, cfg["kernel_size"], cfg["dilation"])
        np.testing.assert_allclose(np.asarray(out), np.asarray(ref),
                                   atol=5e-3, rtol=1e-2)

    print("KERNEL_OK")
</pallas_src>

<mosaic_0001>
module attributes {stable_mosaic.version = 11 : i64} {
  func.func @_fused_na_kernel(%arg0: i32, %arg1: i32, %arg2: memref<256x4xf32, #tpu.memory_space<vmem>>, %arg3: memref<4x32xf32, #tpu.memory_space<vmem>>, %arg4: memref<1x32xf32, #tpu.memory_space<vmem>>, %arg5: memref<4x64xf32, #tpu.memory_space<vmem>>, %arg6: memref<1x64xf32, #tpu.memory_space<vmem>>, %arg7: memref<256x32xf32, #tpu.memory_space<vmem>>) attributes {dimension_semantics = [#tpu.dimension_semantics<parallel>, #tpu.dimension_semantics<parallel>], iteration_bounds = array<i64: 2, 1>, scalar_prefetch = 0 : i64, scratch_operands = 0 : i64, tpu.core_type = #tpu.core_type<tc>, window_params = [{transform_indices = @transform_0, window_bounds = array<i64: 256, 4>}, {pipeline_mode = #tpu.pipeline_mode<synchronous>, transform_indices = @transform_1, window_bounds = array<i64: 4, 32>}, {pipeline_mode = #tpu.pipeline_mode<synchronous>, transform_indices = @transform_2, window_bounds = array<i64: 1, 32>}, {pipeline_mode = #tpu.pipeline_mode<synchronous>, transform_indices = @transform_3, window_bounds = array<i64: 4, 64>}, {pipeline_mode = #tpu.pipeline_mode<synchronous>, transform_indices = @transform_4, window_bounds = array<i64: 1, 64>}, {transform_indices = @transform_5, window_bounds = array<i64: 256, 32>}]} {
    %c16_i32 = arith.constant 16 : i32
    %0 = arith.muli %arg1, %c16_i32 : i32
    %c2_i32 = arith.constant 2 : i32
    %1 = arith.subi %0, %c2_i32 : i32
    %c0_i32 = arith.constant 0 : i32
    %2 = arith.maxsi %1, %c0_i32 : i32
    %c0_i32_0 = arith.constant 0 : i32
    %3 = arith.minsi %2, %c0_i32_0 : i32
    %c16_i32_1 = arith.constant 16 : i32
    %4 = arith.muli %3, %c16_i32_1 : i32
    %5 = arith.index_cast %4 : i32 to index
    %c0 = arith.constant 0 : index
    %6 = vector.load %arg2[%5, %c0] : memref<256x4xf32, #tpu.memory_space<vmem>>, vector<256x4xf32>
    %c0_2 = arith.constant 0 : index
    %c0_3 = arith.constant 0 : index
    %7 = vector.load %arg5[%c0_2, %c0_3] : memref<4x64xf32, #tpu.memory_space<vmem>>, vector<4x64xf32>
    %cst = arith.constant dense<0.000000e+00> : vector<256x64xf32>
    %8 = tpu.matmul %6, %7, %cst {dimension_numbers = #tpu.dot_dimension_numbers<[1], [0], [0], [1], [0, 0, 1, 1], [], []>} : vector<256x4xf32>, vector<4x64xf32>, vector<256x64xf32> -> vector<256x64xf32>
    %c0_4 = arith.constant 0 : index
    %c0_5 = arith.constant 0 : index
    %9 = vector.load %arg6[%c0_4, %c0_5] : memref<1x64xf32, #tpu.memory_space<vmem>>, vector<1x64xf32>
    %10 = vector.broadcast %9 : vector<1x64xf32> to vector<256x64xf32>
    %11 = arith.addf %8, %10 : vector<256x64xf32>
    %12 = vector.extract_strided_slice %11 {offsets = [0, 0], sizes = [256, 32], strides = [1, 1]} : vector<256x64xf32> to vector<256x32xf32>
    %13 = vector.extract_strided_slice %11 {offsets = [0, 32], sizes = [256, 32], strides = [1, 1]} : vector<256x64xf32> to vector<256x32xf32>
    %c16_i32_6 = arith.constant 16 : i32
    %14 = arith.muli %0, %c16_i32_6 : i32
    %15 = arith.index_cast %14 : i32 to index
    %c0_7 = arith.constant 0 : index
    %16 = vector.load %arg2[%15, %c0_7] : memref<256x4xf32, #tpu.memory_space<vmem>>, vector<256x4xf32>
    %c0_8 = arith.constant 0 : index
    %c0_9 = arith.constant 0 : index
    %17 = vector.load %arg3[%c0_8, %c0_9] : memref<4x32xf32, #tpu.memory_space<vmem>>, vector<4x32xf32>
    %cst_10 = arith.constant dense<0.000000e+00> : vector<256x32xf32>
    %18 = tpu.matmul %16, %17, %cst_10 {dimension_numbers = #tpu.dot_dimension_numbers<[1], [0], [0], [1], [0, 0, 1, 1], [], []>} : vector<256x4xf32>, vector<4x32xf32>, vector<256x32xf32> -> vector<256x32xf32>
    %c0_11 = arith.constant 0 : index
    %c0_12 = arith.constant 0 : index
    %19 = vector.load %arg4[%c0_11, %c0_12] : memref<1x32xf32, #tpu.memory_space<vmem>>, vector<1x32xf32>
    %20 = vector.broadcast %19 : vector<1x32xf32> to vector<256x32xf32>
    %21 = arith.addf %18, %20 : vector<256x32xf32>
    %cst_13 = arith.constant dense<0.000000e+00> : vector<256x256xf32>
    %22 = tpu.matmul %21, %12, %cst_13 {dimension_numbers = #tpu.dot_dimension_numbers<[1], [1], [0], [0], [0, 0, 1, 0], [], []>} : vector<256x32xf32>, vector<256x32xf32>, vector<256x256xf32> -> vector<256x256xf32>
    %23 = tpu.iota {dimensions = array<i32: 0>} : vector<256x1xi32>
    %24 = tpu.iota {dimensions = array<i32: 1>} : vector<1x256xi32>
    %c4_i32 = arith.constant 4 : i32
    %25 = vector.broadcast %c4_i32 : i32 to vector<256x1xi32>
    %26 = arith.shrsi %23, %25 : vector<256x1xi32>
    %27 = vector.broadcast %0 : i32 to vector<256x1xi32>
    %28 = arith.addi %27, %26 : vector<256x1xi32>
    %c15_i32 = arith.constant 15 : i32
    %29 = vector.broadcast %c15_i32 : i32 to vector<256x1xi32>
    %30 = arith.andi %23, %29 : vector<256x1xi32>
    %c4_i32_14 = arith.constant 4 : i32
    %31 = vector.broadcast %c4_i32_14 : i32 to vector<1x256xi32>
    %32 = arith.shrsi %24, %31 : vector<1x256xi32>
    %33 = vector.broadcast %3 : i32 to vector<1x256xi32>
    %34 = arith.addi %33, %32 : vector<1x256xi32>
    %c15_i32_15 = arith.constant 15 : i32
    %35 = vector.broadcast %c15_i32_15 : i32 to vector<1x256xi32>
    %36 = arith.andi %24, %35 : vector<1x256xi32>
    %c1_i32 = arith.constant 1 : i32
    %37 = vector.broadcast %c1_i32 : i32 to vector<256x1xi32>
    %38 = arith.subi %28, %37 : vector<256x1xi32>
    %c0_i32_16 = arith.constant 0 : i32
    %c13_i32 = arith.constant 13 : i32
    %39 = vector.broadcast %c0_i32_16 : i32 to vector<256x1xi32>
    %40 = arith.maxsi %39, %38 : vector<256x1xi32>
    %41 = vector.broadcast %c13_i32 : i32 to vector<256x1xi32>
    %42 = arith.minsi %41, %40 : vector<256x1xi32>
    %c1_i32_17 = arith.constant 1 : i32
    %43 = vector.broadcast %c1_i32_17 : i32 to vector<256x1xi32>
    %44 = arith.subi %30, %43 : vector<256x1xi32>
    %c0_i32_18 = arith.constant 0 : i32
    %c13_i32_19 = arith.constant 13 : i32
    %45 = vector.broadcast %c0_i32_18 : i32 to vector<256x1xi32>
    %46 = arith.maxsi %45, %44 : vector<256x1xi32>
    %47 = vector.broadcast %c13_i32_19 : i32 to vector<256x1xi32>
    %48 = arith.minsi %47, %46 : vector<256x1xi32>
    %49 = vector.broadcast %34 : vector<1x256xi32> to vector<256x256xi32>
    %50 = vector.broadcast %42 : vector<256x1xi32> to vector<256x256xi32>
    %51 = arith.cmpi sge, %49, %50 : vector<256x256xi32>
    %c2_i32_20 = arith.constant 2 : i32
    %52 = vector.broadcast %c2_i32_20 : i32 to vector<256x1xi32>
    %53 = arith.addi %42, %52 : vector<256x1xi32>
    %54 = vector.broadcast %34 : vector<1x256xi32> to vector<256x256xi32>
    %55 = vector.broadcast %53 : vector<256x1xi32> to vector<256x256xi32>
    %56 = arith.cmpi sle, %54, %55 : vector<256x256xi32>
    %57 = arith.andi %51, %56 : vector<256x256xi1>
    %58 = vector.broadcast %36 : vector<1x256xi32> to vector<256x256xi32>
    %59 = vector.broadcast %48 : vector<256x1xi32> to vector<256x256xi32>
    %60 = arith.cmpi sge, %58, %59 : vector<256x256xi32>
    %c2_i32_21 = arith.constant 2 : i32
    %61 = vector.broadcast %c2_i32_21 : i32 to vector<256x1xi32>
    %62 = arith.addi %48, %61 : vector<256x1xi32>
    %63 = vector.broadcast %36 : vector<1x256xi32> to vector<256x256xi32>
    %64 = vector.broadcast %62 : vector<256x1xi32> to vector<256x256xi32>
    %65 = arith.cmpi sle, %63, %64 : vector<256x256xi32>
    %66 = arith.andi %60, %65 : vector<256x256xi1>
    %67 = arith.andi %57, %66 : vector<256x256xi1>
    %cst_22 = arith.constant -1.000000e+30 : f32
    %68 = vector.broadcast %cst_22 : f32 to vector<256x256xf32>
    %69 = arith.select %67, %22, %68 : vector<256x256xi1>, vector<256x256xf32>
    %cst_23 = arith.constant dense<0xFF800000> : vector<256xf32>
    %70 = vector.multi_reduction <maximumf>, %69, %cst_23 [1] : vector<256x256xf32> to vector<256xf32>
    %71 = vector.shape_cast %70 : vector<256xf32> to vector<256x1xf32>
    %72 = vector.broadcast %71 : vector<256x1xf32> to vector<256x256xf32>
    %73 = arith.subf %69, %72 : vector<256x256xf32>
    %74 = math.exp %73 : vector<256x256xf32>
    %cst_24 = arith.constant dense<0.000000e+00> : vector<256xf32>
    %75 = vector.multi_reduction <add>, %74, %cst_24 [1] : vector<256x256xf32> to vector<256xf32>
    %76 = vector.shape_cast %75 : vector<256xf32> to vector<256x1xf32>
    %cst_25 = arith.constant 1.000000e+00 : f32
    %77 = vector.broadcast %cst_25 : f32 to vector<256x1xf32>
    %78 = arith.divf %77, %76 : vector<256x1xf32>
    %79 = vector.broadcast %78 : vector<256x1xf32> to vector<256x256xf32>
    %80 = arith.mulf %74, %79 : vector<256x256xf32>
    %cst_26 = arith.constant dense<0.000000e+00> : vector<256x32xf32>
    %81 = tpu.matmul %80, %13, %cst_26 {dimension_numbers = #tpu.dot_dimension_numbers<[1], [0], [0], [1], [0, 0, 1, 1], [], []>} : vector<256x256xf32>, vector<256x32xf32>, vector<256x32xf32> -> vector<256x32xf32>
    %c0_27 = arith.constant 0 : index
    %c0_28 = arith.constant 0 : index
    %82 = vector.load %arg7[%c0_27, %c0_28] : memref<256x32xf32, #tpu.memory_space<vmem>>, vector<256x32xf32>
    tpu.vector_store %arg7[%c0_27, %c0_28], %81 {strides = array<i32>} : memref<256x32xf32, #tpu.memory_space<vmem>>, vector<256x32xf32>,
    return
  }
  func.func @transform_0(%arg0: i32, %arg1: i32) -> (i32, i32) {
    %c0_i32 = arith.constant 0 : i32
    %c0_i32_0 = arith.constant 0 : i32
    return %arg0, %c0_i32 : i32, i32
  }
  func.func @transform_1(%arg0: i32, %arg1: i32) -> (i32, i32) {
    %c0_i32 = arith.constant 0 : i32
    %c0_i32_0 = arith.constant 0 : i32
    %c0_i32_1 = arith.constant 0 : i32
    return %c0_i32, %c0_i32_0 : i32, i32
  }
  func.func @transform_2(%arg0: i32, %arg1: i32) -> (i32, i32) {
    %c0_i32 = arith.constant 0 : i32
    %c0_i32_0 = arith.constant 0 : i32
    %c0_i32_1 = arith.constant 0 : i32
    return %c0_i32, %c0_i32_0 : i32, i32
  }
  func.func @transform_3(%arg0: i32, %arg1: i32) -> (i32, i32) {
    %c0_i32 = arith.constant 0 : i32
    %c0_i32_0 = arith.constant 0 : i32
    %c0_i32_1 = arith.constant 0 : i32
    return %c0_i32, %c0_i32_0 : i32, i32
  }
  func.func @transform_4(%arg0: i32, %arg1: i32) -> (i32, i32) {
    %c0_i32 = arith.constant 0 : i32
    %c0_i32_0 = arith.constant 0 : i32
    %c0_i32_1 = arith.constant 0 : i32
    return %c0_i32, %c0_i32_0 : i32, i32
  }
  func.func @transform_5(%arg0: i32, %arg1: i32) -> (i32, i32) {
    %c1_i32 = arith.constant 1 : i32
    %0 = arith.muli %arg0, %c1_i32 : i32
    %1 = arith.addi %0, %arg1 : i32
    %c0_i32 = arith.constant 0 : i32
    %c0_i32_0 = arith.constant 0 : i32
    return %1, %c0_i32 : i32, i32
  }
}

</mosaic_0001>

<llo_original>
// kernel: tpu_custom_call.1
$region0: #{tpu_custom_call.1}
  #allocation0 [shape = 'u32[]', space=smem, size = 0x4, offset = 0x4, fixed_abs, tag = 'smem constant byte address 0x4 - core index']
  #allocation1 [shape = 'u32[72,128]{1,0:T(1,128)}', space=vmem, size = 0x9000, scoped, tag = 'internal scratch']
  %s0 = inlined_call_operand.vmem [shape: f32[512,4], index: 0, kind: input, shape index: {}]
  %s1 = inlined_call_operand.vmem [shape: f32[4,32], index: 1, kind: input, shape index: {}]
  %s2 = inlined_call_operand.vmem [shape: f32[1,32], index: 2, kind: input, shape index: {}]
  %s3 = inlined_call_operand.vmem [shape: f32[4,64], index: 3, kind: input, shape index: {}]
  %s4 = inlined_call_operand.vmem [shape: f32[1,64], index: 4, kind: input, shape index: {}]
  %s5 = inlined_call_operand.vmem [shape: f32[512,32], index: 5, kind: output, shape index: {}]
  %s6 = sld [smem:[#allocation0]]
  $region53: #{tpu_custom_call.1} parent=0
    _
  %s8 = ssub.s32 1, %s6
  %s9 = scalar_select 0, %s8, %s6
  loop: start=0, step=1, limit=4
  $region2: #{tpu_custom_call.1} parent=0 // loop_pre_header
    _
  $region3: #{tpu_custom_call.1} parent=0 // loop_header
    %s11 = sphi 0, %s15
    %p12 = scmp.ge.s32.totalorder %s11, 4
    %s18 = sphi 0, %s30
    %s19 = sphi 0, %s26
    %s20 = sphi 0, %s18
    %s21 = sphi 0, %s19
    %s22 = sphi 0, %s20
    %s23 = sphi 0, %s21
    %s33 = sphi 0, %s35
    %s36 = sphi 0, %s33
    %s37 = sphi 0, %s36
    %s53 = sphi 0, %s37
    %s57 = sphi 0, %s57
    %s59 = sphi 0, %s57
    %s60 = sphi 0, %s59
    %s74 = sphi 0, %s60
    %s78 = sphi 0, %s78
    %s80 = sphi 0, %s78
    %s81 = sphi 0, %s80
    %s95 = sphi 0, %s81
    %s99 = sphi 0, %s99
    %s101 = sphi 0, %s99
    %s102 = sphi 0, %s101
    %s116 = sphi 0, %s102
    %s120 = sphi 0, %s120
    %s122 = sphi 0, %s120
    %s123 = sphi 0, %s122
    %s137 = sphi 0, %s123
    %s145 = sphi 0, %s147
    %s148 = sphi 0, %s145
    %s149 = sphi 0, %s148
    %s165 = sphi 0, %s149
  $region4: #{tpu_custom_call.1} parent=0 // loop_header_branch
    %14 = sbr.rel (%p12) target = $region8
  $region5: #{tpu_custom_call.1} parent=0 // loop_body
    %s16 = ssub.s32 %s11, 1
    %s17 = ssub.s32 %s11, 2
    %s24 = sadd.s32 1, %s19
    %p25 = scmp.ge.s32.totalorder %s24, 1
    %s26 = scalar_select %p25, 0, %s24
    %s27 = sadd.s32 1, %s18
    %s28 = scalar_select %p25, %s27, %s18
    %p29 = scmp.ge.s32.totalorder %s28, 2
    %s30 = scalar_select %p29, 0, %s28
    %s31 = ssub.s32 %s18, %s30
    %p32 = scmp.eq.s32.totalorder %s31, 0
    %s34 = sadd.s32 %s33, 1
    %s35 = scalar_select %p32, %s33, %s34
    %p38 = pneg %p32
    %p39 = scmp.eq.s32.totalorder %s11, 1
    %p40 = por %p38, %p39
    %p41 = scmp.ne.s32.totalorder %s33, %s36
    %p42 = scmp.eq.s32.totalorder %s11, 0
    %p43 = por %p41, %p42
    %p44 = scmp.ne.s32.totalorder %s33, %s36
    %p45 = scmp.eq.s32.totalorder %s16, 1
    %p46 = por %p44, %p45
    %p47 = scmp.ne.s32.totalorder %s36, %s37
    %p48 = scmp.eq.s32.totalorder %s16, 0
    %p49 = por %p47, %p48
    %p50 = scmp.ne.s32.totalorder %s36, %s37
    %p51 = scmp.eq.s32.totalorder %s17, 1
    %p52 = por %p50, %p51
    %p54 = scmp.ne.s32.totalorder %s37, %s53
    %p55 = scmp.eq.s32.totalorder %s17, 0
    %p56 = por %p54, %p55
    %s58 = sadd.s32 %s57, 1
    %p61 = scmp.eq.s32.totalorder %s11, 1
    %p62 = scmp.ne.s32.totalorder %s57, %s59
    %p63 = scmp.eq.s32.totalorder %s11, 0
    %p64 = por %p62, %p63
    %p65 = scmp.ne.s32.totalorder %s57, %s59
    %p66 = scmp.eq.s32.totalorder %s16, 1
    %p67 = por %p65, %p66
    %p68 = scmp.ne.s32.totalorder %s59, %s60
    %p69 = scmp.eq.s32.totalorder %s16, 0
    %p70 = por %p68, %p69
    %p71 = scmp.ne.s32.totalorder %s59, %s60
    %p72 = scmp.eq.s32.totalorder %s17, 1
    %p73 = por %p71, %p72
    %p75 = scmp.ne.s32.totalorder %s60, %s74
    %p76 = scmp.eq.s32.totalorder %s17, 0
    %p77 = por %p75, %p76
    %s79 = sadd.s32 %s78, 1
    %p82 = scmp.eq.s32.totalorder %s11, 1
    %p83 = scmp.ne.s32.totalorder %s78, %s80
    %p84 = scmp.eq.s32.totalorder %s11, 0
    %p85 = por %p83, %p84
    %p86 = scmp.ne.s32.totalorder %s78, %s80
    %p87 = scmp.eq.s32.totalorder %s16, 1
    %p88 = por %p86, %p87
    %p89 = scmp.ne.s32.totalorder %s80, %s81
    %p90 = scmp.eq.s32.totalorder %s16, 0
    %p91 = por %p89, %p90
    %p92 = scmp.ne.s32.totalorder %s80, %s81
    %p93 = scmp.eq.s32.totalorder %s17, 1
    %p94 = por %p92, %p93
    %p96 = scmp.ne.s32.totalorder %s81, %s95
    %p97 = scmp.eq.s32.totalorder %s17, 0
    %p98 = por %p96, %p97
    %s100 = sadd.s32 %s99, 1
    %p103 = scmp.eq.s32.totalorder %s11, 1
    %p104 = scmp.ne.s32.totalorder %s99, %s101
    %p105 = scmp.eq.s32.totalorder %s11, 0
    %p106 = por %p104, %p105
    %p107 = scmp.ne.s32.totalorder %s99, %s101
    %p108 = scmp.eq.s32.totalorder %s16, 1
    %p109 = por %p107, %p108
    %p110 = scmp.ne.s32.totalorder %s101, %s102
    %p111 = scmp.eq.s32.totalorder %s16, 0
    %p112 = por %p110, %p111
    %p113 = scmp.ne.s32.totalorder %s101, %s102
    %p114 = scmp.eq.s32.totalorder %s17, 1
    %p115 = por %p113, %p114
    %p117 = scmp.ne.s32.totalorder %s102, %s116
    %p118 = scmp.eq.s32.totalorder %s17, 0
    %p119 = por %p117, %p118
    %s121 = sadd.s32 %s120, 1
    %p124 = scmp.eq.s32.totalorder %s11, 1
    %p125 = scmp.ne.s32.totalorder %s120, %s122
    %p126 = scmp.eq.s32.totalorder %s11, 0
    %p127 = por %p125, %p126
    %p128 = scmp.ne.s32.totalorder %s120, %s122
    %p129 = scmp.eq.s32.totalorder %s16, 1
    %p130 = por %p128, %p129
    %p131 = scmp.ne.s32.totalorder %s122, %s123
    %p132 = scmp.eq.s32.totalorder %s16, 0
    %p133 = por %p131, %p132
    %p134 = scmp.ne.s32.totalorder %s122, %s123
    %p135 = scmp.eq.s32.totalorder %s17, 1
    %p136 = por %p134, %p135
    %p138 = scmp.ne.s32.totalorder %s123, %s137
    %p139 = scmp.eq.s32.totalorder %s17, 0
    %p140 = por %p138, %p139
    %s141 = sadd.s32 %s18, %s19
    %s142 = sadd.s32 %s30, %s26
    %s143 = ssub.s32 %s141, %s142
    %p144 = scmp.eq.s32.totalorder %s143, 0
    %s146 = sadd.s32 %s145, 1
    %s147 = scalar_select %p144, %s145, %s146
    %p150 = pneg %p144
    %p151 = scmp.eq.s32.totalorder %s11, 1
    %p152 = por %p150, %p151
    %p153 = scmp.ne.s32.totalorder %s145, %s148
    %p154 = scmp.eq.s32.totalorder %s11, 0
    %p155 = por %p153, %p154
    %p156 = scmp.ne.s32.totalorder %s145, %s148
    %p157 = scmp.eq.s32.totalorder %s16, 1
    %p158 = por %p156, %p157
    %p159 = scmp.ne.s32.totalorder %s148, %s149
    %p160 = scmp.eq.s32.totalorder %s16, 0
    %p161 = por %p159, %p160
    %p162 = scmp.ne.s32.totalorder %s148, %s149
    %p163 = scmp.eq.s32.totalorder %s17, 1
    %p164 = por %p162, %p163
    %p166 = scmp.ne.s32.totalorder %s149, %s165
    %p167 = scmp.eq.s32.totalorder %s17, 0
    %p168 = por %p166, %p167
    %p169 = scmp.le.s32.totalorder 1, %s11
    %p170 = scmp.lt.s32.totalorder %s11, 3
    %p171 = pnand %p169, %p170
    %p172 = pneg %p171
    // Predicated region
    $region9: #{tpu_custom_call.1} parent=5 // pred_check
      _
    $region10: #{tpu_custom_call.1} parent=5 // pred_check_branch
      %174 = sbr.rel (%p171) target = $region12
    $region11: #{tpu_custom_call.1} parent=5 // pred_region
      %s175 = ssub.s32 %s11, 1
      // Predicated region
      $region13: #{tpu_custom_call.1} parent=11 // pred_check
        %p176 = pneg %p70
      $region14: #{tpu_custom_call.1} parent=11 // pred_check_branch
        %178 = sbr.rel (%p176) target = $region16
      $region15: #{tpu_custom_call.1} parent=11 // pred_region
        _
      $region16: #{tpu_custom_call.1} parent=11 // pred_fallthru
        _
      // Predicated region
      $region17: #{tpu_custom_call.1} parent=11 // pred_check
        %p179 = pneg %p91
      $region18: #{tpu_custom_call.1} parent=11 // pred_check_branch
        %181 = sbr.rel (%p179) target = $region20
      $region19: #{tpu_custom_call.1} parent=11 // pred_region
        _
      $region20: #{tpu_custom_call.1} parent=11 // pred_fallthru
        _
      // Predicated region
      $region21: #{tpu_custom_call.1} parent=11 // pred_check
        %p182 = pneg %p112
      $region22: #{tpu_custom_call.1} parent=11 // pred_check_branch
        %184 = sbr.rel (%p182) target = $region24
      $region23: #{tpu_custom_call.1} parent=11 // pred_region
        _
      $region24: #{tpu_custom_call.1} parent=11 // pred_fallthru
        _
      // Predicated region
      $region25: #{tpu_custom_call.1} parent=11 // pred_check
        %p185 = pneg %p133
      $region26: #{tpu_custom_call.1} parent=11 // pred_check_branch
        %187 = sbr.rel (%p185) target = $region28
      $region27: #{tpu_custom_call.1} parent=11 // pred_region
        _
      $region28: #{tpu_custom_call.1} parent=11 // pred_fallthru
        _
    $region12: #{tpu_custom_call.1} parent=5 // pred_fallthru
      _
    %p188 = scmp.lt.s32.totalorder %s11, 2
    // Predicated region
    $region29: #{tpu_custom_call.1} parent=5 // pred_check
      %p189 = pneg %p188
    $region30: #{tpu_custom_call.1} parent=5 // pred_check_branch
      %191 = sbr.rel (%p189) target = $region32
    $region31: #{tpu_custom_call.1} parent=5 // pred_region
      // Predicated region
      $region33: #{tpu_custom_call.1} parent=31 // pred_check
        %p192 = pneg %p43
      $region34: #{tpu_custom_call.1} parent=31 // pred_check_branch
        %194 = sbr.rel (%p192) target = $region36
      $region35: #{tpu_custom_call.1} parent=31 // pred_region
        %s195 = smul.u32 32, %s18
        %p196 = scmp.lt.s32.totalorder %s195, 63
        %s197 = scalar_select %p196, %s195, 63
        %s198 = smul.addr %s197, 8
        %s199 = scalar_lea.vmem %s0, %s198
        %s200 = smul.u32 32, %s18
      $region36: #{tpu_custom_call.1} parent=31 // pred_fallthru
        _
    $region32: #{tpu_custom_call.1} parent=5 // pred_fallthru
      _
    %p201 = scmp.le.s32.totalorder 1, %s11
    %p202 = scmp.lt.s32.totalorder %s11, 3
    %p203 = pnand %p201, %p202
    %p204 = pneg %p203
    // Predicated region
    $region37: #{tpu_custom_call.1} parent=5 // pred_check
      _
    $region38: #{tpu_custom_call.1} parent=5 // pred_check_branch
      %206 = sbr.rel (%p203) target = $region40
    $region39: #{tpu_custom_call.1} parent=5 // pred_region
      %s207 = ssub.s32 %s11, 1
      %s208 = smul.u32 32, %s20
      %p209 = scmp.lt.s32.totalorder %s208, 63
      %s210 = scalar_select %p209, %s208, 63
      %s211 = smul.addr %s210, 8
      %s212 = scalar_lea.vmem %s0, %s211
      %p213 = pneg %p49
      %p214 = pneg %p46
      %p215 = pneg %p70
      %p216 = pneg %p67
      %p217 = pneg %p91
      %p218 = pneg %p88
      %p219 = pneg %p112
      %p220 = pneg %p109
      %p221 = pneg %p133
      %p222 = pneg %p130
      %p223 = pneg %p161
      %p224 = pneg %p158
      %s225 = sadd.s32 %s20, %s21
      %s226 = smul.u32 32, %s225
      %p227 = scmp.lt.s32.totalorder %s226, 63
      %s228 = scalar_select %p227, %s226, 63
      %s229 = smul.addr %s228, 8
      %s230 = scalar_lea.vmem %s5, %s229
      %s231 = smul.u32 32, %s20
      %p232 = scmp.lt.s32.totalorder %s231, 63
      %s233 = scalar_select %p232, %s231, 63
      %s234 = smul.addr %s233, 8
      %s235 = scalar_lea.vmem %s0, %s234
      %s236 = smul.u32 32, %s20
      %s237 = sadd.s32 %s20, %s21
      %s238 = smul.u32 32, %s237
      %p239 = scmp.lt.s32.totalorder %s238, 63
      %s240 = scalar_select %p239, %s238, 63
      %s241 = smul.addr %s240, 8
      %s242 = scalar_lea.vmem %s5, %s241
      %s243 = sadd.s32 %s20, %s21
      %s244 = smul.u32 32, %s243
      %s245 = smul.u32 %s21, 16
      %s246 = ssub.s32 %s245, 2
      %p247 = scmp.gt.s32.totalorder %s246, 0
      %s248 = scalar_select %p247, %s246, 0
      %p249 = scmp.lt.s32.totalorder %s248, 0
      %s250 = scalar_select %p249, %s248, 0
      %s251 = smul.u32 %s250, 16
      %s252 = scalar_lea.vmem %s235, %s251
      %v253 = vld [vmem:[%s252] sm:$0xff]
      %v254 = vld [vmem:[%s252 + $0x8] sm:$0xff]
      %v255 = vld [vmem:[%s252 + $0x10] sm:$0xff]
      %v256 = vld [vmem:[%s252 + $0x18] sm:$0xff]
      %v257 = vld [vmem:[%s252 + $0x20] sm:$0xff]
      %v258 = vld [vmem:[%s252 + $0x28] sm:$0xff]
      %v259 = vld [vmem:[%s252 + $0x30] sm:$0xff]
      %v260 = vld [vmem:[%s252 + $0x38] sm:$0xff]
      %v261 = vld [vmem:[%s252 + $0x40] sm:$0xff]
      %v262 = vld [vmem:[%s252 + $0x48] sm:$0xff]
      %v263 = vld [vmem:[%s252 + $0x50] sm:$0xff]
      %v264 = vld [vmem:[%s252 + $0x58] sm:$0xff]
      %v265 = vld [vmem:[%s252 + $0x60] sm:$0xff]
      %v266 = vld [vmem:[%s252 + $0x68] sm:$0xff]
      %v267 = vld [vmem:[%s252 + $0x70] sm:$0xff]
      %v268 = vld [vmem:[%s252 + $0x78] sm:$0xff]
      %v269 = vld [vmem:[%s252 + $0x80] sm:$0xff]
      %v270 = vld [vmem:[%s252 + $0x88] sm:$0xff]
      %v271 = vld [vmem:[%s252 + $0x90] sm:$0xff]
      %v272 = vld [vmem:[%s252 + $0x98] sm:$0xff]
      %v273 = vld [vmem:[%s252 + $0xa0] sm:$0xff]
      %v274 = vld [vmem:[%s252 + $0xa8] sm:$0xff]
      %v275 = vld [vmem:[%s252 + $0xb0] sm:$0xff]
      %v276 = vld [vmem:[%s252 + $0xb8] sm:$0xff]
      %v277 = vld [vmem:[%s252 + $0xc0] sm:$0xff]
      %v278 = vld [vmem:[%s252 + $0xc8] sm:$0xff]
      %v279 = vld [vmem:[%s252 + $0xd0] sm:$0xff]
      %v280 = vld [vmem:[%s252 + $0xd8] sm:$0xff]
      %v281 = vld [vmem:[%s252 + $0xe0] sm:$0xff]
      %v282 = vld [vmem:[%s252 + $0xe8] sm:$0xff]
      %v283 = vld [vmem:[%s252 + $0xf0] sm:$0xff]
      %v284 = vld [vmem:[%s252 + $0xf8] sm:$0xff]
      %v285 = vld [vmem:[%s3] sm:$0xf]
      %v286 = vld [vmem:[%s4] sm:$0x1]
      %v288 = vperm.slane %v286, 0
      %vm290 = vcmask 31744
      %v292 = vsel %vm290, %v253, 0
      %v295 = vsel %vm290, %v254, 0
      %v298 = vsel %vm290, %v255, 0
      %v301 = vsel %vm290, %v256, 0
      %v304 = vsel %vm290, %v257, 0
      %v307 = vsel %vm290, %v258, 0
      %v310 = vsel %vm290, %v259, 0
      %v313 = vsel %vm290, %v260, 0
      %v316 = vsel %vm290, %v261, 0
      %v319 = vsel %vm290, %v262, 0
      %v322 = vsel %vm290, %v263, 0
      %v325 = vsel %vm290, %v264, 0
      %v328 = vsel %vm290, %v265, 0
      %v331 = vsel %vm290, %v266, 0
      %v334 = vsel %vm290, %v267, 0
      %v337 = vsel %vm290, %v268, 0
      %v340 = vsel %vm290, %v269, 0
      %v343 = vsel %vm290, %v270, 0
      %v346 = vsel %vm290, %v271, 0
      %v349 = vsel %vm290, %v272, 0
      %v352 = vsel %vm290, %v273, 0
      %v355 = vsel %vm290, %v274, 0
      %v358 = vsel %vm290, %v275, 0
      %v361 = vsel %vm290, %v276, 0
      %v364 = vsel %vm290, %v277, 0
      %v367 = vsel %vm290, %v278, 0
      %v370 = vsel %vm290, %v279, 0
      %v373 = vsel %vm290, %v280, 0
      %v376 = vsel %vm290, %v281, 0
      %v379 = vsel %vm290, %v282, 0
      %v382 = vsel %vm290, %v283, 0
      %v385 = vsel %vm290, %v284, 0
      %vm387 = vcmask 1043456
      %v389 = vsel %vm387, %v285, 0
      %391 = vmatpush.msra.mxu0 0.0
      %392 = vmatpush.msra.mxu0 0.0
      %393 = vmatpush.msra.mxu0 0.0
      %394 = vmatpush.msra.mxu0 0.0
      %395 = vmatpush.msra.mxu0 0.0
      %396 = vmatpush.msra.mxu0 0.0
      %397 = vmatpush.msra.mxu0 0.0
      %398 = vmatpush.msra.mxu0 0.0
      %399 = vmatpush.msra.mxu0 0.0
      %400 = vmatpush.msra.mxu0 0.0
      %401 = vmatpush.msra.mxu0 0.0
      %402 = vmatpush.msra.mxu0 0.0
      %403 = vmatpush.msra.mxu0 0.0
      %404 = vmatpush.msra.mxu0 0.0
      %405 = vmatpush.msra.mxu0 0.0
      %406 = vmatpush.msra.mxu0 %v389
      %407 = vmatmul.f32.gmra.mxu0 %v292
      %v408 = vpop.f32.mrf.mxu0
      %v409 = vadd.f32 %v288, %v408
      %410 = vmatmul.f32.gmra.mxu0 %v295
      %v411 = vpop.f32.mrf.mxu0
      %v412 = vadd.f32 %v288, %v411
      %413 = vmatmul.f32.gmra.mxu0 %v298
      %v414 = vpop.f32.mrf.mxu0
      %v415 = vadd.f32 %v288, %v414
      %416 = vmatmul.f32.gmra.mxu0 %v301
      %v417 = vpop.f32.mrf.mxu0
      %v418 = vadd.f32 %v288, %v417
      %419 = vmatmul.f32.gmra.mxu0 %v304
      %v420 = vpop.f32.mrf.mxu0
      %v421 = vadd.f32 %v288, %v420
      %422 = vmatmul.f32.gmra.mxu0 %v307
      %v423 = vpop.f32.mrf.mxu0
      %v424 = vadd.f32 %v288, %v423
      %425 = vmatmul.f32.gmra.mxu0 %v310
      %v426 = vpop.f32.mrf.mxu0
      %v427 = vadd.f32 %v288, %v426
      %428 = vmatmul.f32.gmra.mxu0 %v313
      %v429 = vpop.f32.mrf.mxu0
      %v430 = vadd.f32 %v288, %v429
      %431 = vmatmul.f32.gmra.mxu0 %v316
      %v432 = vpop.f32.mrf.mxu0
      %v433 = vadd.f32 %v288, %v432
      %434 = vmatmul.f32.gmra.mxu0 %v319
      %v435 = vpop.f32.mrf.mxu0
      %v436 = vadd.f32 %v288, %v435
      %437 = vmatmul.f32.gmra.mxu0 %v322
      %v438 = vpop.f32.mrf.mxu0
      %v439 = vadd.f32 %v288, %v438
      %440 = vmatmul.f32.gmra.mxu0 %v325
      %v441 = vpop.f32.mrf.mxu0
      %v442 = vadd.f32 %v288, %v441
      %443 = vmatmul.f32.gmra.mxu0 %v328
      %v444 = vpop.f32.mrf.mxu0
      %v445 = vadd.f32 %v288, %v444
      %446 = vmatmul.f32.gmra.mxu0 %v331
      %v447 = vpop.f32.mrf.mxu0
      %v448 = vadd.f32 %v288, %v447
      %449 = vmatmul.f32.gmra.mxu0 %v334
      %v450 = vpop.f32.mrf.mxu0
      %v451 = vadd.f32 %v288, %v450
      %452 = vmatmul.f32.gmra.mxu0 %v337
      %v453 = vpop.f32.mrf.mxu0
      %v454 = vadd.f32 %v288, %v453
      %455 = vmatmul.f32.gmra.mxu0 %v340
      %v456 = vpop.f32.mrf.mxu0
      %v457 = vadd.f32 %v288, %v456
      %458 = vmatmul.f32.gmra.mxu0 %v343
      %v459 = vpop.f32.mrf.mxu0
      %v460 = vadd.f32 %v288, %v459
      %461 = vmatmul.f32.gmra.mxu0 %v346
      %v462 = vpop.f32.mrf.mxu0
      %v463 = vadd.f32 %v288, %v462
      %464 = vmatmul.f32.gmra.mxu0 %v349
      %v465 = vpop.f32.mrf.mxu0
      %v466 = vadd.f32 %v288, %v465
      %467 = vmatmul.f32.gmra.mxu0 %v352
      %v468 = vpop.f32.mrf.mxu0
      %v469 = vadd.f32 %v288, %v468
      %470 = vmatmul.f32.gmra.mxu0 %v355
      %v471 = vpop.f32.mrf.mxu0
      %v472 = vadd.f32 %v288, %v471
      %473 = vmatmul.f32.gmra.mxu0 %v358
      %v474 = vpop.f32.mrf.mxu0
      %v475 = vadd.f32 %v288, %v474
      %476 = vmatmul.f32.gmra.mxu0 %v361
      %v477 = vpop.f32.mrf.mxu0
      %v478 = vadd.f32 %v288, %v477
      %479 = vmatmul.f32.gmra.mxu0 %v364
      %v480 = vpop.f32.mrf.mxu0
      %v481 = vadd.f32 %v288, %v480
      %482 = vmatmul.f32.gmra.mxu0 %v367
      %v483 = vpop.f32.mrf.mxu0
      %v484 = vadd.f32 %v288, %v483
      %485 = vmatmul.f32.gmra.mxu0 %v370
      %v486 = vpop.f32.mrf.mxu0
      %v487 = vadd.f32 %v288, %v486
      %488 = vmatmul.f32.gmra.mxu0 %v373
      %v489 = vpop.f32.mrf.mxu0
      %v490 = vadd.f32 %v288, %v489
      %491 = vmatmul.f32.gmra.mxu0 %v376
      %v492 = vpop.f32.mrf.mxu0
      %v493 = vadd.f32 %v288, %v492
      %494 = vmatmul.f32.gmra.mxu0 %v379
      %v495 = vpop.f32.mrf.mxu0
      %v496 = vadd.f32 %v288, %v495
      %497 = vmatmul.f32.gmra.mxu0 %v382
      %v498 = vpop.f32.mrf.mxu0
      %v499 = vadd.f32 %v288, %v498
      %500 = vmatmul.f32.gmra.mxu0 %v385
      %v501 = vpop.f32.mrf.mxu0
      %v502 = vadd.f32 %v288, %v501
      %503 = vdwg.mxu0
      %s504 = smul.u32 %s21, 256
      %s505 = scalar_lea.vmem %s235, %s504
      %v506 = vld [vmem:[%s505] sm:$0xff]
      %v507 = vld [vmem:[%s505 + $0x8] sm:$0xff]
      %v508 = vld [vmem:[%s505 + $0x10] sm:$0xff]
      %v509 = vld [vmem:[%s505 + $0x18] sm:$0xff]
      %v510 = vld [vmem:[%s505 + $0x20] sm:$0xff]
      %v511 = vld [vmem:[%s505 + $0x28] sm:$0xff]
      %v512 = vld [vmem:[%s505 + $0x30] sm:$0xff]
      %v513 = vld [vmem:[%s505 + $0x38] sm:$0xff]
      %v514 = vld [vmem:[%s505 + $0x40] sm:$0xff]
      %v515 = vld [vmem:[%s505 + $0x48] sm:$0xff]
      %v516 = vld [vmem:[%s505 + $0x50] sm:$0xff]
      %v517 = vld [vmem:[%s505 + $0x58] sm:$0xff]
      %v518 = vld [vmem:[%s505 + $0x60] sm:$0xff]
      %v519 = vld [vmem:[%s505 + $0x68] sm:$0xff]
      %v520 = vld [vmem:[%s505 + $0x70] sm:$0xff]
      %v521 = vld [vmem:[%s505 + $0x78] sm:$0xff]
      %v522 = vld [vmem:[%s505 + $0x80] sm:$0xff]
      %v523 = vld [vmem:[%s505 + $0x88] sm:$0xff]
      %v524 = vld [vmem:[%s505 + $0x90] sm:$0xff]
      %v525 = vld [vmem:[%s505 + $0x98] sm:$0xff]
      %v526 = vld [vmem:[%s505 + $0xa0] sm:$0xff]
      %v527 = vld [vmem:[%s505 + $0xa8] sm:$0xff]
      %v528 = vld [vmem:[%s505 + $0xb0] sm:$0xff]
      %v529 = vld [vmem:[%s505 + $0xb8] sm:$0xff]
      %v530 = vld [vmem:[%s505 + $0xc0] sm:$0xff]
      %v531 = vld [vmem:[%s505 + $0xc8] sm:$0xff]
      %v532 = vld [vmem:[%s505 + $0xd0] sm:$0xff]
      %v533 = vld [vmem:[%s505 + $0xd8] sm:$0xff]
      %v534 = vld [vmem:[%s505 + $0xe0] sm:$0xff]
      %v535 = vld [vmem:[%s505 + $0xe8] sm:$0xff]
      %v536 = vld [vmem:[%s505 + $0xf0] sm:$0xff]
      %v537 = vld [vmem:[%s505 + $0xf8] sm:$0xff]
      %v538 = vld [vmem:[%s1] sm:$0xf]
      %v539 = vld [vmem:[%s2] sm:$0x1]
      %v541 = vperm.slane %v539, 0
      %v544 = vsel %vm290, %v506, 0
      %v547 = vsel %vm290, %v507, 0
      %v550 = vsel %vm290, %v508, 0
      %v553 = vsel %vm290, %v509, 0
      %v556 = vsel %vm290, %v510, 0
      %v559 = vsel %vm290, %v511, 0
      %v562 = vsel %vm290, %v512, 0
      %v565 = vsel %vm290, %v513, 0
      %v568 = vsel %vm290, %v514, 0
      %v571 = vsel %vm290, %v515, 0
      %v574 = vsel %vm290, %v516, 0
      %v577 = vsel %vm290, %v517, 0
      %v580 = vsel %vm290, %v518, 0
      %v583 = vsel %vm290, %v519, 0
      %v586 = vsel %vm290, %v520, 0
      %v589 = vsel %vm290, %v521, 0
      %v592 = vsel %vm290, %v522, 0
      %v595 = vsel %vm290, %v523, 0
      %v598 = vsel %vm290, %v524, 0
      %v601 = vsel %vm290, %v525, 0
      %v604 = vsel %vm290, %v526, 0
      %v607 = vsel %vm290, %v527, 0
      %v610 = vsel %vm290, %v528, 0
      %v613 = vsel %vm290, %v529, 0
      %v616 = vsel %vm290, %v530, 0
      %v619 = vsel %vm290, %v531, 0
      %v622 = vsel %vm290, %v532, 0
      %v625 = vsel %vm290, %v533, 0
      %v628 = vsel %vm290, %v534, 0
      %v631 = vsel %vm290, %v535, 0
      %v634 = vsel %vm290, %v536, 0
      %v637 = vsel %vm290, %v537, 0
      %v640 = vsel %vm387, %v538, 0
      %642 = vmatpush.msra.mxu0 0.0
      %643 = vmatpush.msra.mxu0 0.0
      %644 = vmatpush.msra.mxu0 0.0
      %645 = vmatpush.msra.mxu0 0.0
      %646 = vmatpush.msra.mxu0 0.0
      %647 = vmatpush.msra.mxu0 0.0
      %648 = vmatpush.msra.mxu0 0.0
      %649 = vmatpush.msra.mxu0 0.0
      %650 = vmatpush.msra.mxu0 0.0
      %651 = vmatpush.msra.mxu0 0.0
      %652 = vmatpush.msra.mxu0 0.0
      %653 = vmatpush.msra.mxu0 0.0
      %654 = vmatpush.msra.mxu0 0.0
      %655 = vmatpush.msra.mxu0 0.0
      %656 = vmatpush.msra.mxu0 0.0
      %657 = vmatpush.msra.mxu0 %v640
      %658 = vmatmul.f32.gmra.mxu0 %v544
      %v659 = vpop.f32.mrf.mxu0
      %v660 = vadd.f32 %v541, %v659
      %661 = vmatmul.f32.gmra.mxu0 %v547
      %v662 = vpop.f32.mrf.mxu0
      %v663 = vadd.f32 %v541, %v662
      %664 = vmatmul.f32.gmra.mxu0 %v550
      %v665 = vpop.f32.mrf.mxu0
      %v666 = vadd.f32 %v541, %v665
      %667 = vmatmul.f32.gmra.mxu0 %v553
      %v668 = vpop.f32.mrf.mxu0
      %v669 = vadd.f32 %v541, %v668
      %670 = vmatmul.f32.gmra.mxu0 %v556
      %v671 = vpop.f32.mrf.mxu0
      %v672 = vadd.f32 %v541, %v671
      %673 = vmatmul.f32.gmra.mxu0 %v559
      %v674 = vpop.f32.mrf.mxu0
      %v675 = vadd.f32 %v541, %v674
      %676 = vmatmul.f32.gmra.mxu0 %v562
      %v677 = vpop.f32.mrf.mxu0
      %v678 = vadd.f32 %v541, %v677
      %679 = vmatmul.f32.gmra.mxu0 %v565
      %v680 = vpop.f32.mrf.mxu0
      %v681 = vadd.f32 %v541, %v680
      %682 = vmatmul.f32.gmra.mxu0 %v568
      %v683 = vpop.f32.mrf.mxu0
      %v684 = vadd.f32 %v541, %v683
      %685 = vmatmul.f32.gmra.mxu0 %v571
      %v686 = vpop.f32.mrf.mxu0
      %v687 = vadd.f32 %v541, %v686
      %688 = vmatmul.f32.gmra.mxu0 %v574
      %v689 = vpop.f32.mrf.mxu0
      %v690 = vadd.f32 %v541, %v689
      %691 = vmatmul.f32.gmra.mxu0 %v577
      %v692 = vpop.f32.mrf.mxu0
      %v693 = vadd.f32 %v541, %v692
      %694 = vmatmul.f32.gmra.mxu0 %v580
      %v695 = vpop.f32.mrf.mxu0
      %v696 = vadd.f32 %v541, %v695
      %697 = vmatmul.f32.gmra.mxu0 %v583
      %v698 = vpop.f32.mrf.mxu0
      %v699 = vadd.f32 %v541, %v698
      %700 = vmatmul.f32.gmra.mxu0 %v586
      %v701 = vpop.f32.mrf.mxu0
      %v702 = vadd.f32 %v541, %v701
      %703 = vmatmul.f32.gmra.mxu0 %v589
      %v704 = vpop.f32.mrf.mxu0
      %v705 = vadd.f32 %v541, %v704
      %706 = vmatmul.f32.gmra.mxu0 %v592
      %v707 = vpop.f32.mrf.mxu0
      %v708 = vadd.f32 %v541, %v707
      %709 = vmatmul.f32.gmra.mxu0 %v595
      %v710 = vpop.f32.mrf.mxu0
      %v711 = vadd.f32 %v541, %v710
      %712 = vmatmul.f32.gmra.mxu0 %v598
      %v713 = vpop.f32.mrf.mxu0
      %v714 = vadd.f32 %v541, %v713
      %715 = vmatmul.f32.gmra.mxu0 %v601
      %v716 = vpop.f32.mrf.mxu0
      %v717 = vadd.f32 %v541, %v716
      %718 = vmatmul.f32.gmra.mxu0 %v604
      %v719 = vpop.f32.mrf.mxu0
      %v720 = vadd.f32 %v541, %v719
      %721 = vmatmul.f32.gmra.mxu0 %v607
      %v722 = vpop.f32.mrf.mxu0
      %v723 = vadd.f32 %v541, %v722
      %724 = vmatmul.f32.gmra.mxu0 %v610
      %v725 = vpop.f32.mrf.mxu0
      %v726 = vadd.f32 %v541, %v725
      %727 = vmatmul.f32.gmra.mxu0 %v613
      %v728 = vpop.f32.mrf.mxu0
      %v729 = vadd.f32 %v541, %v728
      %730 = vmatmul.f32.gmra.mxu0 %v616
      %v731 = vpop.f32.mrf.mxu0
      %v732 = vadd.f32 %v541, %v731
      %733 = vmatmul.f32.gmra.mxu0 %v619
      %v734 = vpop.f32.mrf.mxu0
      %v735 = vadd.f32 %v541, %v734
      %736 = vmatmul.f32.gmra.mxu0 %v622
      %v737 = vpop.f32.mrf.mxu0
      %v738 = vadd.f32 %v541, %v737
      %739 = vmatmul.f32.gmra.mxu0 %v625
      %v740 = vpop.f32.mrf.mxu0
      %v741 = vadd.f32 %v541, %v740
      %742 = vmatmul.f32.gmra.mxu0 %v628
      %v743 = vpop.f32.mrf.mxu0
      %v744 = vadd.f32 %v541, %v743
      %745 = vmatmul.f32.gmra.mxu0 %v631
      %v746 = vpop.f32.mrf.mxu0
      %v747 = vadd.f32 %v541, %v746
      %748 = vmatmul.f32.gmra.mxu0 %v634
      %v749 = vpop.f32.mrf.mxu0
      %v750 = vadd.f32 %v541, %v749
      %751 = vmatmul.f32.gmra.mxu0 %v637
      %v752 = vpop.f32.mrf.mxu0
      %v753 = vadd.f32 %v541, %v752
      %754 = vdwg.mxu0
      %vm755 = vcmask 261120
      %v757 = vsel %vm755, %v660, 0
      %v760 = vsel %vm755, %v663, 0
      %v763 = vsel %vm755, %v666, 0
      %v766 = vsel %vm755, %v669, 0
      %v769 = vsel %vm755, %v672, 0
      %v772 = vsel %vm755, %v675, 0
      %v775 = vsel %vm755, %v678, 0
      %v778 = vsel %vm755, %v681, 0
      %v781 = vsel %vm755, %v684, 0
      %v784 = vsel %vm755, %v687, 0
      %v787 = vsel %vm755, %v690, 0
      %v790 = vsel %vm755, %v693, 0
      %v793 = vsel %vm755, %v696, 0
      %v796 = vsel %vm755, %v699, 0
      %v799 = vsel %vm755, %v702, 0
      %v802 = vsel %vm755, %v705, 0
      %v805 = vsel %vm755, %v708, 0
      %v808 = vsel %vm755, %v711, 0
      %v811 = vsel %vm755, %v714, 0
      %v814 = vsel %vm755, %v717, 0
      %v817 = vsel %vm755, %v720, 0
      %v820 = vsel %vm755, %v723, 0
      %v823 = vsel %vm755, %v726, 0
      %v826 = vsel %vm755, %v729, 0
      %v829 = vsel %vm755, %v732, 0
      %v832 = vsel %vm755, %v735, 0
      %v835 = vsel %vm755, %v738, 0
      %v838 = vsel %vm755, %v741, 0
      %v841 = vsel %vm755, %v744, 0
      %v844 = vsel %vm755, %v747, 0
      %v847 = vsel %vm755, %v750, 0
      %v850 = vsel %vm755, %v753, 0
      %v853 = vsel %vm755, %v409, 0
      %v856 = vsel %vm755, %v412, 0
      %v859 = vsel %vm755, %v415, 0
      %v862 = vsel %vm755, %v418, 0
      %v865 = vsel %vm755, %v421, 0
      %v868 = vsel %vm755, %v424, 0
      %v871 = vsel %vm755, %v427, 0
      %v874 = vsel %vm755, %v430, 0
      %v877 = vsel %vm755, %v433, 0
      %v880 = vsel %vm755, %v436, 0
      %v883 = vsel %vm755, %v439, 0
      %v886 = vsel %vm755, %v442, 0
      %v889 = vsel %vm755, %v445, 0
      %v892 = vsel %vm755, %v448, 0
      %v895 = vsel %vm755, %v451, 0
      %v898 = vsel %vm755, %v454, 0
      %v901 = vsel %vm755, %v457, 0
      %v904 = vsel %vm755, %v460, 0
      %v907 = vsel %vm755, %v463, 0
      %v910 = vsel %vm755, %v466, 0
      %v913 = vsel %vm755, %v469, 0
      %v916 = vsel %vm755, %v472, 0
      %v919 = vsel %vm755, %v475, 0
      %v922 = vsel %vm755, %v478, 0
      %v925 = vsel %vm755, %v481, 0
      %v928 = vsel %vm755, %v484, 0
      %v931 = vsel %vm755, %v487, 0
      %v934 = vsel %vm755, %v490, 0
      %v937 = vsel %vm755, %v493, 0
      %v940 = vsel %vm755, %v496, 0
      %v943 = vsel %vm755, %v499, 0
      %v946 = vsel %vm755, %v502, 0
      %948 = vmatpush.xpose.msra.mxu0 %v898
      %949 = vmatpush.xpose.msra.mxu0 %v895
      %950 = vmatpush.xpose.msra.mxu0 %v892
      %951 = vmatpush.xpose.msra.mxu0 %v889
      %952 = vmatpush.xpose.msra.mxu0 %v886
      %953 = vmatpush.xpose.msra.mxu0 %v883
      %954 = vmatpush.xpose.msra.mxu0 %v880
      %955 = vmatpush.xpose.msra.mxu0 %v877
      %956 = vmatpush.xpose.msra.mxu0 %v874
      %957 = vmatpush.xpose.msra.mxu0 %v871
      %958 = vmatpush.xpose.msra.mxu0 %v868
      %959 = vmatpush.xpose.msra.mxu0 %v865
      %960 = vmatpush.xpose.msra.mxu0 %v862
      %961 = vmatpush.xpose.msra.mxu0 %v859
      %962 = vmatpush.xpose.msra.mxu0 %v856
      %963 = vmatpush.xpose.msra.mxu0 %v853
      %964 = vmatmul.f32.gmra.mxu0 %v757
      %v965 = vpop.f32.mrf.mxu0
      %v966 = vadd.f32 0.0, %v965
      %967 = vmatmul.f32.gmra.mxu0 %v760
      %v968 = vpop.f32.mrf.mxu0
      %v969 = vadd.f32 0.0, %v968
      %970 = vmatmul.f32.gmra.mxu0 %v763
      %v971 = vpop.f32.mrf.mxu0
      %v972 = vadd.f32 0.0, %v971
      %973 = vmatmul.f32.gmra.mxu0 %v766
      %v974 = vpop.f32.mrf.mxu0
      %v975 = vadd.f32 0.0, %v974
      %976 = vmatmul.f32.gmra.mxu0 %v769
      %v977 = vpop.f32.mrf.mxu0
      %v978 = vadd.f32 0.0, %v977
      %979 = vmatmul.f32.gmra.mxu0 %v772
      %v980 = vpop.f32.mrf.mxu0
      %v981 = vadd.f32 0.0, %v980
      %982 = vmatmul.f32.gmra.mxu0 %v775
      %v983 = vpop.f32.mrf.mxu0
      %v984 = vadd.f32 0.0, %v983
      %985 = vmatmul.f32.gmra.mxu0 %v778
      %v986 = vpop.f32.mrf.mxu0
      %v987 = vadd.f32 0.0, %v986
      %988 = vmatmul.f32.gmra.mxu0 %v781
      %v989 = vpop.f32.mrf.mxu0
      %v990 = vadd.f32 0.0, %v989
      %991 = vmatmul.f32.gmra.mxu0 %v784
      %v992 = vpop.f32.mrf.mxu0
      %v993 = vadd.f32 0.0, %v992
      %994 = vmatmul.f32.gmra.mxu0 %v787
      %v995 = vpop.f32.mrf.mxu0
      %v996 = vadd.f32 0.0, %v995
      %997 = vmatmul.f32.gmra.mxu0 %v790
      %v998 = vpop.f32.mrf.mxu0
      %v999 = vadd.f32 0.0, %v998
      %1000 = vmatmul.f32.gmra.mxu0 %v793
      %v1001 = vpop.f32.mrf.mxu0
      %v1002 = vadd.f32 0.0, %v1001
      %1003 = vmatmul.f32.gmra.mxu0 %v796
      %v1004 = vpop.f32.mrf.mxu0
      %v1005 = vadd.f32 0.0, %v1004
      %1006 = vmatmul.f32.gmra.mxu0 %v799
      %v1007 = vpop.f32.mrf.mxu0
      %v1008 = vadd.f32 0.0, %v1007
      %1009 = vmatmul.f32.gmra.mxu0 %v802
      %v1010 = vpop.f32.mrf.mxu0
      %v1011 = vadd.f32 0.0, %v1010
      %1012 = vmatmul.f32.gmra.mxu0 %v805
      %v1013 = vpop.f32.mrf.mxu0
      %v1014 = vadd.f32 0.0, %v1013
      %1015 = vmatmul.f32.gmra.mxu0 %v808
      %v1016 = vpop.f32.mrf.mxu0
      %v1017 = vadd.f32 0.0, %v1016
      %1018 = vmatmul.f32.gmra.mxu0 %v811
      %v1019 = vpop.f32.mrf.mxu0
      %v1020 = vadd.f32 0.0, %v1019
      %1021 = vmatmul.f32.gmra.mxu0 %v814
      %v1022 = vpop.f32.mrf.mxu0
      %v1023 = vadd.f32 0.0, %v1022
      %1024 = vmatmul.f32.gmra.mxu0 %v817
      %v1025 = vpop.f32.mrf.mxu0
      %v1026 = vadd.f32 0.0, %v1025
      %1027 = vmatmul.f32.gmra.mxu0 %v820
      %v1028 = vpop.f32.mrf.mxu0
      %v1029 = vadd.f32 0.0, %v1028
      %1030 = vmatmul.f32.gmra.mxu0 %v823
      %v1031 = vpop.f32.mrf.mxu0
      %v1032 = vadd.f32 0.0, %v1031
      %1033 = vmatmul.f32.gmra.mxu0 %v826
      %v1034 = vpop.f32.mrf.mxu0
      %v1035 = vadd.f32 0.0, %v1034
      %1036 = vmatmul.f32.gmra.mxu0 %v829
      %v1037 = vpop.f32.mrf.mxu0
      %v1038 = vadd.f32 0.0, %v1037
      %1039 = vmatmul.f32.gmra.mxu0 %v832
      %v1040 = vpop.f32.mrf.mxu0
      %v1041 = vadd.f32 0.0, %v1040
      %1042 = vmatmul.f32.gmra.mxu0 %v835
      %v1043 = vpop.f32.mrf.mxu0
      %v1044 = vadd.f32 0.0, %v1043
      %1045 = vmatmul.f32.gmra.mxu0 %v838
      %v1046 = vpop.f32.mrf.mxu0
      %v1047 = vadd.f32 0.0, %v1046
      %1048 = vmatmul.f32.gmra.mxu0 %v841
      %v1049 = vpop.f32.mrf.mxu0
      %v1050 = vadd.f32 0.0, %v1049
      %1051 = vmatmul.f32.gmra.mxu0 %v844
      %v1052 = vpop.f32.mrf.mxu0
      %v1053 = vadd.f32 0.0, %v1052
      %1054 = vmatmul.f32.gmra.mxu0 %v847
      %v1055 = vpop.f32.mrf.mxu0
      %v1056 = vadd.f32 0.0, %v1055
      %1057 = vmatmul.f32.gmra.mxu0 %v850
      %v1058 = vpop.f32.mrf.mxu0
      %v1059 = vadd.f32 0.0, %v1058
      %1060 = vdwg.mxu0
      %1061 = vmatpush.xpose.msra.mxu0 %v946
      %1062 = vmatpush.xpose.msra.mxu0 %v943
      %1063 = vmatpush.xpose.msra.mxu0 %v940
      %1064 = vmatpush.xpose.msra.mxu0 %v937
      %1065 = vmatpush.xpose.msra.mxu0 %v934
      %1066 = vmatpush.xpose.msra.mxu0 %v931
      %1067 = vmatpush.xpose.msra.mxu0 %v928
      %1068 = vmatpush.xpose.msra.mxu0 %v925
      %1069 = vmatpush.xpose.msra.mxu0 %v922
      %1070 = vmatpush.xpose.msra.mxu0 %v919
      %1071 = vmatpush.xpose.msra.mxu0 %v916
      %1072 = vmatpush.xpose.msra.mxu0 %v913
      %1073 = vmatpush.xpose.msra.mxu0 %v910
      %1074 = vmatpush.xpose.msra.mxu0 %v907
      %1075 = vmatpush.xpose.msra.mxu0 %v904
      %1076 = vmatpush.xpose.msra.mxu0 %v901
      %1077 = vmatmul.f32.gmra.mxu0 %v757
      %v1078 = vpop.f32.mrf.mxu0
      %v1079 = vadd.f32 0.0, %v1078
      %1080 = vmatmul.f32.gmra.mxu0 %v760
      %v1081 = vpop.f32.mrf.mxu0
      %v1082 = vadd.f32 0.0, %v1081
      %1083 = vmatmul.f32.gmra.mxu0 %v763
      %v1084 = vpop.f32.mrf.mxu0
      %v1085 = vadd.f32 0.0, %v1084
      %1086 = vmatmul.f32.gmra.mxu0 %v766
      %v1087 = vpop.f32.mrf.mxu0
      %v1088 = vadd.f32 0.0, %v1087
      %1089 = vmatmul.f32.gmra.mxu0 %v769
      %v1090 = vpop.f32.mrf.mxu0
      %v1091 = vadd.f32 0.0, %v1090
      %1092 = vmatmul.f32.gmra.mxu0 %v772
      %v1093 = vpop.f32.mrf.mxu0
      %v1094 = vadd.f32 0.0, %v1093
      %1095 = vmatmul.f32.gmra.mxu0 %v775
      %v1096 = vpop.f32.mrf.mxu0
      %v1097 = vadd.f32 0.0, %v1096
      %1098 = vmatmul.f32.gmra.mxu0 %v778
      %v1099 = vpop.f32.mrf.mxu0
      %v1100 = vadd.f32 0.0, %v1099
      %1101 = vmatmul.f32.gmra.mxu0 %v781
      %v1102 = vpop.f32.mrf.mxu0
      %v1103 = vadd.f32 0.0, %v1102
      %1104 = vmatmul.f32.gmra.mxu0 %v784
      %v1105 = vpop.f32.mrf.mxu0
      %v1106 = vadd.f32 0.0, %v1105
      %1107 = vmatmul.f32.gmra.mxu0 %v787
      %v1108 = vpop.f32.mrf.mxu0
      %v1109 = vadd.f32 0.0, %v1108
      %1110 = vmatmul.f32.gmra.mxu0 %v790
      %v1111 = vpop.f32.mrf.mxu0
      %v1112 = vadd.f32 0.0, %v1111
      %1113 = vmatmul.f32.gmra.mxu0 %v793
      %v1114 = vpop.f32.mrf.mxu0
      %v1115 = vadd.f32 0.0, %v1114
      %1116 = vmatmul.f32.gmra.mxu0 %v796
      %v1117 = vpop.f32.mrf.mxu0
      %v1118 = vadd.f32 0.0, %v1117
      %1119 = vmatmul.f32.gmra.mxu0 %v799
      %v1120 = vpop.f32.mrf.mxu0
      %v1121 = vadd.f32 0.0, %v1120
      %1122 = vmatmul.f32.gmra.mxu0 %v802
      %v1123 = vpop.f32.mrf.mxu0
      %v1124 = vadd.f32 0.0, %v1123
      %1125 = vmatmul.f32.gmra.mxu0 %v805
      %v1126 = vpop.f32.mrf.mxu0
      %v1127 = vadd.f32 0.0, %v1126
      %1128 = vmatmul.f32.gmra.mxu0 %v808
      %v1129 = vpop.f32.mrf.mxu0
      %v1130 = vadd.f32 0.0, %v1129
      %1131 = vmatmul.f32.gmra.mxu0 %v811
      %v1132 = vpop.f32.mrf.mxu0
      %v1133 = vadd.f32 0.0, %v1132
      %1134 = vmatmul.f32.gmra.mxu0 %v814
      %v1135 = vpop.f32.mrf.mxu0
      %v1136 = vadd.f32 0.0, %v1135
      %1137 = vmatmul.f32.gmra.mxu0 %v817
      %v1138 = vpop.f32.mrf.mxu0
      %v1139 = vadd.f32 0.0, %v1138
      %1140 = vmatmul.f32.gmra.mxu0 %v820
      %v1141 = vpop.f32.mrf.mxu0
      %v1142 = vadd.f32 0.0, %v1141
      %1143 = vmatmul.f32.gmra.mxu0 %v823
      %v1144 = vpop.f32.mrf.mxu0
      %v1145 = vadd.f32 0.0, %v1144
      %1146 = vmatmul.f32.gmra.mxu0 %v826
      %v1147 = vpop.f32.mrf.mxu0
      %v1148 = vadd.f32 0.0, %v1147
      %1149 = vmatmul.f32.gmra.mxu0 %v829
      %v1150 = vpop.f32.mrf.mxu0
      %v1151 = vadd.f32 0.0, %v1150
      %1152 = vmatmul.f32.gmra.mxu0 %v832
      %v1153 = vpop.f32.mrf.mxu0
      %v1154 = vadd.f32 0.0, %v1153
      %1155 = vmatmul.f32.gmra.mxu0 %v835
      %v1156 = vpop.f32.mrf.mxu0
      %v1157 = vadd.f32 0.0, %v1156
      %1158 = vmatmul.f32.gmra.mxu0 %v838
      %v1159 = vpop.f32.mrf.mxu0
      %v1160 = vadd.f32 0.0, %v1159
      %1161 = vmatmul.f32.gmra.mxu0 %v841
      %v1162 = vpop.f32.mrf.mxu0
      %v1163 = vadd.f32 0.0, %v1162
      %1164 = vmatmul.f32.gmra.mxu0 %v844
      %v1165 = vpop.f32.mrf.mxu0
      %v1166 = vadd.f32 0.0, %v1165
      %1167 = vmatmul.f32.gmra.mxu0 %v847
      %v1168 = vpop.f32.mrf.mxu0
      %v1169 = vadd.f32 0.0, %v1168
      %1170 = vmatmul.f32.gmra.mxu0 %v850
      %v1171 = vpop.f32.mrf.mxu0
      %v1172 = vadd.f32 0.0, %v1171
      %1173 = vdwg.mxu0
      %v1174 = vlaneseq
      %v1175 = vshrl.u32 %v1174, 7
      %v1176 = vadd.s32 %v1175, 8
      %v1177 = vadd.s32 %v1175, 16
      %v1178 = vadd.s32 %v1175, 24
      %v1179 = vadd.s32 %v1175, 32
      %v1180 = vadd.s32 %v1175, 40
      %v1181 = vadd.s32 %v1175, 48
      %v1182 = vadd.s32 %v1175, 56
      %v1183 = vadd.s32 %v1175, 64
      %v1184 = vadd.s32 %v1175, 72
      %v1185 = vadd.s32 %v1175, 80
      %v1186 = vadd.s32 %v1175, 88
      %v1187 = vadd.s32 %v1175, 96
      %v1188 = vadd.s32 %v1175, 104
      %v1189 = vadd.s32 %v1175, 112
      %v1190 = vadd.s32 %v1175, 120
      %v1191 = vadd.s32 %v1175, 128
      %v1192 = vadd.s32 %v1175, 136
      %v1193 = vadd.s32 %v1175, 144
      %v1194 = vadd.s32 %v1175, 152
      %v1195 = vadd.s32 %v1175, 160
      %v1196 = vadd.s32 %v1175, 168
      %v1197 = vadd.s32 %v1175, 176
      %v1198 = vadd.s32 %v1175, 184
      %v1199 = vadd.s32 %v1175, 192
      %v1200 = vadd.s32 %v1175, 200
      %v1201 = vadd.s32 %v1175, 208
      %v1202 = vadd.s32 %v1175, 216
      %v1203 = vadd.s32 %v1175, 224
      %v1204 = vadd.s32 %v1175, 232
      %v1205 = vadd.s32 %v1175, 240
      %v1206 = vadd.s32 %v1175, 248
      %v1207 = vlaneseq
      %v1208 = vand.u32 %v1207, 127
      %v1209 = vadd.s32 %v1208, 128
      %v1210 = vshra.s32 %v1175, 4
      %v1211 = vshra.s32 %v1176, 4
      %v1212 = vshra.s32 %v1177, 4
      %v1213 = vshra.s32 %v1178, 4
      %v1214 = vshra.s32 %v1179, 4
      %v1215 = vshra.s32 %v1180, 4
      %v1216 = vshra.s32 %v1181, 4
      %v1217 = vshra.s32 %v1182, 4
      %v1218 = vshra.s32 %v1183, 4
      %v1219 = vshra.s32 %v1184, 4
      %v1220 = vshra.s32 %v1185, 4
      %v1221 = vshra.s32 %v1186, 4
      %v1222 = vshra.s32 %v1187, 4
      %v1223 = vshra.s32 %v1188, 4
      %v1224 = vshra.s32 %v1189, 4
      %v1225 = vshra.s32 %v1190, 4
      %v1226 = vshra.s32 %v1191, 4
      %v1227 = vshra.s32 %v1192, 4
      %v1228 = vshra.s32 %v1193, 4
      %v1229 = vshra.s32 %v1194, 4
      %v1230 = vshra.s32 %v1195, 4
      %v1231 = vshra.s32 %v1196, 4
      %v1232 = vshra.s32 %v1197, 4
      %v1233 = vshra.s32 %v1198, 4
      %v1234 = vshra.s32 %v1199, 4
      %v1235 = vshra.s32 %v1200, 4
      %v1236 = vshra.s32 %v1201, 4
      %v1237 = vshra.s32 %v1202, 4
      %v1238 = vshra.s32 %v1203, 4
      %v1239 = vshra.s32 %v1204, 4
      %v1240 = vshra.s32 %v1205, 4
      %v1241 = vshra.s32 %v1206, 4
      %v1242 = vstv %s245
      %v1243 = vadd.s32 %v1242, %v1210
      %v1244 = vadd.s32 %v1242, %v1211
      %v1245 = vadd.s32 %v1242, %v1212
      %v1246 = vadd.s32 %v1242, %v1213
      %v1247 = vadd.s32 %v1242, %v1214
      %v1248 = vadd.s32 %v1242, %v1215
      %v1249 = vadd.s32 %v1242, %v1216
      %v1250 = vadd.s32 %v1242, %v1217
      %v1251 = vadd.s32 %v1242, %v1218
      %v1252 = vadd.s32 %v1242, %v1219
      %v1253 = vadd.s32 %v1242, %v1220
      %v1254 = vadd.s32 %v1242, %v1221
      %v1255 = vadd.s32 %v1242, %v1222
      %v1256 = vadd.s32 %v1242, %v1223
      %v1257 = vadd.s32 %v1242, %v1224
      %v1258 = vadd.s32 %v1242, %v1225
      %v1259 = vadd.s32 %v1242, %v1226
      %v1260 = vadd.s32 %v1242, %v1227
      %v1261 = vadd.s32 %v1242, %v1228
      %v1262 = vadd.s32 %v1242, %v1229
      %v1263 = vadd.s32 %v1242, %v1230
      %v1264 = vadd.s32 %v1242, %v1231
      %v1265 = vadd.s32 %v1242, %v1232
      %v1266 = vadd.s32 %v1242, %v1233
      %v1267 = vadd.s32 %v1242, %v1234
      %v1268 = vadd.s32 %v1242, %v1235
      %v1269 = vadd.s32 %v1242, %v1236
      %v1270 = vadd.s32 %v1242, %v1237
      %v1271 = vadd.s32 %v1242, %v1238
      %v1272 = vadd.s32 %v1242, %v1239
      %v1273 = vadd.s32 %v1242, %v1240
      %v1274 = vadd.s32 %v1242, %v1241
      %v1275 = vand.u32 %v1175, 15
      %v1276 = vand.u32 %v1176, 15
      %v1277 = vand.u32 %v1177, 15
      %v1278 = vand.u32 %v1178, 15
      %v1279 = vand.u32 %v1179, 15
      %v1280 = vand.u32 %v1180, 15
      %v1281 = vand.u32 %v1181, 15
      %v1282 = vand.u32 %v1182, 15
      %v1283 = vand.u32 %v1183, 15
      %v1284 = vand.u32 %v1184, 15
      %v1285 = vand.u32 %v1185, 15
      %v1286 = vand.u32 %v1186, 15
      %v1287 = vand.u32 %v1187, 15
      %v1288 = vand.u32 %v1188, 15
      %v1289 = vand.u32 %v1189, 15
      %v1290 = vand.u32 %v1190, 15
      %v1291 = vand.u32 %v1191, 15
      %v1292 = vand.u32 %v1192, 15
      %v1293 = vand.u32 %v1193, 15
      %v1294 = vand.u32 %v1194, 15
      %v1295 = vand.u32 %v1195, 15
      %v1296 = vand.u32 %v1196, 15
      %v1297 = vand.u32 %v1197, 15
      %v1298 = vand.u32 %v1198, 15
      %v1299 = vand.u32 %v1199, 15
      %v1300 = vand.u32 %v1200, 15
      %v1301 = vand.u32 %v1201, 15
      %v1302 = vand.u32 %v1202, 15
      %v1303 = vand.u32 %v1203, 15
      %v1304 = vand.u32 %v1204, 15
      %v1305 = vand.u32 %v1205, 15
      %v1306 = vand.u32 %v1206, 15
      %v1307 = vshra.s32 %v1208, 4
      %v1308 = vshra.s32 %v1209, 4
      %v1309 = vstv %s250
      %v1310 = vadd.s32 %v1309, %v1307
      %v1311 = vadd.s32 %v1309, %v1308
      %v1312 = vand.u32 %v1208, 15
      %v1313 = vand.u32 %v1209, 15
      %v1314 = vsub.s32 %v1243, 1
      %v1315 = vsub.s32 %v1244, 1
      %v1316 = vsub.s32 %v1245, 1
      %v1317 = vsub.s32 %v1246, 1
      %v1318 = vsub.s32 %v1247, 1
      %v1319 = vsub.s32 %v1248, 1
      %v1320 = vsub.s32 %v1249, 1
      %v1321 = vsub.s32 %v1250, 1
      %v1322 = vsub.s32 %v1251, 1
      %v1323 = vsub.s32 %v1252, 1
      %v1324 = vsub.s32 %v1253, 1
      %v1325 = vsub.s32 %v1254, 1
      %v1326 = vsub.s32 %v1255, 1
      %v1327 = vsub.s32 %v1256, 1
      %v1328 = vsub.s32 %v1257, 1
      %v1329 = vsub.s32 %v1258, 1
      %v1330 = vsub.s32 %v1259, 1
      %v1331 = vsub.s32 %v1260, 1
      %v1332 = vsub.s32 %v1261, 1
      %v1333 = vsub.s32 %v1262, 1
      %v1334 = vsub.s32 %v1263, 1
      %v1335 = vsub.s32 %v1264, 1
      %v1336 = vsub.s32 %v1265, 1
      %v1337 = vsub.s32 %v1266, 1
      %v1338 = vsub.s32 %v1267, 1
      %v1339 = vsub.s32 %v1268, 1
      %v1340 = vsub.s32 %v1269, 1
      %v1341 = vsub.s32 %v1270, 1
      %v1342 = vsub.s32 %v1271, 1
      %v1343 = vsub.s32 %v1272, 1
      %v1344 = vsub.s32 %v1273, 1
      %v1345 = vsub.s32 %v1274, 1
      %vm1346 = vcmp.gt.s32.totalorder %v1314, 0
      %v1347 = vsel %vm1346, %v1314, 0
      %vm1348 = vcmp.gt.s32.totalorder %v1315, 0
      %v1349 = vsel %vm1348, %v1315, 0
      %vm1350 = vcmp.gt.s32.totalorder %v1316, 0
      %v1351 = vsel %vm1350, %v1316, 0
      %vm1352 = vcmp.gt.s32.totalorder %v1317, 0
      %v1353 = vsel %vm1352, %v1317, 0
      %vm1354 = vcmp.gt.s32.totalorder %v1318, 0
      %v1355 = vsel %vm1354, %v1318, 0
      %vm1356 = vcmp.gt.s32.totalorder %v1319, 0
      %v1357 = vsel %vm1356, %v1319, 0
      %vm1358 = vcmp.gt.s32.totalorder %v1320, 0
      %v1359 = vsel %vm1358, %v1320, 0
      %vm1360 = vcmp.gt.s32.totalorder %v1321, 0
      %v1361 = vsel %vm1360, %v1321, 0
      %vm1362 = vcmp.gt.s32.totalorder %v1322, 0
      %v1363 = vsel %vm1362, %v1322, 0
      %vm1364 = vcmp.gt.s32.totalorder %v1323, 0
      %v1365 = vsel %vm1364, %v1323, 0
      %vm1366 = vcmp.gt.s32.totalorder %v1324, 0
      %v1367 = vsel %vm1366, %v1324, 0
      %vm1368 = vcmp.gt.s32.totalorder %v1325, 0
      %v1369 = vsel %vm1368, %v1325, 0
      %vm1370 = vcmp.gt.s32.totalorder %v1326, 0
      %v1371 = vsel %vm1370, %v1326, 0
      %vm1372 = vcmp.gt.s32.totalorder %v1327, 0
      %v1373 = vsel %vm1372, %v1327, 0
      %vm1374 = vcmp.gt.s32.totalorder %v1328, 0
      %v1375 = vsel %vm1374, %v1328, 0
      %vm1376 = vcmp.gt.s32.totalorder %v1329, 0
      %v1377 = vsel %vm1376, %v1329, 0
      %vm1378 = vcmp.gt.s32.totalorder %v1330, 0
      %v1379 = vsel %vm1378, %v1330, 0
      %vm1380 = vcmp.gt.s32.totalorder %v1331, 0
      %v1381 = vsel %vm1380, %v1331, 0
      %vm1382 = vcmp.gt.s32.totalorder %v1332, 0
      %v1383 = vsel %vm1382, %v1332, 0
      %vm1384 = vcmp.gt.s32.totalorder %v1333, 0
      %v1385 = vsel %vm1384, %v1333, 0
      %vm1386 = vcmp.gt.s32.totalorder %v1334, 0
      %v1387 = vsel %vm1386, %v1334, 0
      %vm1388 = vcmp.gt.s32.totalorder %v1335, 0
      %v1389 = vsel %vm1388, %v1335, 0
      %vm1390 = vcmp.gt.s32.totalorder %v1336, 0
      %v1391 = vsel %vm1390, %v1336, 0
      %vm1392 = vcmp.gt.s32.totalorder %v1337, 0
      %v1393 = vsel %vm1392, %v1337, 0
      %vm1394 = vcmp.gt.s32.totalorder %v1338, 0
      %v1395 = vsel %vm1394, %v1338, 0
      %vm1396 = vcmp.gt.s32.totalorder %v1339, 0
      %v1397 = vsel %vm1396, %v1339, 0
      %vm1398 = vcmp.gt.s32.totalorder %v1340, 0
      %v1399 = vsel %vm1398, %v1340, 0
      %vm1400 = vcmp.gt.s32.totalorder %v1341, 0
      %v1401 = vsel %vm1400, %v1341, 0
      %vm1402 = vcmp.gt.s32.totalorder %v1342, 0
      %v1403 = vsel %vm1402, %v1342, 0
      %vm1404 = vcmp.gt.s32.totalorder %v1343, 0
      %v1405 = vsel %vm1404, %v1343, 0
      %vm1406 = vcmp.gt.s32.totalorder %v1344, 0
      %v1407 = vsel %vm1406, %v1344, 0
      %vm1408 = vcmp.gt.s32.totalorder %v1345, 0
      %v1409 = vsel %vm1408, %v1345, 0
      %vm1410 = vcmp.lt.s32.totalorder %v1347, 13
      %v1411 = vsel %vm1410, %v1347, 13
      %vm1412 = vcmp.lt.s32.totalorder %v1349, 13
      %v1413 = vsel %vm1412, %v1349, 13
      %vm1414 = vcmp.lt.s32.totalorder %v1351, 13
      %v1415 = vsel %vm1414, %v1351, 13
      %vm1416 = vcmp.lt.s32.totalorder %v1353, 13
      %v1417 = vsel %vm1416, %v1353, 13
      %vm1418 = vcmp.lt.s32.totalorder %v1355, 13
      %v1419 = vsel %vm1418, %v1355, 13
      %vm1420 = vcmp.lt.s32.totalorder %v1357, 13
      %v1421 = vsel %vm1420, %v1357, 13
      %vm1422 = vcmp.lt.s32.totalorder %v1359, 13
      %v1423 = vsel %vm1422, %v1359, 13
      %vm1424 = vcmp.lt.s32.totalorder %v1361, 13
      %v1425 = vsel %vm1424, %v1361, 13
      %vm1426 = vcmp.lt.s32.totalorder %v1363, 13
      %v1427 = vsel %vm1426, %v1363, 13
      %vm1428 = vcmp.lt.s32.totalorder %v1365, 13
      %v1429 = vsel %vm1428, %v1365, 13
      %vm1430 = vcmp.lt.s32.totalorder %v1367, 13
      %v1431 = vsel %vm1430, %v1367, 13
      %vm1432 = vcmp.lt.s32.totalorder %v1369, 13
      %v1433 = vsel %vm1432, %v1369, 13
      %vm1434 = vcmp.lt.s32.totalorder %v1371, 13
      %v1435 = vsel %vm1434, %v1371, 13
      %vm1436 = vcmp.lt.s32.totalorder %v1373, 13
      %v1437 = vsel %vm1436, %v1373, 13
      %vm1438 = vcmp.lt.s32.totalorder %v1375, 13
      %v1439 = vsel %vm1438, %v1375, 13
      %vm1440 = vcmp.lt.s32.totalorder %v1377, 13
      %v1441 = vsel %vm1440, %v1377, 13
      %vm1442 = vcmp.lt.s32.totalorder %v1379, 13
      %v1443 = vsel %vm1442, %v1379, 13
      %vm1444 = vcmp.lt.s32.totalorder %v1381, 13
      %v1445 = vsel %vm1444, %v1381, 13
      %vm1446 = vcmp.lt.s32.totalorder %v1383, 13
      %v1447 = vsel %vm1446, %v1383, 13
      %vm1448 = vcmp.lt.s32.totalorder %v1385, 13
      %v1449 = vsel %vm1448, %v1385, 13
      %vm1450 = vcmp.lt.s32.totalorder %v1387, 13
      %v1451 = vsel %vm1450, %v1387, 13
      %vm1452 = vcmp.lt.s32.totalorder %v1389, 13
      %v1453 = vsel %vm1452, %v1389, 13
      %vm1454 = vcmp.lt.s32.totalorder %v1391, 13
      %v1455 = vsel %vm1454, %v1391, 13
      %vm1456 = vcmp.lt.s32.totalorder %v1393, 13
      %v1457 = vsel %vm1456, %v1393, 13
      %vm1458 = vcmp.lt.s32.totalorder %v1395, 13
      %v1459 = vsel %vm1458, %v1395, 13
      %vm1460 = vcmp.lt.s32.totalorder %v1397, 13
      %v1461 = vsel %vm1460, %v1397, 13
      %vm1462 = vcmp.lt.s32.totalorder %v1399, 13
      %v1463 = vsel %vm1462, %v1399, 13
      %vm1464 = vcmp.lt.s32.totalorder %v1401, 13
      %v1465 = vsel %vm1464, %v1401, 13
      %vm1466 = vcmp.lt.s32.totalorder %v1403, 13
      %v1467 = vsel %vm1466, %v1403, 13
      %vm1468 = vcmp.lt.s32.totalorder %v1405, 13
      %v1469 = vsel %vm1468, %v1405, 13
      %vm1470 = vcmp.lt.s32.totalorder %v1407, 13
      %v1471 = vsel %vm1470, %v1407, 13
      %vm1472 = vcmp.lt.s32.totalorder %v1409, 13
      %v1473 = vsel %vm1472, %v1409, 13
      %v1474 = vsub.s32 %v1275, 1
      %v1475 = vsub.s32 %v1276, 1
      %v1476 = vsub.s32 %v1277, 1
      %v1477 = vsub.s32 %v1278, 1
      %v1478 = vsub.s32 %v1279, 1
      %v1479 = vsub.s32 %v1280, 1
      %v1480 = vsub.s32 %v1281, 1
      %v1481 = vsub.s32 %v1282, 1
      %v1482 = vsub.s32 %v1283, 1
      %v1483 = vsub.s32 %v1284, 1
      %v1484 = vsub.s32 %v1285, 1
      %v1485 = vsub.s32 %v1286, 1
      %v1486 = vsub.s32 %v1287, 1
      %v1487 = vsub.s32 %v1288, 1
      %v1488 = vsub.s32 %v1289, 1
      %v1489 = vsub.s32 %v1290, 1
      %v1490 = vsub.s32 %v1291, 1
      %v1491 = vsub.s32 %v1292, 1
      %v1492 = vsub.s32 %v1293, 1
      %v1493 = vsub.s32 %v1294, 1
      %v1494 = vsub.s32 %v1295, 1
      %v1495 = vsub.s32 %v1296, 1
      %v1496 = vsub.s32 %v1297, 1
      %v1497 = vsub.s32 %v1298, 1
      %v1498 = vsub.s32 %v1299, 1
      %v1499 = vsub.s32 %v1300, 1
      %v1500 = vsub.s32 %v1301, 1
      %v1501 = vsub.s32 %v1302, 1
      %v1502 = vsub.s32 %v1303, 1
      %v1503 = vsub.s32 %v1304, 1
      %v1504 = vsub.s32 %v1305, 1
      %v1505 = vsub.s32 %v1306, 1
      %vm1506 = vcmp.gt.s32.totalorder %v1474, 0
      %v1507 = vsel %vm1506, %v1474, 0
      %vm1508 = vcmp.gt.s32.totalorder %v1475, 0
      %v1509 = vsel %vm1508, %v1475, 0
      %vm1510 = vcmp.gt.s32.totalorder %v1476, 0
      %v1511 = vsel %vm1510, %v1476, 0
      %vm1512 = vcmp.gt.s32.totalorder %v1477, 0
      %v1513 = vsel %vm1512, %v1477, 0
      %vm1514 = vcmp.gt.s32.totalorder %v1478, 0
      %v1515 = vsel %vm1514, %v1478, 0
      %vm1516 = vcmp.gt.s32.totalorder %v1479, 0
      %v1517 = vsel %vm1516, %v1479, 0
      %vm1518 = vcmp.gt.s32.totalorder %v1480, 0
      %v1519 = vsel %vm1518, %v1480, 0
      %vm1520 = vcmp.gt.s32.totalorder %v1481, 0
      %v1521 = vsel %vm1520, %v1481, 0
      %vm1522 = vcmp.gt.s32.totalorder %v1482, 0
      %v1523 = vsel %vm1522, %v1482, 0
      %vm1524 = vcmp.gt.s32.totalorder %v1483, 0
      %v1525 = vsel %vm1524, %v1483, 0
      %vm1526 = vcmp.gt.s32.totalorder %v1484, 0
      %v1527 = vsel %vm1526, %v1484, 0
      %vm1528 = vcmp.gt.s32.totalorder %v1485, 0
      %v1529 = vsel %vm1528, %v1485, 0
      %vm1530 = vcmp.gt.s32.totalorder %v1486, 0
      %v1531 = vsel %vm1530, %v1486, 0
      %vm1532 = vcmp.gt.s32.totalorder %v1487, 0
      %v1533 = vsel %vm1532, %v1487, 0
      %vm1534 = vcmp.gt.s32.totalorder %v1488, 0
      %v1535 = vsel %vm1534, %v1488, 0
      %vm1536 = vcmp.gt.s32.totalorder %v1489, 0
      %v1537 = vsel %vm1536, %v1489, 0
      %vm1538 = vcmp.gt.s32.totalorder %v1490, 0
      %v1539 = vsel %vm1538, %v1490, 0
      %vm1540 = vcmp.gt.s32.totalorder %v1491, 0
      %v1541 = vsel %vm1540, %v1491, 0
      %vm1542 = vcmp.gt.s32.totalorder %v1492, 0
      %v1543 = vsel %vm1542, %v1492, 0
      %vm1544 = vcmp.gt.s32.totalorder %v1493, 0
      %v1545 = vsel %vm1544, %v1493, 0
      %vm1546 = vcmp.gt.s32.totalorder %v1494, 0
      %v1547 = vsel %vm1546, %v1494, 0
      %vm1548 = vcmp.gt.s32.totalorder %v1495, 0
      %v1549 = vsel %vm1548, %v1495, 0
      %vm1550 = vcmp.gt.s32.totalorder %v1496, 0
      %v1551 = vsel %vm1550, %v1496, 0
      %vm1552 = vcmp.gt.s32.totalorder %v1497, 0
      %v1553 = vsel %vm1552, %v1497, 0
      %vm1554 = vcmp.gt.s32.totalorder %v1498, 0
      %v1555 = vsel %vm1554, %v1498, 0
      %vm1556 = vcmp.gt.s32.totalorder %v1499, 0
      %v1557 = vsel %vm1556, %v1499, 0
      %vm1558 = vcmp.gt.s32.totalorder %v1500, 0
      %v1559 = vsel %vm1558, %v1500, 0
      %vm1560 = vcmp.gt.s32.totalorder %v1501, 0
      %v1561 = vsel %vm1560, %v1501, 0
      %vm1562 = vcmp.gt.s32.totalorder %v1502, 0
      %v1563 = vsel %vm1562, %v1502, 0
      %vm1564 = vcmp.gt.s32.totalorder %v1503, 0
      %v1565 = vsel %vm1564, %v1503, 0
      %vm1566 = vcmp.gt.s32.totalorder %v1504, 0
      %v1567 = vsel %vm1566, %v1504, 0
      %vm1568 = vcmp.gt.s32.totalorder %v1505, 0
      %v1569 = vsel %vm1568, %v1505, 0
      %vm1570 = vcmp.lt.s32.totalorder %v1507, 13
      %v1571 = vsel %vm1570, %v1507, 13
      %vm1572 = vcmp.lt.s32.totalorder %v1509, 13
      %v1573 = vsel %vm1572, %v1509, 13
      %vm1574 = vcmp.lt.s32.totalorder %v1511, 13
      %v1575 = vsel %vm1574, %v1511, 13
      %vm1576 = vcmp.lt.s32.totalorder %v1513, 13
      %v1577 = vsel %vm1576, %v1513, 13
      %vm1578 = vcmp.lt.s32.totalorder %v1515, 13
      %v1579 = vsel %vm1578, %v1515, 13
      %vm1580 = vcmp.lt.s32.totalorder %v1517, 13
      %v1581 = vsel %vm1580, %v1517, 13
      %vm1582 = vcmp.lt.s32.totalorder %v1519, 13
      %v1583 = vsel %vm1582, %v1519, 13
      %vm1584 = vcmp.lt.s32.totalorder %v1521, 13
      %v1585 = vsel %vm1584, %v1521, 13
      %vm1586 = vcmp.lt.s32.totalorder %v1523, 13
      %v1587 = vsel %vm1586, %v1523, 13
      %vm1588 = vcmp.lt.s32.totalorder %v1525, 13
      %v1589 = vsel %vm1588, %v1525, 13
      %vm1590 = vcmp.lt.s32.totalorder %v1527, 13
      %v1591 = vsel %vm1590, %v1527, 13
      %vm1592 = vcmp.lt.s32.totalorder %v1529, 13
      %v1593 = vsel %vm1592, %v1529, 13
      %vm1594 = vcmp.lt.s32.totalorder %v1531, 13
      %v1595 = vsel %vm1594, %v1531, 13
      %vm1596 = vcmp.lt.s32.totalorder %v1533, 13
      %v1597 = vsel %vm1596, %v1533, 13
      %vm1598 = vcmp.lt.s32.totalorder %v1535, 13
      %v1599 = vsel %vm1598, %v1535, 13
      %vm1600 = vcmp.lt.s32.totalorder %v1537, 13
      %v1601 = vsel %vm1600, %v1537, 13
      %vm1602 = vcmp.lt.s32.totalorder %v1539, 13
      %v1603 = vsel %vm1602, %v1539, 13
      %vm1604 = vcmp.lt.s32.totalorder %v1541, 13
      %v1605 = vsel %vm1604, %v1541, 13
      %vm1606 = vcmp.lt.s32.totalorder %v1543, 13
      %v1607 = vsel %vm1606, %v1543, 13
      %vm1608 = vcmp.lt.s32.totalorder %v1545, 13
      %v1609 = vsel %vm1608, %v1545, 13
      %vm1610 = vcmp.lt.s32.totalorder %v1547, 13
      %v1611 = vsel %vm1610, %v1547, 13
      %vm1612 = vcmp.lt.s32.totalorder %v1549, 13
      %v1613 = vsel %vm1612, %v1549, 13
      %vm1614 = vcmp.lt.s32.totalorder %v1551, 13
      %v1615 = vsel %vm1614, %v1551, 13
      %vm1616 = vcmp.lt.s32.totalorder %v1553, 13
      %v1617 = vsel %vm1616, %v1553, 13
      %vm1618 = vcmp.lt.s32.totalorder %v1555, 13
      %v1619 = vsel %vm1618, %v1555, 13
      %vm1620 = vcmp.lt.s32.totalorder %v1557, 13
      %v1621 = vsel %vm1620, %v1557, 13
      %vm1622 = vcmp.lt.s32.totalorder %v1559, 13
      %v1623 = vsel %vm1622, %v1559, 13
      %vm1624 = vcmp.lt.s32.totalorder %v1561, 13
      %v1625 = vsel %vm1624, %v1561, 13
      %vm1626 = vcmp.lt.s32.totalorder %v1563, 13
      %v1627 = vsel %vm1626, %v1563, 13
      %vm1628 = vcmp.lt.s32.totalorder %v1565, 13
      %v1629 = vsel %vm1628, %v1565, 13
      %vm1630 = vcmp.lt.s32.totalorder %v1567, 13
      %v1631 = vsel %vm1630, %v1567, 13
      %vm1632 = vcmp.lt.s32.totalorder %v1569, 13
      %v1633 = vsel %vm1632, %v1569, 13
      %vm1634 = vcmp.ge.s32.totalorder %v1310, %v1411
      %vm1635 = vcmp.ge.s32.totalorder %v1311, %v1411
      %vm1636 = vcmp.ge.s32.totalorder %v1310, %v1413
      %vm1637 = vcmp.ge.s32.totalorder %v1311, %v1413
      %vm1638 = vcmp.ge.s32.totalorder %v1310, %v1415
      %vm1639 = vcmp.ge.s32.totalorder %v1311, %v1415
      %vm1640 = vcmp.ge.s32.totalorder %v1310, %v1417
      %vm1641 = vcmp.ge.s32.totalorder %v1311, %v1417
      %vm1642 = vcmp.ge.s32.totalorder %v1310, %v1419
      %vm1643 = vcmp.ge.s32.totalorder %v1311, %v1419
      %vm1644 = vcmp.ge.s32.totalorder %v1310, %v1421
      %vm1645 = vcmp.ge.s32.totalorder %v1311, %v1421
      %vm1646 = vcmp.ge.s32.totalorder %v1310, %v1423
      %vm1647 = vcmp.ge.s32.totalorder %v1311, %v1423
      %vm1648 = vcmp.ge.s32.totalorder %v1310, %v1425
      %vm1649 = vcmp.ge.s32.totalorder %v1311, %v1425
      %vm1650 = vcmp.ge.s32.totalorder %v1310, %v1427
      %vm1651 = vcmp.ge.s32.totalorder %v1311, %v1427
      %vm1652 = vcmp.ge.s32.totalorder %v1310, %v1429
      %vm1653 = vcmp.ge.s32.totalorder %v1311, %v1429
      %vm1654 = vcmp.ge.s32.totalorder %v1310, %v1431
      %vm1655 = vcmp.ge.s32.totalorder %v1311, %v1431
      %vm1656 = vcmp.ge.s32.totalorder %v1310, %v1433
      %vm1657 = vcmp.ge.s32.totalorder %v1311, %v1433
      %vm1658 = vcmp.ge.s32.totalorder %v1310, %v1435
      %vm1659 = vcmp.ge.s32.totalorder %v1311, %v1435
      %vm1660 = vcmp.ge.s32.totalorder %v1310, %v1437
      %vm1661 = vcmp.ge.s32.totalorder %v1311, %v1437
      %vm1662 = vcmp.ge.s32.totalorder %v1310, %v1439
      %vm1663 = vcmp.ge.s32.totalorder %v1311, %v1439
      %vm1664 = vcmp.ge.s32.totalorder %v1310, %v1441
      %vm1665 = vcmp.ge.s32.totalorder %v1311, %v1441
      %vm1666 = vcmp.ge.s32.totalorder %v1310, %v1443
      %vm1667 = vcmp.ge.s32.totalorder %v1311, %v1443
      %vm1668 = vcmp.ge.s32.totalorder %v1310, %v1445
      %vm1669 = vcmp.ge.s32.totalorder %v1311, %v1445
      %vm1670 = vcmp.ge.s32.totalorder %v1310, %v1447
      %vm1671 = vcmp.ge.s32.totalorder %v1311, %v1447
      %vm1672 = vcmp.ge.s32.totalorder %v1310, %v1449
      %vm1673 = vcmp.ge.s32.totalorder %v1311, %v1449
      %vm1674 = vcmp.ge.s32.totalorder %v1310, %v1451
      %vm1675 = vcmp.ge.s32.totalorder %v1311, %v1451
      %vm1676 = vcmp.ge.s32.totalorder %v1310, %v1453
      %vm1677 = vcmp.ge.s32.totalorder %v1311, %v1453
      %vm1678 = vcmp.ge.s32.totalorder %v1310, %v1455
      %vm1679 = vcmp.ge.s32.totalorder %v1311, %v1455
      %vm1680 = vcmp.ge.s32.totalorder %v1310, %v1457
      %vm1681 = vcmp.ge.s32.totalorder %v1311, %v1457
      %vm1682 = vcmp.ge.s32.totalorder %v1310, %v1459
      %vm1683 = vcmp.ge.s32.totalorder %v1311, %v1459
      %vm1684 = vcmp.ge.s32.totalorder %v1310, %v1461
      %vm1685 = vcmp.ge.s32.totalorder %v1311, %v1461
      %vm1686 = vcmp.ge.s32.totalorder %v1310, %v1463
      %vm1687 = vcmp.ge.s32.totalorder %v1311, %v1463
      %vm1688 = vcmp.ge.s32.totalorder %v1310, %v1465
      %vm1689 = vcmp.ge.s32.totalorder %v1311, %v1465
      %vm1690 = vcmp.ge.s32.totalorder %v1310, %v1467
      %vm1691 = vcmp.ge.s32.totalorder %v1311, %v1467
      %vm1692 = vcmp.ge.s32.totalorder %v1310, %v1469
      %vm1693 = vcmp.ge.s32.totalorder %v1311, %v1469
      %vm1694 = vcmp.ge.s32.totalorder %v1310, %v1471
      %vm1695 = vcmp.ge.s32.totalorder %v1311, %v1471
      %vm1696 = vcmp.ge.s32.totalorder %v1310, %v1473
      %vm1697 = vcmp.ge.s32.totalorder %v1311, %v1473
      %v1698 = vadd.s32 %v1411, 2
      %v1699 = vadd.s32 %v1413, 2
      %v1700 = vadd.s32 %v1415, 2
      %v1701 = vadd.s32 %v1417, 2
      %v1702 = vadd.s32 %v1419, 2
      %v1703 = vadd.s32 %v1421, 2
      %v1704 = vadd.s32 %v1423, 2
      %v1705 = vadd.s32 %v1425, 2
      %v1706 = vadd.s32 %v1427, 2
      %v1707 = vadd.s32 %v1429, 2
      %v1708 = vadd.s32 %v1431, 2
      %v1709 = vadd.s32 %v1433, 2
      %v1710 = vadd.s32 %v1435, 2
      %v1711 = vadd.s32 %v1437, 2
      %v1712 = vadd.s32 %v1439, 2
      %v1713 = vadd.s32 %v1441, 2
      %v1714 = vadd.s32 %v1443, 2
      %v1715 = vadd.s32 %v1445, 2
      %v1716 = vadd.s32 %v1447, 2
      %v1717 = vadd.s32 %v1449, 2
      %v1718 = vadd.s32 %v1451, 2
      %v1719 = vadd.s32 %v1453, 2
      %v1720 = vadd.s32 %v1455, 2
      %v1721 = vadd.s32 %v1457, 2
      %v1722 = vadd.s32 %v1459, 2
      %v1723 = vadd.s32 %v1461, 2
      %v1724 = vadd.s32 %v1463, 2
      %v1725 = vadd.s32 %v1465, 2
      %v1726 = vadd.s32 %v1467, 2
      %v1727 = vadd.s32 %v1469, 2
      %v1728 = vadd.s32 %v1471, 2
      %v1729 = vadd.s32 %v1473, 2
      %vm1730 = vcmp.le.s32.totalorder %v1310, %v1698
      %vm1731 = vcmp.le.s32.totalorder %v1311, %v1698
      %vm1732 = vcmp.le.s32.totalorder %v1310, %v1699
      %vm1733 = vcmp.le.s32.totalorder %v1311, %v1699
      %vm1734 = vcmp.le.s32.totalorder %v1310, %v1700
      %vm1735 = vcmp.le.s32.totalorder %v1311, %v1700
      %vm1736 = vcmp.le.s32.totalorder %v1310, %v1701
      %vm1737 = vcmp.le.s32.totalorder %v1311, %v1701
      %vm1738 = vcmp.le.s32.totalorder %v1310, %v1702
      %vm1739 = vcmp.le.s32.totalorder %v1311, %v1702
      %vm1740 = vcmp.le.s32.totalorder %v1310, %v1703
      %vm1741 = vcmp.le.s32.totalorder %v1311, %v1703
      %vm1742 = vcmp.le.s32.totalorder %v1310, %v1704
      %vm1743 = vcmp.le.s32.totalorder %v1311, %v1704
      %vm1744 = vcmp.le.s32.totalorder %v1310, %v1705
      %vm1745 = vcmp.le.s32.totalorder %v1311, %v1705
      %vm1746 = vcmp.le.s32.totalorder %v1310, %v1706
      %vm1747 = vcmp.le.s32.totalorder %v1311, %v1706
      %vm1748 = vcmp.le.s32.totalorder %v1310, %v1707
      %vm1749 = vcmp.le.s32.totalorder %v1311, %v1707
      %vm1750 = vcmp.le.s32.totalorder %v1310, %v1708
      %vm1751 = vcmp.le.s32.totalorder %v1311, %v1708
      %vm1752 = vcmp.le.s32.totalorder %v1310, %v1709
      %vm1753 = vcmp.le.s32.totalorder %v1311, %v1709
      %vm1754 = vcmp.le.s32.totalorder %v1310, %v1710
      %vm1755 = vcmp.le.s32.totalorder %v1311, %v1710
      %vm1756 = vcmp.le.s32.totalorder %v1310, %v1711
      %vm1757 = vcmp.le.s32.totalorder %v1311, %v1711
      %vm1758 = vcmp.le.s32.totalorder %v1310, %v1712
      %vm1759 = vcmp.le.s32.totalorder %v1311, %v1712
      %vm1760 = vcmp.le.s32.totalorder %v1310, %v1713
      %vm1761 = vcmp.le.s32.totalorder %v1311, %v1713
      %vm1762 = vcmp.le.s32.totalorder %v1310, %v1714
      %vm1763 = vcmp.le.s32.totalorder %v1311, %v1714
      %vm1764 = vcmp.le.s32.totalorder %v1310, %v1715
      %vm1765 = vcmp.le.s32.totalorder %v1311, %v1715
      %vm1766 = vcmp.le.s32.totalorder %v1310, %v1716
      %vm1767 = vcmp.le.s32.totalorder %v1311, %v1716
      %vm1768 = vcmp.le.s32.totalorder %v1310, %v1717
      %vm1769 = vcmp.le.s32.totalorder %v1311, %v1717
      %vm1770 = vcmp.le.s32.totalorder %v1310, %v1718
      %vm1771 = vcmp.le.s32.totalorder %v1311, %v1718
      %vm1772 = vcmp.le.s32.totalorder %v1310, %v1719
      %vm1773 = vcmp.le.s32.totalorder %v1311, %v1719
      %vm1774 = vcmp.le.s32.totalorder %v1310, %v1720
      %vm1775 = vcmp.le.s32.totalorder %v1311, %v1720
      %vm1776 = vcmp.le.s32.totalorder %v1310, %v1721
      %vm1777 = vcmp.le.s32.totalorder %v1311, %v1721
      %vm1778 = vcmp.le.s32.totalorder %v1310, %v1722
      %vm1779 = vcmp.le.s32.totalorder %v1311, %v1722
      %vm1780 = vcmp.le.s32.totalorder %v1310, %v1723
      %vm1781 = vcmp.le.s32.totalorder %v1311, %v1723
      %vm1782 = vcmp.le.s32.totalorder %v1310, %v1724
      %vm1783 = vcmp.le.s32.totalorder %v1311, %v1724
      %vm1784 = vcmp.le.s32.totalorder %v1310, %v1725
      %vm1785 = vcmp.le.s32.totalorder %v1311, %v1725
      %vm1786 = vcmp.le.s32.totalorder %v1310, %v1726
      %vm1787 = vcmp.le.s32.totalorder %v1311, %v1726
      %vm1788 = vcmp.le.s32.totalorder %v1310, %v1727
      %vm1789 = vcmp.le.s32.totalorder %v1311, %v1727
      %vm1790 = vcmp.le.s32.totalorder %v1310, %v1728
      %vm1791 = vcmp.le.s32.totalorder %v1311, %v1728
      %vm1792 = vcmp.le.s32.totalorder %v1310, %v1729
      %vm1793 = vcmp.le.s32.totalorder %v1311, %v1729
      %vm1794 = vmand %vm1634, %vm1730
      %vm1795 = vmand %vm1635, %vm1731
      %vm1796 = vmand %vm1636, %vm1732
      %vm1797 = vmand %vm1637, %vm1733
      %vm1798 = vmand %vm1638, %vm1734
      %vm1799 = vmand %vm1639, %vm1735
      %vm1800 = vmand %vm1640, %vm1736
      %vm1801 = vmand %vm1641, %vm1737
      %vm1802 = vmand %vm1642, %vm1738
      %vm1803 = vmand %vm1643, %vm1739
      %vm1804 = vmand %vm1644, %vm1740
      %vm1805 = vmand %vm1645, %vm1741
      %vm1806 = vmand %vm1646, %vm1742
      %vm1807 = vmand %vm1647, %vm1743
      %vm1808 = vmand %vm1648, %vm1744
      %vm1809 = vmand %vm1649, %vm1745
      %vm1810 = vmand %vm1650, %vm1746
      %vm1811 = vmand %vm1651, %vm1747
      %vm1812 = vmand %vm1652, %vm1748
      %vm1813 = vmand %vm1653, %vm1749
      %vm1814 = vmand %vm1654, %vm1750
      %vm1815 = vmand %vm1655, %vm1751
      %vm1816 = vmand %vm1656, %vm1752
      %vm1817 = vmand %vm1657, %vm1753
      %vm1818 = vmand %vm1658, %vm1754
      %vm1819 = vmand %vm1659, %vm1755
      %vm1820 = vmand %vm1660, %vm1756
      %vm1821 = vmand %vm1661, %vm1757
      %vm1822 = vmand %vm1662, %vm1758
      %vm1823 = vmand %vm1663, %vm1759
      %vm1824 = vmand %vm1664, %vm1760
      %vm1825 = vmand %vm1665, %vm1761
      %vm1826 = vmand %vm1666, %vm1762
      %vm1827 = vmand %vm1667, %vm1763
      %vm1828 = vmand %vm1668, %vm1764
      %vm1829 = vmand %vm1669, %vm1765
      %vm1830 = vmand %vm1670, %vm1766
      %vm1831 = vmand %vm1671, %vm1767
      %vm1832 = vmand %vm1672, %vm1768
      %vm1833 = vmand %vm1673, %vm1769
      %vm1834 = vmand %vm1674, %vm1770
      %vm1835 = vmand %vm1675, %vm1771
      %vm1836 = vmand %vm1676, %vm1772
      %vm1837 = vmand %vm1677, %vm1773
      %vm1838 = vmand %vm1678, %vm1774
      %vm1839 = vmand %vm1679, %vm1775
      %vm1840 = vmand %vm1680, %vm1776
      %vm1841 = vmand %vm1681, %vm1777
      %vm1842 = vmand %vm1682, %vm1778
      %vm1843 = vmand %vm1683, %vm1779
      %vm1844 = vmand %vm1684, %vm1780
      %vm1845 = vmand %vm1685, %vm1781
      %vm1846 = vmand %vm1686, %vm1782
      %vm1847 = vmand %vm1687, %vm1783
      %vm1848 = vmand %vm1688, %vm1784
      %vm1849 = vmand %vm1689, %vm1785
      %vm1850 = vmand %vm1690, %vm1786
      %vm1851 = vmand %vm1691, %vm1787
      %vm1852 = vmand %vm1692, %vm1788
      %vm1853 = vmand %vm1693, %vm1789
      %vm1854 = vmand %vm1694, %vm1790
      %vm1855 = vmand %vm1695, %vm1791
      %vm1856 = vmand %vm1696, %vm1792
      %vm1857 = vmand %vm1697, %vm1793
      %vm1858 = vcmp.ge.s32.totalorder %v1312, %v1571
      %vm1859 = vcmp.ge.s32.totalorder %v1313, %v1571
      %vm1860 = vcmp.ge.s32.totalorder %v1312, %v1573
      %vm1861 = vcmp.ge.s32.totalorder %v1313, %v1573
      %vm1862 = vcmp.ge.s32.totalorder %v1312, %v1575
      %vm1863 = vcmp.ge.s32.totalorder %v1313, %v1575
      %vm1864 = vcmp.ge.s32.totalorder %v1312, %v1577
      %vm1865 = vcmp.ge.s32.totalorder %v1313, %v1577
      %vm1866 = vcmp.ge.s32.totalorder %v1312, %v1579
      %vm1867 = vcmp.ge.s32.totalorder %v1313, %v1579
      %vm1868 = vcmp.ge.s32.totalorder %v1312, %v1581
      %vm1869 = vcmp.ge.s32.totalorder %v1313, %v1581
      %vm1870 = vcmp.ge.s32.totalorder %v1312, %v1583
      %vm1871 = vcmp.ge.s32.totalorder %v1313, %v1583
      %vm1872 = vcmp.ge.s32.totalorder %v1312, %v1585
      %vm1873 = vcmp.ge.s32.totalorder %v1313, %v1585
      %vm1874 = vcmp.ge.s32.totalorder %v1312, %v1587
      %vm1875 = vcmp.ge.s32.totalorder %v1313, %v1587
      %vm1876 = vcmp.ge.s32.totalorder %v1312, %v1589
      %vm1877 = vcmp.ge.s32.totalorder %v1313, %v1589
      %vm1878 = vcmp.ge.s32.totalorder %v1312, %v1591
      %vm1879 = vcmp.ge.s32.totalorder %v1313, %v1591
      %vm1880 = vcmp.ge.s32.totalorder %v1312, %v1593
      %vm1881 = vcmp.ge.s32.totalorder %v1313, %v1593
      %vm1882 = vcmp.ge.s32.totalorder %v1312, %v1595
      %vm1883 = vcmp.ge.s32.totalorder %v1313, %v1595
      %vm1884 = vcmp.ge.s32.totalorder %v1312, %v1597
      %vm1885 = vcmp.ge.s32.totalorder %v1313, %v1597
      %vm1886 = vcmp.ge.s32.totalorder %v1312, %v1599
      %vm1887 = vcmp.ge.s32.totalorder %v1313, %v1599
      %vm1888 = vcmp.ge.s32.totalorder %v1312, %v1601
      %vm1889 = vcmp.ge.s32.totalorder %v1313, %v1601
      %vm1890 = vcmp.ge.s32.totalorder %v1312, %v1603
      %vm1891 = vcmp.ge.s32.totalorder %v1313, %v1603
      %vm1892 = vcmp.ge.s32.totalorder %v1312, %v1605
      %vm1893 = vcmp.ge.s32.totalorder %v1313, %v1605
      %vm1894 = vcmp.ge.s32.totalorder %v1312, %v1607
      %vm1895 = vcmp.ge.s32.totalorder %v1313, %v1607
      %vm1896 = vcmp.ge.s32.totalorder %v1312, %v1609
      %vm1897 = vcmp.ge.s32.totalorder %v1313, %v1609
      %vm1898 = vcmp.ge.s32.totalorder %v1312, %v1611
      %vm1899 = vcmp.ge.s32.totalorder %v1313, %v1611
      %vm1900 = vcmp.ge.s32.totalorder %v1312, %v1613
      %vm1901 = vcmp.ge.s32.totalorder %v1313, %v1613
      %vm1902 = vcmp.ge.s32.totalorder %v1312, %v1615
      %vm1903 = vcmp.ge.s32.totalorder %v1313, %v1615
      %vm1904 = vcmp.ge.s32.totalorder %v1312, %v1617
      %vm1905 = vcmp.ge.s32.totalorder %v1313, %v1617
      %vm1906 = vcmp.ge.s32.totalorder %v1312, %v1619
      %vm1907 = vcmp.ge.s32.totalorder %v1313, %v1619
      %vm1908 = vcmp.ge.s32.totalorder %v1312, %v1621
      %vm1909 = vcmp.ge.s32.totalorder %v1313, %v1621
      %vm1910 = vcmp.ge.s32.totalorder %v1312, %v1623
      %vm1911 = vcmp.ge.s32.totalorder %v1313, %v1623
      %vm1912 = vcmp.ge.s32.totalorder %v1312, %v1625
      %vm1913 = vcmp.ge.s32.totalorder %v1313, %v1625
      %vm1914 = vcmp.ge.s32.totalorder %v1312, %v1627
      %vm1915 = vcmp.ge.s32.totalorder %v1313, %v1627
      %vm1916 = vcmp.ge.s32.totalorder %v1312, %v1629
      %vm1917 = vcmp.ge.s32.totalorder %v1313, %v1629
      %vm1918 = vcmp.ge.s32.totalorder %v1312, %v1631
      %vm1919 = vcmp.ge.s32.totalorder %v1313, %v1631
      %vm1920 = vcmp.ge.s32.totalorder %v1312, %v1633
      %vm1921 = vcmp.ge.s32.totalorder %v1313, %v1633
      %v1922 = vadd.s32 %v1571, 2
      %v1923 = vadd.s32 %v1573, 2
      %v1924 = vadd.s32 %v1575, 2
      %v1925 = vadd.s32 %v1577, 2
      %v1926 = vadd.s32 %v1579, 2
      %v1927 = vadd.s32 %v1581, 2
      %v1928 = vadd.s32 %v1583, 2
      %v1929 = vadd.s32 %v1585, 2
      %v1930 = vadd.s32 %v1587, 2
      %v1931 = vadd.s32 %v1589, 2
      %v1932 = vadd.s32 %v1591, 2
      %v1933 = vadd.s32 %v1593, 2
      %v1934 = vadd.s32 %v1595, 2
      %v1935 = vadd.s32 %v1597, 2
      %v1936 = vadd.s32 %v1599, 2
      %v1937 = vadd.s32 %v1601, 2
      %v1938 = vadd.s32 %v1603, 2
      %v1939 = vadd.s32 %v1605, 2
      %v1940 = vadd.s32 %v1607, 2
      %v1941 = vadd.s32 %v1609, 2
      %v1942 = vadd.s32 %v1611, 2
      %v1943 = vadd.s32 %v1613, 2
      %v1944 = vadd.s32 %v1615, 2
      %v1945 = vadd.s32 %v1617, 2
      %v1946 = vadd.s32 %v1619, 2
      %v1947 = vadd.s32 %v1621, 2
      %v1948 = vadd.s32 %v1623, 2
      %v1949 = vadd.s32 %v1625, 2
      %v1950 = vadd.s32 %v1627, 2
      %v1951 = vadd.s32 %v1629, 2
      %v1952 = vadd.s32 %v1631, 2
      %v1953 = vadd.s32 %v1633, 2
      %vm1954 = vcmp.le.s32.totalorder %v1312, %v1922
      %vm1955 = vcmp.le.s32.totalorder %v1313, %v1922
      %vm1956 = vcmp.le.s32.totalorder %v1312, %v1923
      %vm1957 = vcmp.le.s32.totalorder %v1313, %v1923
      %vm1958 = vcmp.le.s32.totalorder %v1312, %v1924
      %vm1959 = vcmp.le.s32.totalorder %v1313, %v1924
      %vm1960 = vcmp.le.s32.totalorder %v1312, %v1925
      %vm1961 = vcmp.le.s32.totalorder %v1313, %v1925
      %vm1962 = vcmp.le.s32.totalorder %v1312, %v1926
      %vm1963 = vcmp.le.s32.totalorder %v1313, %v1926
      %vm1964 = vcmp.le.s32.totalorder %v1312, %v1927
      %vm1965 = vcmp.le.s32.totalorder %v1313, %v1927
      %vm1966 = vcmp.le.s32.totalorder %v1312, %v1928
      %vm1967 = vcmp.le.s32.totalorder %v1313, %v1928
      %vm1968 = vcmp.le.s32.totalorder %v1312, %v1929
      %vm1969 = vcmp.le.s32.totalorder %v1313, %v1929
      %vm1970 = vcmp.le.s32.totalorder %v1312, %v1930
      %vm1971 = vcmp.le.s32.totalorder %v1313, %v1930
      %vm1972 = vcmp.le.s32.totalorder %v1312, %v1931
      %vm1973 = vcmp.le.s32.totalorder %v1313, %v1931
      %vm1974 = vcmp.le.s32.totalorder %v1312, %v1932
      %vm1975 = vcmp.le.s32.totalorder %v1313, %v1932
      %vm1976 = vcmp.le.s32.totalorder %v1312, %v1933
      %vm1977 = vcmp.le.s32.totalorder %v1313, %v1933
      %vm1978 = vcmp.le.s32.totalorder %v1312, %v1934
      %vm1979 = vcmp.le.s32.totalorder %v1313, %v1934
      %vm1980 = vcmp.le.s32.totalorder %v1312, %v1935
      %vm1981 = vcmp.le.s32.totalorder %v1313, %v1935
      %vm1982 = vcmp.le.s32.totalorder %v1312, %v1936
      %vm1983 = vcmp.le.s32.totalorder %v1313, %v1936
      %vm1984 = vcmp.le.s32.totalorder %v1312, %v1937
      %vm1985 = vcmp.le.s32.totalorder %v1313, %v1937
      %vm1986 = vcmp.le.s32.totalorder %v1312, %v1938
      %vm1987 = vcmp.le.s32.totalorder %v1313, %v1938
      %vm1988 = vcmp.le.s32.totalorder %v1312, %v1939
      %vm1989 = vcmp.le.s32.totalorder %v1313, %v1939
      %vm1990 = vcmp.le.s32.totalorder %v1312, %v1940
      %vm1991 = vcmp.le.s32.totalorder %v1313, %v1940
      %vm1992 = vcmp.le.s32.totalorder %v1312, %v1941
      %vm1993 = vcmp.le.s32.totalorder %v1313, %v1941
      %vm1994 = vcmp.le.s32.totalorder %v1312, %v1942
      %vm1995 = vcmp.le.s32.totalorder %v1313, %v1942
      %vm1996 = vcmp.le.s32.totalorder %v1312, %v1943
      %vm1997 = vcmp.le.s32.totalorder %v1313, %v1943
      %vm1998 = vcmp.le.s32.totalorder %v1312, %v1944
      %vm1999 = vcmp.le.s32.totalorder %v1313, %v1944
      %vm2000 = vcmp.le.s32.totalorder %v1312, %v1945
      %vm2001 = vcmp.le.s32.totalorder %v1313, %v1945
      %vm2002 = vcmp.le.s32.totalorder %v1312, %v1946
      %vm2003 = vcmp.le.s32.totalorder %v1313, %v1946
      %vm2004 = vcmp.le.s32.totalorder %v1312, %v1947
      %vm2005 = vcmp.le.s32.totalorder %v1313, %v1947
      %vm2006 = vcmp.le.s32.totalorder %v1312, %v1948
      %vm2007 = vcmp.le.s32.totalorder %v1313, %v1948
      %vm2008 = vcmp.le.s32.totalorder %v1312, %v1949
      %vm2009 = vcmp.le.s32.totalorder %v1313, %v1949
      %vm2010 = vcmp.le.s32.totalorder %v1312, %v1950
      %vm2011 = vcmp.le.s32.totalorder %v1313, %v1950
      %vm2012 = vcmp.le.s32.totalorder %v1312, %v1951
      %vm2013 = vcmp.le.s32.totalorder %v1313, %v1951
      %vm2014 = vcmp.le.s32.totalorder %v1312, %v1952
      %vm2015 = vcmp.le.s32.totalorder %v1313, %v1952
      %vm2016 = vcmp.le.s32.totalorder %v1312, %v1953
      %vm2017 = vcmp.le.s32.totalorder %v1313, %v1953
      %vm2018 = vmand %vm1858, %vm1954
      %vm2019 = vmand %vm1859, %vm1955
      %vm2020 = vmand %vm1860, %vm1956
      %vm2021 = vmand %vm1861, %vm1957
      %vm2022 = vmand %vm1862, %vm1958
      %vm2023 = vmand %vm1863, %vm1959
      %vm2024 = vmand %vm1864, %vm1960
      %vm2025 = vmand %vm1865, %vm1961
      %vm2026 = vmand %vm1866, %vm1962
      %vm2027 = vmand %vm1867, %vm1963
      %vm2028 = vmand %vm1868, %vm1964
      %vm2029 = vmand %vm1869, %vm1965
      %vm2030 = vmand %vm1870, %vm1966
      %vm2031 = vmand %vm1871, %vm1967
      %vm2032 = vmand %vm1872, %vm1968
      %vm2033 = vmand %vm1873, %vm1969
      %vm2034 = vmand %vm1874, %vm1970
      %vm2035 = vmand %vm1875, %vm1971
      %vm2036 = vmand %vm1876, %vm1972
      %vm2037 = vmand %vm1877, %vm1973
      %vm2038 = vmand %vm1878, %vm1974
      %vm2039 = vmand %vm1879, %vm1975
      %vm2040 = vmand %vm1880, %vm1976
      %vm2041 = vmand %vm1881, %vm1977
      %vm2042 = vmand %vm1882, %vm1978
      %vm2043 = vmand %vm1883, %vm1979
      %vm2044 = vmand %vm1884, %vm1980
      %vm2045 = vmand %vm1885, %vm1981
      %vm2046 = vmand %vm1886, %vm1982
      %vm2047 = vmand %vm1887, %vm1983
      %vm2048 = vmand %vm1888, %vm1984
      %vm2049 = vmand %vm1889, %vm1985
      %vm2050 = vmand %vm1890, %vm1986
      %vm2051 = vmand %vm1891, %vm1987
      %vm2052 = vmand %vm1892, %vm1988
      %vm2053 = vmand %vm1893, %vm1989
      %vm2054 = vmand %vm1894, %vm1990
      %vm2055 = vmand %vm1895, %vm1991
      %vm2056 = vmand %vm1896, %vm1992
      %vm2057 = vmand %vm1897, %vm1993
      %vm2058 = vmand %vm1898, %vm1994
      %vm2059 = vmand %vm1899, %vm1995
      %vm2060 = vmand %vm1900, %vm1996
      %vm2061 = vmand %vm1901, %vm1997
      %vm2062 = vmand %vm1902, %vm1998
      %vm2063 = vmand %vm1903, %vm1999
      %vm2064 = vmand %vm1904, %vm2000
      %vm2065 = vmand %vm1905, %vm2001
      %vm2066 = vmand %vm1906, %vm2002
      %vm2067 = vmand %vm1907, %vm2003
      %vm2068 = vmand %vm1908, %vm2004
      %vm2069 = vmand %vm1909, %vm2005
      %vm2070 = vmand %vm1910, %vm2006
      %vm2071 = vmand %vm1911, %vm2007
      %vm2072 = vmand %vm1912, %vm2008
      %vm2073 = vmand %vm1913, %vm2009
      %vm2074 = vmand %vm1914, %vm2010
      %vm2075 = vmand %vm1915, %vm2011
      %vm2076 = vmand %vm1916, %vm2012
      %vm2077 = vmand %vm1917, %vm2013
      %vm2078 = vmand %vm1918, %vm2014
      %vm2079 = vmand %vm1919, %vm2015
      %vm2080 = vmand %vm1920, %vm2016
      %vm2081 = vmand %vm1921, %vm2017
      %vm2082 = vmand %vm1794, %vm2018
      %vm2083 = vmand %vm1795, %vm2019
      %vm2084 = vmand %vm1796, %vm2020
      %vm2085 = vmand %vm1797, %vm2021
      %vm2086 = vmand %vm1798, %vm2022
      %vm2087 = vmand %vm1799, %vm2023
      %vm2088 = vmand %vm1800, %vm2024
      %vm2089 = vmand %vm1801, %vm2025
      %vm2090 = vmand %vm1802, %vm2026
      %vm2091 = vmand %vm1803, %vm2027
      %vm2092 = vmand %vm1804, %vm2028
      %vm2093 = vmand %vm1805, %vm2029
      %vm2094 = vmand %vm1806, %vm2030
      %vm2095 = vmand %vm1807, %vm2031
      %vm2096 = vmand %vm1808, %vm2032
      %vm2097 = vmand %vm1809, %vm2033
      %vm2098 = vmand %vm1810, %vm2034
      %vm2099 = vmand %vm1811, %vm2035
      %vm2100 = vmand %vm1812, %vm2036
      %vm2101 = vmand %vm1813, %vm2037
      %vm2102 = vmand %vm1814, %vm2038
      %vm2103 = vmand %vm1815, %vm2039
      %vm2104 = vmand %vm1816, %vm2040
      %vm2105 = vmand %vm1817, %vm2041
      %vm2106 = vmand %vm1818, %vm2042
      %vm2107 = vmand %vm1819, %vm2043
      %vm2108 = vmand %vm1820, %vm2044
      %vm2109 = vmand %vm1821, %vm2045
      %vm2110 = vmand %vm1822, %vm2046
      %vm2111 = vmand %vm1823, %vm2047
      %vm2112 = vmand %vm1824, %vm2048
      %vm2113 = vmand %vm1825, %vm2049
      %vm2114 = vmand %vm1826, %vm2050
      %vm2115 = vmand %vm1827, %vm2051
      %vm2116 = vmand %vm1828, %vm2052
      %vm2117 = vmand %vm1829, %vm2053
      %vm2118 = vmand %vm1830, %vm2054
      %vm2119 = vmand %vm1831, %vm2055
      %vm2120 = vmand %vm1832, %vm2056
      %vm2121 = vmand %vm1833, %vm2057
      %vm2122 = vmand %vm1834, %vm2058
      %vm2123 = vmand %vm1835, %vm2059
      %vm2124 = vmand %vm1836, %vm2060
      %vm2125 = vmand %vm1837, %vm2061
      %vm2126 = vmand %vm1838, %vm2062
      %vm2127 = vmand %vm1839, %vm2063
      %vm2128 = vmand %vm1840, %vm2064
      %vm2129 = vmand %vm1841, %vm2065
      %vm2130 = vmand %vm1842, %vm2066
      %vm2131 = vmand %vm1843, %vm2067
      %vm2132 = vmand %vm1844, %vm2068
      %vm2133 = vmand %vm1845, %vm2069
      %vm2134 = vmand %vm1846, %vm2070
      %vm2135 = vmand %vm1847, %vm2071
      %vm2136 = vmand %vm1848, %vm2072
      %vm2137 = vmand %vm1849, %vm2073
      %vm2138 = vmand %vm1850, %vm2074
      %vm2139 = vmand %vm1851, %vm2075
      %vm2140 = vmand %vm1852, %vm2076
      %vm2141 = vmand %vm1853, %vm2077
      %vm2142 = vmand %vm1854, %vm2078
      %vm2143 = vmand %vm1855, %vm2079
      %vm2144 = vmand %vm1856, %vm2080
      %vm2145 = vmand %vm1857, %vm2081
      %v2146 = vsel %vm2082, %v966, -1e+30
      %v2147 = vsel %vm2083, %v1079, -1e+30
      %v2148 = vsel %vm2084, %v969, -1e+30
      %v2149 = vsel %vm2085, %v1082, -1e+30
      %v2150 = vsel %vm2086, %v972, -1e+30
      %v2151 = vsel %vm2087, %v1085, -1e+30
      %v2152 = vsel %vm2088, %v975, -1e+30
      %v2153 = vsel %vm2089, %v1088, -1e+30
      %v2154 = vsel %vm2090, %v978, -1e+30
      %v2155 = vsel %vm2091, %v1091, -1e+30
      %v2156 = vsel %vm2092, %v981, -1e+30
      %v2157 = vsel %vm2093, %v1094, -1e+30
      %v2158 = vsel %vm2094, %v984, -1e+30
      %v2159 = vsel %vm2095, %v1097, -1e+30
      %v2160 = vsel %vm2096, %v987, -1e+30
      %v2161 = vsel %vm2097, %v1100, -1e+30
      %v2162 = vsel %vm2098, %v990, -1e+30
      %v2163 = vsel %vm2099, %v1103, -1e+30
      %v2164 = vsel %vm2100, %v993, -1e+30
      %v2165 = vsel %vm2101, %v1106, -1e+30
      %v2166 = vsel %vm2102, %v996, -1e+30
      %v2167 = vsel %vm2103, %v1109, -1e+30
      %v2168 = vsel %vm2104, %v999, -1e+30
      %v2169 = vsel %vm2105, %v1112, -1e+30
      %v2170 = vsel %vm2106, %v1002, -1e+30
      %v2171 = vsel %vm2107, %v1115, -1e+30
      %v2172 = vsel %vm2108, %v1005, -1e+30
      %v2173 = vsel %vm2109, %v1118, -1e+30
      %v2174 = vsel %vm2110, %v1008, -1e+30
      %v2175 = vsel %vm2111, %v1121, -1e+30
      %v2176 = vsel %vm2112, %v1011, -1e+30
      %v2177 = vsel %vm2113, %v1124, -1e+30
      %v2178 = vsel %vm2114, %v1014, -1e+30
      %v2179 = vsel %vm2115, %v1127, -1e+30
      %v2180 = vsel %vm2116, %v1017, -1e+30
      %v2181 = vsel %vm2117, %v1130, -1e+30
      %v2182 = vsel %vm2118, %v1020, -1e+30
      %v2183 = vsel %vm2119, %v1133, -1e+30
      %v2184 = vsel %vm2120, %v1023, -1e+30
      %v2185 = vsel %vm2121, %v1136, -1e+30
      %v2186 = vsel %vm2122, %v1026, -1e+30
      %v2187 = vsel %vm2123, %v1139, -1e+30
      %v2188 = vsel %vm2124, %v1029, -1e+30
      %v2189 = vsel %vm2125, %v1142, -1e+30
      %v2190 = vsel %vm2126, %v1032, -1e+30
      %v2191 = vsel %vm2127, %v1145, -1e+30
      %v2192 = vsel %vm2128, %v1035, -1e+30
      %v2193 = vsel %vm2129, %v1148, -1e+30
      %v2194 = vsel %vm2130, %v1038, -1e+30
      %v2195 = vsel %vm2131, %v1151, -1e+30
      %v2196 = vsel %vm2132, %v1041, -1e+30
      %v2197 = vsel %vm2133, %v1154, -1e+30
      %v2198 = vsel %vm2134, %v1044, -1e+30
      %v2199 = vsel %vm2135, %v1157, -1e+30
      %v2200 = vsel %vm2136, %v1047, -1e+30
      %v2201 = vsel %vm2137, %v1160, -1e+30
      %v2202 = vsel %vm2138, %v1050, -1e+30
      %v2203 = vsel %vm2139, %v1163, -1e+30
      %v2204 = vsel %vm2140, %v1053, -1e+30
      %v2205 = vsel %vm2141, %v1166, -1e+30
      %v2206 = vsel %vm2142, %v1056, -1e+30
      %v2207 = vsel %vm2143, %v1169, -1e+30
      %v2208 = vsel %vm2144, %v1059, -1e+30
      %v2209 = vsel %vm2145, %v1172, -1e+30
      %v2210 = vmax.f32 %v2146, %v2147
      %2211 = vmax.xlane.f32.xlu0 %v2210
      %v2212 = vpop.xlane.xlu0 %2211
      %v2213 = vmax.f32 %v2148, %v2149
      %2214 = vmax.xlane.f32.xlu0 %v2213
      %v2215 = vpop.xlane.xlu0 %2214
      %v2216 = vmax.f32 %v2150, %v2151
      %2217 = vmax.xlane.f32.xlu0 %v2216
      %v2218 = vpop.xlane.xlu0 %2217
      %v2219 = vmax.f32 %v2152, %v2153
      %2220 = vmax.xlane.f32.xlu0 %v2219
      %v2221 = vpop.xlane.xlu0 %2220
      %v2222 = vmax.f32 %v2154, %v2155
      %2223 = vmax.xlane.f32.xlu0 %v2222
      %v2224 = vpop.xlane.xlu0 %2223
      %v2225 = vmax.f32 %v2156, %v2157
      %2226 = vmax.xlane.f32.xlu0 %v2225
      %v2227 = vpop.xlane.xlu0 %2226
      %v2228 = vmax.f32 %v2158, %v2159
      %2229 = vmax.xlane.f32.xlu0 %v2228
      %v2230 = vpop.xlane.xlu0 %2229
      %v2231 = vmax.f32 %v2160, %v2161
      %2232 = vmax.xlane.f32.xlu0 %v2231
      %v2233 = vpop.xlane.xlu0 %2232
      %v2234 = vmax.f32 %v2162, %v2163
      %2235 = vmax.xlane.f32.xlu0 %v2234
      %v2236 = vpop.xlane.xlu0 %2235
      %v2237 = vmax.f32 %v2164, %v2165
      %2238 = vmax.xlane.f32.xlu0 %v2237
      %v2239 = vpop.xlane.xlu0 %2238
      %v2240 = vmax.f32 %v2166, %v2167
      %2241 = vmax.xlane.f32.xlu0 %v2240
      %v2242 = vpop.xlane.xlu0 %2241
      %v2243 = vmax.f32 %v2168, %v2169
      %2244 = vmax.xlane.f32.xlu0 %v2243
      %v2245 = vpop.xlane.xlu0 %2244
      %v2246 = vmax.f32 %v2170, %v2171
      %2247 = vmax.xlane.f32.xlu0 %v2246
      %v2248 = vpop.xlane.xlu0 %2247
      %v2249 = vmax.f32 %v2172, %v2173
      %2250 = vmax.xlane.f32.xlu0 %v2249
      %v2251 = vpop.xlane.xlu0 %2250
      %v2252 = vmax.f32 %v2174, %v2175
      %2253 = vmax.xlane.f32.xlu0 %v2252
      %v2254 = vpop.xlane.xlu0 %2253
      %v2255 = vmax.f32 %v2176, %v2177
      %2256 = vmax.xlane.f32.xlu0 %v2255
      %v2257 = vpop.xlane.xlu0 %2256
      %v2258 = vmax.f32 %v2178, %v2179
      %2259 = vmax.xlane.f32.xlu0 %v2258
      %v2260 = vpop.xlane.xlu0 %2259
      %v2261 = vmax.f32 %v2180, %v2181
      %2262 = vmax.xlane.f32.xlu0 %v2261
      %v2263 = vpop.xlane.xlu0 %2262
      %v2264 = vmax.f32 %v2182, %v2183
      %2265 = vmax.xlane.f32.xlu0 %v2264
      %v2266 = vpop.xlane.xlu0 %2265
      %v2267 = vmax.f32 %v2184, %v2185
      %2268 = vmax.xlane.f32.xlu0 %v2267
      %v2269 = vpop.xlane.xlu0 %2268
      %v2270 = vmax.f32 %v2186, %v2187
      %2271 = vmax.xlane.f32.xlu0 %v2270
      %v2272 = vpop.xlane.xlu0 %2271
      %v2273 = vmax.f32 %v2188, %v2189
      %2274 = vmax.xlane.f32.xlu0 %v2273
      %v2275 = vpop.xlane.xlu0 %2274
      %v2276 = vmax.f32 %v2190, %v2191
      %2277 = vmax.xlane.f32.xlu0 %v2276
      %v2278 = vpop.xlane.xlu0 %2277
      %v2279 = vmax.f32 %v2192, %v2193
      %2280 = vmax.xlane.f32.xlu0 %v2279
      %v2281 = vpop.xlane.xlu0 %2280
      %v2282 = vmax.f32 %v2194, %v2195
      %2283 = vmax.xlane.f32.xlu0 %v2282
      %v2284 = vpop.xlane.xlu0 %2283
      %v2285 = vmax.f32 %v2196, %v2197
      %2286 = vmax.xlane.f32.xlu0 %v2285
      %v2287 = vpop.xlane.xlu0 %2286
      %v2288 = vmax.f32 %v2198, %v2199
      %2289 = vmax.xlane.f32.xlu0 %v2288
      %v2290 = vpop.xlane.xlu0 %2289
      %v2291 = vmax.f32 %v2200, %v2201
      %2292 = vmax.xlane.f32.xlu0 %v2291
      %v2293 = vpop.xlane.xlu0 %2292
      %v2294 = vmax.f32 %v2202, %v2203
      %2295 = vmax.xlane.f32.xlu0 %v2294
      %v2296 = vpop.xlane.xlu0 %2295
      %v2297 = vmax.f32 %v2204, %v2205
      %2298 = vmax.xlane.f32.xlu0 %v2297
      %v2299 = vpop.xlane.xlu0 %2298
      %v2300 = vmax.f32 %v2206, %v2207
      %2301 = vmax.xlane.f32.xlu0 %v2300
      %v2302 = vpop.xlane.xlu0 %2301
      %v2303 = vmax.f32 %v2208, %v2209
      %2304 = vmax.xlane.f32.xlu0 %v2303
      %v2305 = vpop.xlane.xlu0 %2304
      %v2306 = vsub.f32 %v2146, %v2212
      %v2307 = vsub.f32 %v2147, %v2212
      %v2308 = vsub.f32 %v2148, %v2215
      %v2309 = vsub.f32 %v2149, %v2215
      %v2310 = vsub.f32 %v2150, %v2218
      %v2311 = vsub.f32 %v2151, %v2218
      %v2312 = vsub.f32 %v2152, %v2221
      %v2313 = vsub.f32 %v2153, %v2221
      %v2314 = vsub.f32 %v2154, %v2224
      %v2315 = vsub.f32 %v2155, %v2224
      %v2316 = vsub.f32 %v2156, %v2227
      %v2317 = vsub.f32 %v2157, %v2227
      %v2318 = vsub.f32 %v2158, %v2230
      %v2319 = vsub.f32 %v2159, %v2230
      %v2320 = vsub.f32 %v2160, %v2233
      %v2321 = vsub.f32 %v2161, %v2233
      %v2322 = vsub.f32 %v2162, %v2236
      %v2323 = vsub.f32 %v2163, %v2236
      %v2324 = vsub.f32 %v2164, %v2239
      %v2325 = vsub.f32 %v2165, %v2239
      %v2326 = vsub.f32 %v2166, %v2242
      %v2327 = vsub.f32 %v2167, %v2242
      %v2328 = vsub.f32 %v2168, %v2245
      %v2329 = vsub.f32 %v2169, %v2245
      %v2330 = vsub.f32 %v2170, %v2248
      %v2331 = vsub.f32 %v2171, %v2248
      %v2332 = vsub.f32 %v2172, %v2251
      %v2333 = vsub.f32 %v2173, %v2251
      %v2334 = vsub.f32 %v2174, %v2254
      %v2335 = vsub.f32 %v2175, %v2254
      %v2336 = vsub.f32 %v2176, %v2257
      %v2337 = vsub.f32 %v2177, %v2257
      %v2338 = vsub.f32 %v2178, %v2260
      %v2339 = vsub.f32 %v2179, %v2260
      %v2340 = vsub.f32 %v2180, %v2263
      %v2341 = vsub.f32 %v2181, %v2263
      %v2342 = vsub.f32 %v2182, %v2266
      %v2343 = vsub.f32 %v2183, %v2266
      %v2344 = vsub.f32 %v2184, %v2269
      %v2345 = vsub.f32 %v2185, %v2269
      %v2346 = vsub.f32 %v2186, %v2272
      %v2347 = vsub.f32 %v2187, %v2272
      %v2348 = vsub.f32 %v2188, %v2275
      %v2349 = vsub.f32 %v2189, %v2275
      %v2350 = vsub.f32 %v2190, %v2278
      %v2351 = vsub.f32 %v2191, %v2278
      %v2352 = vsub.f32 %v2192, %v2281
      %v2353 = vsub.f32 %v2193, %v2281
      %v2354 = vsub.f32 %v2194, %v2284
      %v2355 = vsub.f32 %v2195, %v2284
      %v2356 = vsub.f32 %v2196, %v2287
      %v2357 = vsub.f32 %v2197, %v2287
      %v2358 = vsub.f32 %v2198, %v2290
      %v2359 = vsub.f32 %v2199, %v2290
      %v2360 = vsub.f32 %v2200, %v2293
      %v2361 = vsub.f32 %v2201, %v2293
      %v2362 = vsub.f32 %v2202, %v2296
      %v2363 = vsub.f32 %v2203, %v2296
      %v2364 = vsub.f32 %v2204, %v2299
      %v2365 = vsub.f32 %v2205, %v2299
      %v2366 = vsub.f32 %v2206, %v2302
      %v2367 = vsub.f32 %v2207, %v2302
      %v2368 = vsub.f32 %v2208, %v2305
      %v2369 = vsub.f32 %v2209, %v2305
      %v2370 = vmul.f32 %v2306, 1.442695
      %v2371 = vpow.pop %v2370
      %v2372 = vmul.f32 %v2307, 1.442695
      %v2373 = vpow.pop %v2372
      %v2374 = vmul.f32 %v2308, 1.442695
      %v2375 = vpow.pop %v2374
      %v2376 = vmul.f32 %v2309, 1.442695
      %v2377 = vpow.pop %v2376
      %v2378 = vmul.f32 %v2310, 1.442695
      %v2379 = vpow.pop %v2378
      %v2380 = vmul.f32 %v2311, 1.442695
      %v2381 = vpow.pop %v2380
      %v2382 = vmul.f32 %v2312, 1.442695
      %v2383 = vpow.pop %v2382
      %v2384 = vmul.f32 %v2313, 1.442695
      %v2385 = vpow.pop %v2384
      %v2386 = vmul.f32 %v2314, 1.442695
      %v2387 = vpow.pop %v2386
      %v2388 = vmul.f32 %v2315, 1.442695
      %v2389 = vpow.pop %v2388
      %v2390 = vmul.f32 %v2316, 1.442695
      %v2391 = vpow.pop %v2390
      %v2392 = vmul.f32 %v2317, 1.442695
      %v2393 = vpow.pop %v2392
      %v2394 = vmul.f32 %v2318, 1.442695
      %v2395 = vpow.pop %v2394
      %v2396 = vmul.f32 %v2319, 1.442695
      %v2397 = vpow.pop %v2396
      %v2398 = vmul.f32 %v2320, 1.442695
      %v2399 = vpow.pop %v2398
      %v2400 = vmul.f32 %v2321, 1.442695
      %v2401 = vpow.pop %v2400
      %v2402 = vmul.f32 %v2322, 1.442695
      %v2403 = vpow.pop %v2402
      %v2404 = vmul.f32 %v2323, 1.442695
      %v2405 = vpow.pop %v2404
      %v2406 = vmul.f32 %v2324, 1.442695
      %v2407 = vpow.pop %v2406
      %v2408 = vmul.f32 %v2325, 1.442695
      %v2409 = vpow.pop %v2408
      %v2410 = vmul.f32 %v2326, 1.442695
      %v2411 = vpow.pop %v2410
      %v2412 = vmul.f32 %v2327, 1.442695
      %v2413 = vpow.pop %v2412
      %v2414 = vmul.f32 %v2328, 1.442695
      %v2415 = vpow.pop %v2414
      %v2416 = vmul.f32 %v2329, 1.442695
      %v2417 = vpow.pop %v2416
      %v2418 = vmul.f32 %v2330, 1.442695
      %v2419 = vpow.pop %v2418
      %v2420 = vmul.f32 %v2331, 1.442695
      %v2421 = vpow.pop %v2420
      %v2422 = vmul.f32 %v2332, 1.442695
      %v2423 = vpow.pop %v2422
      %v2424 = vmul.f32 %v2333, 1.442695
      %v2425 = vpow.pop %v2424
      %v2426 = vmul.f32 %v2334, 1.442695
      %v2427 = vpow.pop %v2426
      %v2428 = vmul.f32 %v2335, 1.442695
      %v2429 = vpow.pop %v2428
      %v2430 = vmul.f32 %v2336, 1.442695
      %v2431 = vpow.pop %v2430
      %v2432 = vmul.f32 %v2337, 1.442695
      %v2433 = vpow.pop %v2432
      %v2434 = vmul.f32 %v2338, 1.442695
      %v2435 = vpow.pop %v2434
      %v2436 = vmul.f32 %v2339, 1.442695
      %v2437 = vpow.pop %v2436
      %v2438 = vmul.f32 %v2340, 1.442695
      %v2439 = vpow.pop %v2438
      %v2440 = vmul.f32 %v2341, 1.442695
      %v2441 = vpow.pop %v2440
      %v2442 = vmul.f32 %v2342, 1.442695
      %v2443 = vpow.pop %v2442
      %v2444 = vmul.f32 %v2343, 1.442695
      %v2445 = vpow.pop %v2444
      %v2446 = vmul.f32 %v2344, 1.442695
      %v2447 = vpow.pop %v2446
      %v2448 = vmul.f32 %v2345, 1.442695
      %v2449 = vpow.pop %v2448
      %v2450 = vmul.f32 %v2346, 1.442695
      %v2451 = vpow.pop %v2450
      %v2452 = vmul.f32 %v2347, 1.442695
      %v2453 = vpow.pop %v2452
      %v2454 = vmul.f32 %v2348, 1.442695
      %v2455 = vpow.pop %v2454
      %v2456 = vmul.f32 %v2349, 1.442695
      %v2457 = vpow.pop %v2456
      %v2458 = vmul.f32 %v2350, 1.442695
      %v2459 = vpow.pop %v2458
      %v2460 = vmul.f32 %v2351, 1.442695
      %v2461 = vpow.pop %v2460
      %v2462 = vmul.f32 %v2352, 1.442695
      %v2463 = vpow.pop %v2462
      %v2464 = vmul.f32 %v2353, 1.442695
      %v2465 = vpow.pop %v2464
      %v2466 = vmul.f32 %v2354, 1.442695
      %v2467 = vpow.pop %v2466
      %v2468 = vmul.f32 %v2355, 1.442695
      %v2469 = vpow.pop %v2468
      %v2470 = vmul.f32 %v2356, 1.442695
      %v2471 = vpow.pop %v2470
      %v2472 = vmul.f32 %v2357, 1.442695
      %v2473 = vpow.pop %v2472
      %v2474 = vmul.f32 %v2358, 1.442695
      %v2475 = vpow.pop %v2474
      %v2476 = vmul.f32 %v2359, 1.442695
      %v2477 = vpow.pop %v2476
      %v2478 = vmul.f32 %v2360, 1.442695
      %v2479 = vpow.pop %v2478
      %v2480 = vmul.f32 %v2361, 1.442695
      %v2481 = vpow.pop %v2480
      %v2482 = vmul.f32 %v2362, 1.442695
      %v2483 = vpow.pop %v2482
      %v2484 = vmul.f32 %v2363, 1.442695
      %v2485 = vpow.pop %v2484
      %v2486 = vmul.f32 %v2364, 1.442695
      %v2487 = vpow.pop %v2486
      %v2488 = vmul.f32 %v2365, 1.442695
      %v2489 = vpow.pop %v2488
      %v2490 = vmul.f32 %v2366, 1.442695
      %v2491 = vpow.pop %v2490
      %v2492 = vmul.f32 %v2367, 1.442695
      %v2493 = vpow.pop %v2492
      %v2494 = vmul.f32 %v2368, 1.442695
      %v2495 = vpow.pop %v2494
      %v2496 = vmul.f32 %v2369, 1.442695
      %v2497 = vpow.pop %v2496
      %v2498 = vadd.f32 %v2371, %v2373
      %2499 = vadd.xlane.f32.xlu0 %v2498
      %v2500 = vpop.xlane.xlu0 %2499
      %v2501 = vadd.f32 %v2375, %v2377
      %2502 = vadd.xlane.f32.xlu0 %v2501
      %v2503 = vpop.xlane.xlu0 %2502
      %v2504 = vadd.f32 %v2379, %v2381
      %2505 = vadd.xlane.f32.xlu0 %v2504
      %v2506 = vpop.xlane.xlu0 %2505
      %v2507 = vadd.f32 %v2383, %v2385
      %2508 = vadd.xlane.f32.xlu0 %v2507
      %v2509 = vpop.xlane.xlu0 %2508
      %v2510 = vadd.f32 %v2387, %v2389
      %2511 = vadd.xlane.f32.xlu0 %v2510
      %v2512 = vpop.xlane.xlu0 %2511
      %v2513 = vadd.f32 %v2391, %v2393
      %2514 = vadd.xlane.f32.xlu0 %v2513
      %v2515 = vpop.xlane.xlu0 %2514
      %v2516 = vadd.f32 %v2395, %v2397
      %2517 = vadd.xlane.f32.xlu0 %v2516
      %v2518 = vpop.xlane.xlu0 %2517
      %v2519 = vadd.f32 %v2399, %v2401
      %2520 = vadd.xlane.f32.xlu0 %v2519
      %v2521 = vpop.xlane.xlu0 %2520
      %v2522 = vadd.f32 %v2403, %v2405
      %2523 = vadd.xlane.f32.xlu0 %v2522
      %v2524 = vpop.xlane.xlu0 %2523
      %v2525 = vadd.f32 %v2407, %v2409
      %2526 = vadd.xlane.f32.xlu0 %v2525
      %v2527 = vpop.xlane.xlu0 %2526
      %v2528 = vadd.f32 %v2411, %v2413
      %2529 = vadd.xlane.f32.xlu0 %v2528
      %v2530 = vpop.xlane.xlu0 %2529
      %v2531 = vadd.f32 %v2415, %v2417
      %2532 = vadd.xlane.f32.xlu0 %v2531
      %v2533 = vpop.xlane.xlu0 %2532
      %v2534 = vadd.f32 %v2419, %v2421
      %2535 = vadd.xlane.f32.xlu0 %v2534
      %v2536 = vpop.xlane.xlu0 %2535
      %v2537 = vadd.f32 %v2423, %v2425
      %2538 = vadd.xlane.f32.xlu0 %v2537
      %v2539 = vpop.xlane.xlu0 %2538
      %v2540 = vadd.f32 %v2427, %v2429
      %2541 = vadd.xlane.f32.xlu0 %v2540
      %v2542 = vpop.xlane.xlu0 %2541
      %v2543 = vadd.f32 %v2431, %v2433
      %2544 = vadd.xlane.f32.xlu0 %v2543
      %v2545 = vpop.xlane.xlu0 %2544
      %v2546 = vadd.f32 %v2435, %v2437
      %2547 = vadd.xlane.f32.xlu0 %v2546
      %v2548 = vpop.xlane.xlu0 %2547
      %v2549 = vadd.f32 %v2439, %v2441
      %2550 = vadd.xlane.f32.xlu0 %v2549
      %v2551 = vpop.xlane.xlu0 %2550
      %v2552 = vadd.f32 %v2443, %v2445
      %2553 = vadd.xlane.f32.xlu0 %v2552
      %v2554 = vpop.xlane.xlu0 %2553
      %v2555 = vadd.f32 %v2447, %v2449
      %2556 = vadd.xlane.f32.xlu0 %v2555
      %v2557 = vpop.xlane.xlu0 %2556
      %v2558 = vadd.f32 %v2451, %v2453
      %2559 = vadd.xlane.f32.xlu0 %v2558
      %v2560 = vpop.xlane.xlu0 %2559
      %v2561 = vadd.f32 %v2455, %v2457
      %2562 = vadd.xlane.f32.xlu0 %v2561
      %v2563 = vpop.xlane.xlu0 %2562
      %v2564 = vadd.f32 %v2459, %v2461
      %2565 = vadd.xlane.f32.xlu0 %v2564
      %v2566 = vpop.xlane.xlu0 %2565
      %v2567 = vadd.f32 %v2463, %v2465
      %2568 = vadd.xlane.f32.xlu0 %v2567
      %v2569 = vpop.xlane.xlu0 %2568
      %v2570 = vadd.f32 %v2467, %v2469
      %2571 = vadd.xlane.f32.xlu0 %v2570
      %v2572 = vpop.xlane.xlu0 %2571
      %v2573 = vadd.f32 %v2471, %v2473
      %2574 = vadd.xlane.f32.xlu0 %v2573
      %v2575 = vpop.xlane.xlu0 %2574
      %v2576 = vadd.f32 %v2475, %v2477
      %2577 = vadd.xlane.f32.xlu0 %v2576
      %v2578 = vpop.xlane.xlu0 %2577
      %v2579 = vadd.f32 %v2479, %v2481
      %2580 = vadd.xlane.f32.xlu0 %v2579
      %v2581 = vpop.xlane.xlu0 %2580
      %v2582 = vadd.f32 %v2483, %v2485
      %2583 = vadd.xlane.f32.xlu0 %v2582
      %v2584 = vpop.xlane.xlu0 %2583
      %v2585 = vadd.f32 %v2487, %v2489
      %2586 = vadd.xlane.f32.xlu0 %v2585
      %v2587 = vpop.xlane.xlu0 %2586
      %v2588 = vadd.f32 %v2491, %v2493
      %2589 = vadd.xlane.f32.xlu0 %v2588
      %v2590 = vpop.xlane.xlu0 %2589
      %v2591 = vadd.f32 %v2495, %v2497
      %2592 = vadd.xlane.f32.xlu0 %v2591
      %v2593 = vpop.xlane.xlu0 %2592
      %v2594 = vrcp.pop %v2500
      %v2595 = vmul.f32 %v2500, %v2594
      %v2596 = vsub.f32 1.0, %v2595
      %v2597 = vmul.f32 %v2594, %v2596
      %v2598 = vadd.f32 %v2594, %v2597
      %vm2599 = vweird.f32 %v2500
      %vm2600 = vweird.f32 %v2594
      %vm2601 = vmor %vm2599, %vm2600
      %v2602 = vsel %vm2601, %v2594, %v2598
      %v2603 = vand.u32 2147483647, %v2500
      %vm2604 = vcmp.eq.f32.partialorder %v2603, 8.507059e+37
      %v2605 = vand.u32 %v2500, 2147483648
      %v2606 = vor.u32 1.1754944e-38, %v2605
      %v2607 = vsel %vm2604, %v2606, %v2602
      %v2608 = vmul.f32 1.0, %v2607
      %v2609 = vrcp.pop %v2503
      %v2610 = vmul.f32 %v2503, %v2609
      %v2611 = vsub.f32 1.0, %v2610
      %v2612 = vmul.f32 %v2609, %v2611
      %v2613 = vadd.f32 %v2609, %v2612
      %vm2614 = vweird.f32 %v2503
      %vm2615 = vweird.f32 %v2609
      %vm2616 = vmor %vm2614, %vm2615
      %v2617 = vsel %vm2616, %v2609, %v2613
      %v2618 = vand.u32 2147483647, %v2503
      %vm2619 = vcmp.eq.f32.partialorder %v2618, 8.507059e+37
      %v2620 = vand.u32 %v2503, 2147483648
      %v2621 = vor.u32 1.1754944e-38, %v2620
      %v2622 = vsel %vm2619, %v2621, %v2617
      %v2623 = vmul.f32 1.0, %v2622
      %v2624 = vrcp.pop %v2506
      %v2625 = vmul.f32 %v2506, %v2624
      %v2626 = vsub.f32 1.0, %v2625
      %v2627 = vmul.f32 %v2624, %v2626
      %v2628 = vadd.f32 %v2624, %v2627
      %vm2629 = vweird.f32 %v2506
      %vm2630 = vweird.f32 %v2624
      %vm2631 = vmor %vm2629, %vm2630
      %v2632 = vsel %vm2631, %v2624, %v2628
      %v2633 = vand.u32 2147483647, %v2506
      %vm2634 = vcmp.eq.f32.partialorder %v2633, 8.507059e+37
      %v2635 = vand.u32 %v2506, 2147483648
      %v2636 = vor.u32 1.1754944e-38, %v2635
      %v2637 = vsel %vm2634, %v2636, %v2632
      %v2638 = vmul.f32 1.0, %v2637
      %v2639 = vrcp.pop %v2509
      %v2640 = vmul.f32 %v2509, %v2639
      %v2641 = vsub.f32 1.0, %v2640
      %v2642 = vmul.f32 %v2639, %v2641
      %v2643 = vadd.f32 %v2639, %v2642
      %vm2644 = vweird.f32 %v2509
      %vm2645 = vweird.f32 %v2639
      %vm2646 = vmor %vm2644, %vm2645
      %v2647 = vsel %vm2646, %v2639, %v2643
      %v2648 = vand.u32 2147483647, %v2509
      %vm2649 = vcmp.eq.f32.partialorder %v2648, 8.507059e+37
      %v2650 = vand.u32 %v2509, 2147483648
      %v2651 = vor.u32 1.1754944e-38, %v2650
      %v2652 = vsel %vm2649, %v2651, %v2647
      %v2653 = vmul.f32 1.0, %v2652
      %v2654 = vrcp.pop %v2512
      %v2655 = vmul.f32 %v2512, %v2654
      %v2656 = vsub.f32 1.0, %v2655
      %v2657 = vmul.f32 %v2654, %v2656
      %v2658 = vadd.f32 %v2654, %v2657
      %vm2659 = vweird.f32 %v2512
      %vm2660 = vweird.f32 %v2654
      %vm2661 = vmor %vm2659, %vm2660
      %v2662 = vsel %vm2661, %v2654, %v2658
      %v2663 = vand.u32 2147483647, %v2512
      %vm2664 = vcmp.eq.f32.partialorder %v2663, 8.507059e+37
      %v2665 = vand.u32 %v2512, 2147483648
      %v2666 = vor.u32 1.1754944e-38, %v2665
      %v2667 = vsel %vm2664, %v2666, %v2662
      %v2668 = vmul.f32 1.0, %v2667
      %v2669 = vrcp.pop %v2515
      %v2670 = vmul.f32 %v2515, %v2669
      %v2671 = vsub.f32 1.0, %v2670
      %v2672 = vmul.f32 %v2669, %v2671
      %v2673 = vadd.f32 %v2669, %v2672
      %vm2674 = vweird.f32 %v2515
      %vm2675 = vweird.f32 %v2669
      %vm2676 = vmor %vm2674, %vm2675
      %v2677 = vsel %vm2676, %v2669, %v2673
      %v2678 = vand.u32 2147483647, %v2515
      %vm2679 = vcmp.eq.f32.partialorder %v2678, 8.507059e+37
      %v2680 = vand.u32 %v2515, 2147483648
      %v2681 = vor.u32 1.1754944e-38, %v2680
      %v2682 = vsel %vm2679, %v2681, %v2677
      %v2683 = vmul.f32 1.0, %v2682
      %v2684 = vrcp.pop %v2518
      %v2685 = vmul.f32 %v2518, %v2684
      %v2686 = vsub.f32 1.0, %v2685
      %v2687 = vmul.f32 %v2684, %v2686
      %v2688 = vadd.f32 %v2684, %v2687
      %vm2689 = vweird.f32 %v2518
      %vm2690 = vweird.f32 %v2684
      %vm2691 = vmor %vm2689, %vm2690
      %v2692 = vsel %vm2691, %v2684, %v2688
      %v2693 = vand.u32 2147483647, %v2518
      %vm2694 = vcmp.eq.f32.partialorder %v2693, 8.507059e+37
      %v2695 = vand.u32 %v2518, 2147483648
      %v2696 = vor.u32 1.1754944e-38, %v2695
      %v2697 = vsel %vm2694, %v2696, %v2692
      %v2698 = vmul.f32 1.0, %v2697
      %v2699 = vrcp.pop %v2521
      %v2700 = vmul.f32 %v2521, %v2699
      %v2701 = vsub.f32 1.0, %v2700
      %v2702 = vmul.f32 %v2699, %v2701
      %v2703 = vadd.f32 %v2699, %v2702
      %vm2704 = vweird.f32 %v2521
      %vm2705 = vweird.f32 %v2699
      %vm2706 = vmor %vm2704, %vm2705
      %v2707 = vsel %vm2706, %v2699, %v2703
      %v2708 = vand.u32 2147483647, %v2521
      %vm2709 = vcmp.eq.f32.partialorder %v2708, 8.507059e+37
      %v2710 = vand.u32 %v2521, 2147483648
      %v2711 = vor.u32 1.1754944e-38, %v2710
      %v2712 = vsel %vm2709, %v2711, %v2707
      %v2713 = vmul.f32 1.0, %v2712
      %v2714 = vrcp.pop %v2524
      %v2715 = vmul.f32 %v2524, %v2714
      %v2716 = vsub.f32 1.0, %v2715
      %v2717 = vmul.f32 %v2714, %v2716
      %v2718 = vadd.f32 %v2714, %v2717
      %vm2719 = vweird.f32 %v2524
      %vm2720 = vweird.f32 %v2714
      %vm2721 = vmor %vm2719, %vm2720
      %v2722 = vsel %vm2721, %v2714, %v2718
      %v2723 = vand.u32 2147483647, %v2524
      %vm2724 = vcmp.eq.f32.partialorder %v2723, 8.507059e+37
      %v2725 = vand.u32 %v2524, 2147483648
      %v2726 = vor.u32 1.1754944e-38, %v2725
      %v2727 = vsel %vm2724, %v2726, %v2722
      %v2728 = vmul.f32 1.0, %v2727
      %v2729 = vrcp.pop %v2527
      %v2730 = vmul.f32 %v2527, %v2729
      %v2731 = vsub.f32 1.0, %v2730
      %v2732 = vmul.f32 %v2729, %v2731
      %v2733 = vadd.f32 %v2729, %v2732
      %vm2734 = vweird.f32 %v2527
      %vm2735 = vweird.f32 %v2729
      %vm2736 = vmor %vm2734, %vm2735
      %v2737 = vsel %vm2736, %v2729, %v2733
      %v2738 = vand.u32 2147483647, %v2527
      %vm2739 = vcmp.eq.f32.partialorder %v2738, 8.507059e+37
      %v2740 = vand.u32 %v2527, 2147483648
      %v2741 = vor.u32 1.1754944e-38, %v2740
      %v2742 = vsel %vm2739, %v2741, %v2737
      %v2743 = vmul.f32 1.0, %v2742
      %v2744 = vrcp.pop %v2530
      %v2745 = vmul.f32 %v2530, %v2744
      %v2746 = vsub.f32 1.0, %v2745
      %v2747 = vmul.f32 %v2744, %v2746
      %v2748 = vadd.f32 %v2744, %v2747
      %vm2749 = vweird.f32 %v2530
      %vm2750 = vweird.f32 %v2744
      %vm2751 = vmor %vm2749, %vm2750
      %v2752 = vsel %vm2751, %v2744, %v2748
      %v2753 = vand.u32 2147483647, %v2530
      %vm2754 = vcmp.eq.f32.partialorder %v2753, 8.507059e+37
      %v2755 = vand.u32 %v2530, 2147483648
      %v2756 = vor.u32 1.1754944e-38, %v2755
      %v2757 = vsel %vm2754, %v2756, %v2752
      %v2758 = vmul.f32 1.0, %v2757
      %v2759 = vrcp.pop %v2533
      %v2760 = vmul.f32 %v2533, %v2759
      %v2761 = vsub.f32 1.0, %v2760
      %v2762 = vmul.f32 %v2759, %v2761
      %v2763 = vadd.f32 %v2759, %v2762
      %vm2764 = vweird.f32 %v2533
      %vm2765 = vweird.f32 %v2759
      %vm2766 = vmor %vm2764, %vm2765
      %v2767 = vsel %vm2766, %v2759, %v2763
      %v2768 = vand.u32 2147483647, %v2533
      %vm2769 = vcmp.eq.f32.partialorder %v2768, 8.507059e+37
      %v2770 = vand.u32 %v2533, 2147483648
      %v2771 = vor.u32 1.1754944e-38, %v2770
      %v2772 = vsel %vm2769, %v2771, %v2767
      %v2773 = vmul.f32 1.0, %v2772
      %v2774 = vrcp.pop %v2536
      %v2775 = vmul.f32 %v2536, %v2774
      %v2776 = vsub.f32 1.0, %v2775
      %v2777 = vmul.f32 %v2774, %v2776
      %v2778 = vadd.f32 %v2774, %v2777
      %vm2779 = vweird.f32 %v2536
      %vm2780 = vweird.f32 %v2774
      %vm2781 = vmor %vm2779, %vm2780
      %v2782 = vsel %vm2781, %v2774, %v2778
      %v2783 = vand.u32 2147483647, %v2536
      %vm2784 = vcmp.eq.f32.partialorder %v2783, 8.507059e+37
      %v2785 = vand.u32 %v2536, 2147483648
      %v2786 = vor.u32 1.1754944e-38, %v2785
      %v2787 = vsel %vm2784, %v2786, %v2782
      %v2788 = vmul.f32 1.0, %v2787
      %v2789 = vrcp.pop %v2539
      %v2790 = vmul.f32 %v2539, %v2789
      %v2791 = vsub.f32 1.0, %v2790
      %v2792 = vmul.f32 %v2789, %v2791
      %v2793 = vadd.f32 %v2789, %v2792
      %vm2794 = vweird.f32 %v2539
      %vm2795 = vweird.f32 %v2789
      %vm2796 = vmor %vm2794, %vm2795
      %v2797 = vsel %vm2796, %v2789, %v2793
      %v2798 = vand.u32 2147483647, %v2539
      %vm2799 = vcmp.eq.f32.partialorder %v2798, 8.507059e+37
      %v2800 = vand.u32 %v2539, 2147483648
      %v2801 = vor.u32 1.1754944e-38, %v2800
      %v2802 = vsel %vm2799, %v2801, %v2797
      %v2803 = vmul.f32 1.0, %v2802
      %v2804 = vrcp.pop %v2542
      %v2805 = vmul.f32 %v2542, %v2804
      %v2806 = vsub.f32 1.0, %v2805
      %v2807 = vmul.f32 %v2804, %v2806
      %v2808 = vadd.f32 %v2804, %v2807
      %vm2809 = vweird.f32 %v2542
      %vm2810 = vweird.f32 %v2804
      %vm2811 = vmor %vm2809, %vm2810
      %v2812 = vsel %vm2811, %v2804, %v2808
      %v2813 = vand.u32 2147483647, %v2542
      %vm2814 = vcmp.eq.f32.partialorder %v2813, 8.507059e+37
      %v2815 = vand.u32 %v2542, 2147483648
      %v2816 = vor.u32 1.1754944e-38, %v2815
      %v2817 = vsel %vm2814, %v2816, %v2812
      %v2818 = vmul.f32 1.0, %v2817
      %v2819 = vrcp.pop %v2545
      %v2820 = vmul.f32 %v2545, %v2819
      %v2821 = vsub.f32 1.0, %v2820
      %v2822 = vmul.f32 %v2819, %v2821
      %v2823 = vadd.f32 %v2819, %v2822
      %vm2824 = vweird.f32 %v2545
      %vm2825 = vweird.f32 %v2819
      %vm2826 = vmor %vm2824, %vm2825
      %v2827 = vsel %vm2826, %v2819, %v2823
      %v2828 = vand.u32 2147483647, %v2545
      %vm2829 = vcmp.eq.f32.partialorder %v2828, 8.507059e+37
      %v2830 = vand.u32 %v2545, 2147483648
      %v2831 = vor.u32 1.1754944e-38, %v2830
      %v2832 = vsel %vm2829, %v2831, %v2827
      %v2833 = vmul.f32 1.0, %v2832
      %v2834 = vrcp.pop %v2548
      %v2835 = vmul.f32 %v2548, %v2834
      %v2836 = vsub.f32 1.0, %v2835
      %v2837 = vmul.f32 %v2834, %v2836
      %v2838 = vadd.f32 %v2834, %v2837
      %vm2839 = vweird.f32 %v2548
      %vm2840 = vweird.f32 %v2834
      %vm2841 = vmor %vm2839, %vm2840
      %v2842 = vsel %vm2841, %v2834, %v2838
      %v2843 = vand.u32 2147483647, %v2548
      %vm2844 = vcmp.eq.f32.partialorder %v2843, 8.507059e+37
      %v2845 = vand.u32 %v2548, 2147483648
      %v2846 = vor.u32 1.1754944e-38, %v2845
      %v2847 = vsel %vm2844, %v2846, %v2842
      %v2848 = vmul.f32 1.0, %v2847
      %v2849 = vrcp.pop %v2551
      %v2850 = vmul.f32 %v2551, %v2849
      %v2851 = vsub.f32 1.0, %v2850
      %v2852 = vmul.f32 %v2849, %v2851
      %v2853 = vadd.f32 %v2849, %v2852
      %vm2854 = vweird.f32 %v2551
      %vm2855 = vweird.f32 %v2849
      %vm2856 = vmor %vm2854, %vm2855
      %v2857 = vsel %vm2856, %v2849, %v2853
      %v2858 = vand.u32 2147483647, %v2551
      %vm2859 = vcmp.eq.f32.partialorder %v2858, 8.507059e+37
      %v2860 = vand.u32 %v2551, 2147483648
      %v2861 = vor.u32 1.1754944e-38, %v2860
      %v2862 = vsel %vm2859, %v2861, %v2857
      %v2863 = vmul.f32 1.0, %v2862
      %v2864 = vrcp.pop %v2554
      %v2865 = vmul.f32 %v2554, %v2864
      %v2866 = vsub.f32 1.0, %v2865
      %v2867 = vmul.f32 %v2864, %v2866
      %v2868 = vadd.f32 %v2864, %v2867
      %vm2869 = vweird.f32 %v2554
      %vm2870 = vweird.f32 %v2864
      %vm2871 = vmor %vm2869, %vm2870
      %v2872 = vsel %vm2871, %v2864, %v2868
      %v2873 = vand.u32 2147483647, %v2554
      %vm2874 = vcmp.eq.f32.partialorder %v2873, 8.507059e+37
      %v2875 = vand.u32 %v2554, 2147483648
      %v2876 = vor.u32 1.1754944e-38, %v2875
      %v2877 = vsel %vm2874, %v2876, %v2872
      %v2878 = vmul.f32 1.0, %v2877
      %v2879 = vrcp.pop %v2557
      %v2880 = vmul.f32 %v2557, %v2879
      %v2881 = vsub.f32 1.0, %v2880
      %v2882 = vmul.f32 %v2879, %v2881
      %v2883 = vadd.f32 %v2879, %v2882
      %vm2884 = vweird.f32 %v2557
      %vm2885 = vweird.f32 %v2879
      %vm2886 = vmor %vm2884, %vm2885
      %v2887 = vsel %vm2886, %v2879, %v2883
      %v2888 = vand.u32 2147483647, %v2557
      %vm2889 = vcmp.eq.f32.partialorder %v2888, 8.507059e+37
      %v2890 = vand.u32 %v2557, 2147483648
      %v2891 = vor.u32 1.1754944e-38, %v2890
      %v2892 = vsel %vm2889, %v2891, %v2887
      %v2893 = vmul.f32 1.0, %v2892
      %v2894 = vrcp.pop %v2560
      %v2895 = vmul.f32 %v2560, %v2894
      %v2896 = vsub.f32 1.0, %v2895
      %v2897 = vmul.f32 %v2894, %v2896
      %v2898 = vadd.f32 %v2894, %v2897
      %vm2899 = vweird.f32 %v2560
      %vm2900 = vweird.f32 %v2894
      %vm2901 = vmor %vm2899, %vm2900
      %v2902 = vsel %vm2901, %v2894, %v2898
      %v2903 = vand.u32 2147483647, %v2560
      %vm2904 = vcmp.eq.f32.partialorder %v2903, 8.507059e+37
      %v2905 = vand.u32 %v2560, 2147483648
      %v2906 = vor.u32 1.1754944e-38, %v2905
      %v2907 = vsel %vm2904, %v2906, %v2902
      %v2908 = vmul.f32 1.0, %v2907
      %v2909 = vrcp.pop %v2563
      %v2910 = vmul.f32 %v2563, %v2909
      %v2911 = vsub.f32 1.0, %v2910
      %v2912 = vmul.f32 %v2909, %v2911
      %v2913 = vadd.f32 %v2909, %v2912
      %vm2914 = vweird.f32 %v2563
      %vm2915 = vweird.f32 %v2909
      %vm2916 = vmor %vm2914, %vm2915
      %v2917 = vsel %vm2916, %v2909, %v2913
      %v2918 = vand.u32 2147483647, %v2563
      %vm2919 = vcmp.eq.f32.partialorder %v2918, 8.507059e+37
      %v2920 = vand.u32 %v2563, 2147483648
      %v2921 = vor.u32 1.1754944e-38, %v2920
      %v2922 = vsel %vm2919, %v2921, %v2917
      %v2923 = vmul.f32 1.0, %v2922
      %v2924 = vrcp.pop %v2566
      %v2925 = vmul.f32 %v2566, %v2924
      %v2926 = vsub.f32 1.0, %v2925
      %v2927 = vmul.f32 %v2924, %v2926
      %v2928 = vadd.f32 %v2924, %v2927
      %vm2929 = vweird.f32 %v2566
      %vm2930 = vweird.f32 %v2924
      %vm2931 = vmor %vm2929, %vm2930
      %v2932 = vsel %vm2931, %v2924, %v2928
      %v2933 = vand.u32 2147483647, %v2566
      %vm2934 = vcmp.eq.f32.partialorder %v2933, 8.507059e+37
      %v2935 = vand.u32 %v2566, 2147483648
      %v2936 = vor.u32 1.1754944e-38, %v2935
      %v2937 = vsel %vm2934, %v2936, %v2932
      %v2938 = vmul.f32 1.0, %v2937
      %v2939 = vrcp.pop %v2569
      %v2940 = vmul.f32 %v2569, %v2939
      %v2941 = vsub.f32 1.0, %v2940
      %v2942 = vmul.f32 %v2939, %v2941
      %v2943 = vadd.f32 %v2939, %v2942
      %vm2944 = vweird.f32 %v2569
      %vm2945 = vweird.f32 %v2939
      %vm2946 = vmor %vm2944, %vm2945
      %v2947 = vsel %vm2946, %v2939, %v2943
      %v2948 = vand.u32 2147483647, %v2569
      %vm2949 = vcmp.eq.f32.partialorder %v2948, 8.507059e+37
      %v2950 = vand.u32 %v2569, 2147483648
      %v2951 = vor.u32 1.1754944e-38, %v2950
      %v2952 = vsel %vm2949, %v2951, %v2947
      %v2953 = vmul.f32 1.0, %v2952
      %v2954 = vrcp.pop %v2572
      %v2955 = vmul.f32 %v2572, %v2954
      %v2956 = vsub.f32 1.0, %v2955
      %v2957 = vmul.f32 %v2954, %v2956
      %v2958 = vadd.f32 %v2954, %v2957
      %vm2959 = vweird.f32 %v2572
      %vm2960 = vweird.f32 %v2954
      %vm2961 = vmor %vm2959, %vm2960
      %v2962 = vsel %vm2961, %v2954, %v2958
      %v2963 = vand.u32 2147483647, %v2572
      %vm2964 = vcmp.eq.f32.partialorder %v2963, 8.507059e+37
      %v2965 = vand.u32 %v2572, 2147483648
      %v2966 = vor.u32 1.1754944e-38, %v2965
      %v2967 = vsel %vm2964, %v2966, %v2962
      %v2968 = vmul.f32 1.0, %v2967
      %v2969 = vrcp.pop %v2575
      %v2970 = vmul.f32 %v2575, %v2969
      %v2971 = vsub.f32 1.0, %v2970
      %v2972 = vmul.f32 %v2969, %v2971
      %v2973 = vadd.f32 %v2969, %v2972
      %vm2974 = vweird.f32 %v2575
      %vm2975 = vweird.f32 %v2969
      %vm2976 = vmor %vm2974, %vm2975
      %v2977 = vsel %vm2976, %v2969, %v2973
      %v2978 = vand.u32 2147483647, %v2575
      %vm2979 = vcmp.eq.f32.partialorder %v2978, 8.507059e+37
      %v2980 = vand.u32 %v2575, 2147483648
      %v2981 = vor.u32 1.1754944e-38, %v2980
      %v2982 = vsel %vm2979, %v2981, %v2977
      %v2983 = vmul.f32 1.0, %v2982
      %v2984 = vrcp.pop %v2578
      %v2985 = vmul.f32 %v2578, %v2984
      %v2986 = vsub.f32 1.0, %v2985
      %v2987 = vmul.f32 %v2984, %v2986
      %v2988 = vadd.f32 %v2984, %v2987
      %vm2989 = vweird.f32 %v2578
      %vm2990 = vweird.f32 %v2984
      %vm2991 = vmor %vm2989, %vm2990
      %v2992 = vsel %vm2991, %v2984, %v2988
      %v2993 = vand.u32 2147483647, %v2578
      %vm2994 = vcmp.eq.f32.partialorder %v2993, 8.507059e+37
      %v2995 = vand.u32 %v2578, 2147483648
      %v2996 = vor.u32 1.1754944e-38, %v2995
      %v2997 = vsel %vm2994, %v2996, %v2992
      %v2998 = vmul.f32 1.0, %v2997
      %v2999 = vrcp.pop %v2581
      %v3000 = vmul.f32 %v2581, %v2999
      %v3001 = vsub.f32 1.0, %v3000
      %v3002 = vmul.f32 %v2999, %v3001
      %v3003 = vadd.f32 %v2999, %v3002
      %vm3004 = vweird.f32 %v2581
      %vm3005 = vweird.f32 %v2999
      %vm3006 = vmor %vm3004, %vm3005
      %v3007 = vsel %vm3006, %v2999, %v3003
      %v3008 = vand.u32 2147483647, %v2581
      %vm3009 = vcmp.eq.f32.partialorder %v3008, 8.507059e+37
      %v3010 = vand.u32 %v2581, 2147483648
      %v3011 = vor.u32 1.1754944e-38, %v3010
      %v3012 = vsel %vm3009, %v3011, %v3007
      %v3013 = vmul.f32 1.0, %v3012
      %v3014 = vrcp.pop %v2584
      %v3015 = vmul.f32 %v2584, %v3014
      %v3016 = vsub.f32 1.0, %v3015
      %v3017 = vmul.f32 %v3014, %v3016
      %v3018 = vadd.f32 %v3014, %v3017
      %vm3019 = vweird.f32 %v2584
      %vm3020 = vweird.f32 %v3014
      %vm3021 = vmor %vm3019, %vm3020
      %v3022 = vsel %vm3021, %v3014, %v3018
      %v3023 = vand.u32 2147483647, %v2584
      %vm3024 = vcmp.eq.f32.partialorder %v3023, 8.507059e+37
      %v3025 = vand.u32 %v2584, 2147483648
      %v3026 = vor.u32 1.1754944e-38, %v3025
      %v3027 = vsel %vm3024, %v3026, %v3022
      %v3028 = vmul.f32 1.0, %v3027
      %v3029 = vrcp.pop %v2587
      %v3030 = vmul.f32 %v2587, %v3029
      %v3031 = vsub.f32 1.0, %v3030
      %v3032 = vmul.f32 %v3029, %v3031
      %v3033 = vadd.f32 %v3029, %v3032
      %vm3034 = vweird.f32 %v2587
      %vm3035 = vweird.f32 %v3029
      %vm3036 = vmor %vm3034, %vm3035
      %v3037 = vsel %vm3036, %v3029, %v3033
      %v3038 = vand.u32 2147483647, %v2587
      %vm3039 = vcmp.eq.f32.partialorder %v3038, 8.507059e+37
      %v3040 = vand.u32 %v2587, 2147483648
      %v3041 = vor.u32 1.1754944e-38, %v3040
      %v3042 = vsel %vm3039, %v3041, %v3037
      %v3043 = vmul.f32 1.0, %v3042
      %v3044 = vrcp.pop %v2590
      %v3045 = vmul.f32 %v2590, %v3044
      %v3046 = vsub.f32 1.0, %v3045
      %v3047 = vmul.f32 %v3044, %v3046
      %v3048 = vadd.f32 %v3044, %v3047
      %vm3049 = vweird.f32 %v2590
      %vm3050 = vweird.f32 %v3044
      %vm3051 = vmor %vm3049, %vm3050
      %v3052 = vsel %vm3051, %v3044, %v3048
      %v3053 = vand.u32 2147483647, %v2590
      %vm3054 = vcmp.eq.f32.partialorder %v3053, 8.507059e+37
      %v3055 = vand.u32 %v2590, 2147483648
      %v3056 = vor.u32 1.1754944e-38, %v3055
      %v3057 = vsel %vm3054, %v3056, %v3052
      %v3058 = vmul.f32 1.0, %v3057
      %v3059 = vrcp.pop %v2593
      %v3060 = vmul.f32 %v2593, %v3059
      %v3061 = vsub.f32 1.0, %v3060
      %v3062 = vmul.f32 %v3059, %v3061
      %v3063 = vadd.f32 %v3059, %v3062
      %vm3064 = vweird.f32 %v2593
      %vm3065 = vweird.f32 %v3059
      %vm3066 = vmor %vm3064, %vm3065
      %v3067 = vsel %vm3066, %v3059, %v3063
      %v3068 = vand.u32 2147483647, %v2593
      %vm3069 = vcmp.eq.f32.partialorder %v3068, 8.507059e+37
      %v3070 = vand.u32 %v2593, 2147483648
      %v3071 = vor.u32 1.1754944e-38, %v3070
      %v3072 = vsel %vm3069, %v3071, %v3067
      %v3073 = vmul.f32 1.0, %v3072
      %v3074 = vmul.f32 %v2371, %v2608
      %v3075 = vmul.f32 %v2373, %v2608
      %v3076 = vmul.f32 %v2375, %v2623
      %v3077 = vmul.f32 %v2377, %v2623
      %v3078 = vmul.f32 %v2379, %v2638
      %v3079 = vmul.f32 %v2381, %v2638
      %v3080 = vmul.f32 %v2383, %v2653
      %v3081 = vmul.f32 %v2385, %v2653
      %v3082 = vmul.f32 %v2387, %v2668
      %v3083 = vmul.f32 %v2389, %v2668
      %v3084 = vmul.f32 %v2391, %v2683
      %v3085 = vmul.f32 %v2393, %v2683
      %v3086 = vmul.f32 %v2395, %v2698
      %v3087 = vmul.f32 %v2397, %v2698
      %v3088 = vmul.f32 %v2399, %v2713
      %v3089 = vmul.f32 %v2401, %v2713
      %v3090 = vmul.f32 %v2403, %v2728
      %v3091 = vmul.f32 %v2405, %v2728
      %v3092 = vmul.f32 %v2407, %v2743
      %v3093 = vmul.f32 %v2409, %v2743
      %v3094 = vmul.f32 %v2411, %v2758
      %v3095 = vmul.f32 %v2413, %v2758
      %v3096 = vmul.f32 %v2415, %v2773
      %v3097 = vmul.f32 %v2417, %v2773
      %v3098 = vmul.f32 %v2419, %v2788
      %v3099 = vmul.f32 %v2421, %v2788
      %v3100 = vmul.f32 %v2423, %v2803
      %v3101 = vmul.f32 %v2425, %v2803
      %v3102 = vmul.f32 %v2427, %v2818
      %v3103 = vmul.f32 %v2429, %v2818
      %v3104 = vmul.f32 %v2431, %v2833
      %v3105 = vmul.f32 %v2433, %v2833
      %v3106 = vmul.f32 %v2435, %v2848
      %v3107 = vmul.f32 %v2437, %v2848
      %v3108 = vmul.f32 %v2439, %v2863
      %v3109 = vmul.f32 %v2441, %v2863
      %v3110 = vmul.f32 %v2443, %v2878
      %v3111 = vmul.f32 %v2445, %v2878
      %v3112 = vmul.f32 %v2447, %v2893
      %v3113 = vmul.f32 %v2449, %v2893
      %v3114 = vmul.f32 %v2451, %v2908
      %v3115 = vmul.f32 %v2453, %v2908
      %v3116 = vmul.f32 %v2455, %v2923
      %v3117 = vmul.f32 %v2457, %v2923
      %v3118 = vmul.f32 %v2459, %v2938
      %v3119 = vmul.f32 %v2461, %v2938
      %v3120 = vmul.f32 %v2463, %v2953
      %v3121 = vmul.f32 %v2465, %v2953
      %v3122 = vmul.f32 %v2467, %v2968
      %v3123 = vmul.f32 %v2469, %v2968
      %v3124 = vmul.f32 %v2471, %v2983
      %v3125 = vmul.f32 %v2473, %v2983
      %v3126 = vmul.f32 %v2475, %v2998
      %v3127 = vmul.f32 %v2477, %v2998
      %v3128 = vmul.f32 %v2479, %v3013
      %v3129 = vmul.f32 %v2481, %v3013
      %v3130 = vmul.f32 %v2483, %v3028
      %v3131 = vmul.f32 %v2485, %v3028
      %v3132 = vmul.f32 %v2487, %v3043
      %v3133 = vmul.f32 %v2489, %v3043
      %v3134 = vmul.f32 %v2491, %v3058
      %v3135 = vmul.f32 %v2493, %v3058
      %v3136 = vmul.f32 %v2495, %v3073
      %v3137 = vmul.f32 %v2497, %v3073
      %3138 = vrot.lane.b32.xlu0 %v409, 96
      %v3139 = vpop.permute.xlu0 %3138
      %3140 = vrot.lane.b32.xlu0 %v412, 96
      %v3141 = vpop.permute.xlu0 %3140
      %3142 = vrot.lane.b32.xlu0 %v415, 96
      %v3143 = vpop.permute.xlu0 %3142
      %3144 = vrot.lane.b32.xlu0 %v418, 96
      %v3145 = vpop.permute.xlu0 %3144
      %3146 = vrot.lane.b32.xlu0 %v421, 96
      %v3147 = vpop.permute.xlu0 %3146
      %3148 = vrot.lane.b32.xlu0 %v424, 96
      %v3149 = vpop.permute.xlu0 %3148
      %3150 = vrot.lane.b32.xlu0 %v427, 96
      %v3151 = vpop.permute.xlu0 %3150
      %3152 = vrot.lane.b32.xlu0 %v430, 96
      %v3153 = vpop.permute.xlu0 %3152
      %3154 = vrot.lane.b32.xlu0 %v433, 96
      %v3155 = vpop.permute.xlu0 %3154
      %3156 = vrot.lane.b32.xlu0 %v436, 96
      %v3157 = vpop.permute.xlu0 %3156
      %3158 = vrot.lane.b32.xlu0 %v439, 96
      %v3159 = vpop.permute.xlu0 %3158
      %3160 = vrot.lane.b32.xlu0 %v442, 96
      %v3161 = vpop.permute.xlu0 %3160
      %3162 = vrot.lane.b32.xlu0 %v445, 96
      %v3163 = vpop.permute.xlu0 %3162
      %3164 = vrot.lane.b32.xlu0 %v448, 96
      %v3165 = vpop.permute.xlu0 %3164
      %3166 = vrot.lane.b32.xlu0 %v451, 96
      %v3167 = vpop.permute.xlu0 %3166
      %3168 = vrot.lane.b32.xlu0 %v454, 96
      %v3169 = vpop.permute.xlu0 %3168
      %3170 = vrot.lane.b32.xlu0 %v457, 96
      %v3171 = vpop.permute.xlu0 %3170
      %3172 = vrot.lane.b32.xlu0 %v460, 96
      %v3173 = vpop.permute.xlu0 %3172
      %3174 = vrot.lane.b32.xlu0 %v463, 96
      %v3175 = vpop.permute.xlu0 %3174
      %3176 = vrot.lane.b32.xlu0 %v466, 96
      %v3177 = vpop.permute.xlu0 %3176
      %3178 = vrot.lane.b32.xlu0 %v469, 96
      %v3179 = vpop.permute.xlu0 %3178
      %3180 = vrot.lane.b32.xlu0 %v472, 96
      %v3181 = vpop.permute.xlu0 %3180
      %3182 = vrot.lane.b32.xlu0 %v475, 96
      %v3183 = vpop.permute.xlu0 %3182
      %3184 = vrot.lane.b32.xlu0 %v478, 96
      %v3185 = vpop.permute.xlu0 %3184
      %3186 = vrot.lane.b32.xlu0 %v481, 96
      %v3187 = vpop.permute.xlu0 %3186
      %3188 = vrot.lane.b32.xlu0 %v484, 96
      %v3189 = vpop.permute.xlu0 %3188
      %3190 = vrot.lane.b32.xlu0 %v487, 96
      %v3191 = vpop.permute.xlu0 %3190
      %3192 = vrot.lane.b32.xlu0 %v490, 96
      %v3193 = vpop.permute.xlu0 %3192
      %3194 = vrot.lane.b32.xlu0 %v493, 96
      %v3195 = vpop.permute.xlu0 %3194
      %3196 = vrot.lane.b32.xlu0 %v496, 96
      %v3197 = vpop.permute.xlu0 %3196
      %3198 = vrot.lane.b32.xlu0 %v499, 96
      %v3199 = vpop.permute.xlu0 %3198
      %3200 = vrot.lane.b32.xlu0 %v502, 96
      %v3201 = vpop.permute.xlu0 %3200
      %3234 = vmatpush.msra.mxu0 %v3169
      %3235 = vmatpush.msra.mxu0 %v3167
      %3236 = vmatpush.msra.mxu0 %v3165
      %3237 = vmatpush.msra.mxu0 %v3163
      %3238 = vmatpush.msra.mxu0 %v3161
      %3239 = vmatpush.msra.mxu0 %v3159
      %3240 = vmatpush.msra.mxu0 %v3157
      %3241 = vmatpush.msra.mxu0 %v3155
      %3242 = vmatpush.msra.mxu0 %v3153
      %3243 = vmatpush.msra.mxu0 %v3151
      %3244 = vmatpush.msra.mxu0 %v3149
      %3245 = vmatpush.msra.mxu0 %v3147
      %3246 = vmatpush.msra.mxu0 %v3145
      %3247 = vmatpush.msra.mxu0 %v3143
      %3248 = vmatpush.msra.mxu0 %v3141
      %3249 = vmatpush.msra.mxu0 %v3139
      %3250 = vmatmul.f32.gmra.mxu0 %v3074
      %v3251 = vpop.f32.mrf.mxu0
      %v3252 = vadd.f32 0.0, %v3251
      %3253 = vmatmul.f32.gmra.mxu0 %v3076
      %v3254 = vpop.f32.mrf.mxu0
      %v3255 = vadd.f32 0.0, %v3254
      %3256 = vmatmul.f32.gmra.mxu0 %v3078
      %v3257 = vpop.f32.mrf.mxu0
      %v3258 = vadd.f32 0.0, %v3257
      %3259 = vmatmul.f32.gmra.mxu0 %v3080
      %v3260 = vpop.f32.mrf.mxu0
      %v3261 = vadd.f32 0.0, %v3260
      %3262 = vmatmul.f32.gmra.mxu0 %v3082
      %v3263 = vpop.f32.mrf.mxu0
      %v3264 = vadd.f32 0.0, %v3263
      %3265 = vmatmul.f32.gmra.mxu0 %v3084
      %v3266 = vpop.f32.mrf.mxu0
      %v3267 = vadd.f32 0.0, %v3266
      %3268 = vmatmul.f32.gmra.mxu0 %v3086
      %v3269 = vpop.f32.mrf.mxu0
      %v3270 = vadd.f32 0.0, %v3269
      %3271 = vmatmul.f32.gmra.mxu0 %v3088
      %v3272 = vpop.f32.mrf.mxu0
      %v3273 = vadd.f32 0.0, %v3272
      %3274 = vmatmul.f32.gmra.mxu0 %v3090
      %v3275 = vpop.f32.mrf.mxu0
      %v3276 = vadd.f32 0.0, %v3275
      %3277 = vmatmul.f32.gmra.mxu0 %v3092
      %v3278 = vpop.f32.mrf.mxu0
      %v3279 = vadd.f32 0.0, %v3278
      %3280 = vmatmul.f32.gmra.mxu0 %v3094
      %v3281 = vpop.f32.mrf.mxu0
      %v3282 = vadd.f32 0.0, %v3281
      %3283 = vmatmul.f32.gmra.mxu0 %v3096
      %v3284 = vpop.f32.mrf.mxu0
      %v3285 = vadd.f32 0.0, %v3284
      %3286 = vmatmul.f32.gmra.mxu0 %v3098
      %v3287 = vpop.f32.mrf.mxu0
      %v3288 = vadd.f32 0.0, %v3287
      %3289 = vmatmul.f32.gmra.mxu0 %v3100
      %v3290 = vpop.f32.mrf.mxu0
      %v3291 = vadd.f32 0.0, %v3290
      %3292 = vmatmul.f32.gmra.mxu0 %v3102
      %v3293 = vpop.f32.mrf.mxu0
      %v3294 = vadd.f32 0.0, %v3293
      %3295 = vmatmul.f32.gmra.mxu0 %v3104
      %v3296 = vpop.f32.mrf.mxu0
      %v3297 = vadd.f32 0.0, %v3296
      %3298 = vmatmul.f32.gmra.mxu0 %v3106
      %v3299 = vpop.f32.mrf.mxu0
      %v3300 = vadd.f32 0.0, %v3299
      %3301 = vmatmul.f32.gmra.mxu0 %v3108
      %v3302 = vpop.f32.mrf.mxu0
      %v3303 = vadd.f32 0.0, %v3302
      %3304 = vmatmul.f32.gmra.mxu0 %v3110
      %v3305 = vpop.f32.mrf.mxu0
      %v3306 = vadd.f32 0.0, %v3305
      %3307 = vmatmul.f32.gmra.mxu0 %v3112
      %v3308 = vpop.f32.mrf.mxu0
      %v3309 = vadd.f32 0.0, %v3308
      %3310 = vmatmul.f32.gmra.mxu0 %v3114
      %v3311 = vpop.f32.mrf.mxu0
      %v3312 = vadd.f32 0.0, %v3311
      %3313 = vmatmul.f32.gmra.mxu0 %v3116
      %v3314 = vpop.f32.mrf.mxu0
      %v3315 = vadd.f32 0.0, %v3314
      %3316 = vmatmul.f32.gmra.mxu0 %v3118
      %v3317 = vpop.f32.mrf.mxu0
      %v3318 = vadd.f32 0.0, %v3317
      %3319 = vmatmul.f32.gmra.mxu0 %v3120
      %v3320 = vpop.f32.mrf.mxu0
      %v3321 = vadd.f32 0.0, %v3320
      %3322 = vmatmul.f32.gmra.mxu0 %v3122
      %v3323 = vpop.f32.mrf.mxu0
      %v3324 = vadd.f32 0.0, %v3323
      %3325 = vmatmul.f32.gmra.mxu0 %v3124
      %v3326 = vpop.f32.mrf.mxu0
      %v3327 = vadd.f32 0.0, %v3326
      %3328 = vmatmul.f32.gmra.mxu0 %v3126
      %v3329 = vpop.f32.mrf.mxu0
      %v3330 = vadd.f32 0.0, %v3329
      %3331 = vmatmul.f32.gmra.mxu0 %v3128
      %v3332 = vpop.f32.mrf.mxu0
      %v3333 = vadd.f32 0.0, %v3332
      %3334 = vmatmul.f32.gmra.mxu0 %v3130
      %v3335 = vpop.f32.mrf.mxu0
      %v3336 = vadd.f32 0.0, %v3335
      %3337 = vmatmul.f32.gmra.mxu0 %v3132
      %v3338 = vpop.f32.mrf.mxu0
      %v3339 = vadd.f32 0.0, %v3338
      %3340 = vmatmul.f32.gmra.mxu0 %v3134
      %v3341 = vpop.f32.mrf.mxu0
      %v3342 = vadd.f32 0.0, %v3341
      %3343 = vmatmul.f32.gmra.mxu0 %v3136
      %v3344 = vpop.f32.mrf.mxu0
      %v3345 = vadd.f32 0.0, %v3344
      %3346 = vdwg.mxu0
      %3347 = vmatpush.msra.mxu0 %v3201
      %3348 = vmatpush.msra.mxu0 %v3199
      %3349 = vmatpush.msra.mxu0 %v3197
      %3350 = vmatpush.msra.mxu0 %v3195
      %3351 = vmatpush.msra.mxu0 %v3193
      %3352 = vmatpush.msra.mxu0 %v3191
      %3353 = vmatpush.msra.mxu0 %v3189
      %3354 = vmatpush.msra.mxu0 %v3187
      %3355 = vmatpush.msra.mxu0 %v3185
      %3356 = vmatpush.msra.mxu0 %v3183
      %3357 = vmatpush.msra.mxu0 %v3181
      %3358 = vmatpush.msra.mxu0 %v3179
      %3359 = vmatpush.msra.mxu0 %v3177
      %3360 = vmatpush.msra.mxu0 %v3175
      %3361 = vmatpush.msra.mxu0 %v3173
      %3362 = vmatpush.msra.mxu0 %v3171
      %3363 = vmatmul.f32.gmra.mxu0 %v3075
      %v3364 = vpop.f32.mrf.mxu0
      %v3365 = vadd.f32 %v3252, %v3364
      %3366 = vmatmul.f32.gmra.mxu0 %v3077
      %v3367 = vpop.f32.mrf.mxu0
      %v3368 = vadd.f32 %v3255, %v3367
      %3369 = vmatmul.f32.gmra.mxu0 %v3079
      %v3370 = vpop.f32.mrf.mxu0
      %v3371 = vadd.f32 %v3258, %v3370
      %3372 = vmatmul.f32.gmra.mxu0 %v3081
      %v3373 = vpop.f32.mrf.mxu0
      %v3374 = vadd.f32 %v3261, %v3373
      %3375 = vmatmul.f32.gmra.mxu0 %v3083
      %v3376 = vpop.f32.mrf.mxu0
      %v3377 = vadd.f32 %v3264, %v3376
      %3378 = vmatmul.f32.gmra.mxu0 %v3085
      %v3379 = vpop.f32.mrf.mxu0
      %v3380 = vadd.f32 %v3267, %v3379
      %3381 = vmatmul.f32.gmra.mxu0 %v3087
      %v3382 = vpop.f32.mrf.mxu0
      %v3383 = vadd.f32 %v3270, %v3382
      %3384 = vmatmul.f32.gmra.mxu0 %v3089
      %v3385 = vpop.f32.mrf.mxu0
      %v3386 = vadd.f32 %v3273, %v3385
      %3387 = vmatmul.f32.gmra.mxu0 %v3091
      %v3388 = vpop.f32.mrf.mxu0
      %v3389 = vadd.f32 %v3276, %v3388
      %3390 = vmatmul.f32.gmra.mxu0 %v3093
      %v3391 = vpop.f32.mrf.mxu0
      %v3392 = vadd.f32 %v3279, %v3391
      %3393 = vmatmul.f32.gmra.mxu0 %v3095
      %v3394 = vpop.f32.mrf.mxu0
      %v3395 = vadd.f32 %v3282, %v3394
      %3396 = vmatmul.f32.gmra.mxu0 %v3097
      %v3397 = vpop.f32.mrf.mxu0
      %v3398 = vadd.f32 %v3285, %v3397
      %3399 = vmatmul.f32.gmra.mxu0 %v3099
      %v3400 = vpop.f32.mrf.mxu0
      %v3401 = vadd.f32 %v3288, %v3400
      %3402 = vmatmul.f32.gmra.mxu0 %v3101
      %v3403 = vpop.f32.mrf.mxu0
      %v3404 = vadd.f32 %v3291, %v3403
      %3405 = vmatmul.f32.gmra.mxu0 %v3103
      %v3406 = vpop.f32.mrf.mxu0
      %v3407 = vadd.f32 %v3294, %v3406
      %3408 = vmatmul.f32.gmra.mxu0 %v3105
      %v3409 = vpop.f32.mrf.mxu0
      %v3410 = vadd.f32 %v3297, %v3409
      %3411 = vmatmul.f32.gmra.mxu0 %v3107
      %v3412 = vpop.f32.mrf.mxu0
      %v3413 = vadd.f32 %v3300, %v3412
      %3414 = vmatmul.f32.gmra.mxu0 %v3109
      %v3415 = vpop.f32.mrf.mxu0
      %v3416 = vadd.f32 %v3303, %v3415
      %3417 = vmatmul.f32.gmra.mxu0 %v3111
      %v3418 = vpop.f32.mrf.mxu0
      %v3419 = vadd.f32 %v3306, %v3418
      %3420 = vmatmul.f32.gmra.mxu0 %v3113
      %v3421 = vpop.f32.mrf.mxu0
      %v3422 = vadd.f32 %v3309, %v3421
      %3423 = vmatmul.f32.gmra.mxu0 %v3115
      %v3424 = vpop.f32.mrf.mxu0
      %v3425 = vadd.f32 %v3312, %v3424
      %3426 = vmatmul.f32.gmra.mxu0 %v3117
      %v3427 = vpop.f32.mrf.mxu0
      %v3428 = vadd.f32 %v3315, %v3427
      %3429 = vmatmul.f32.gmra.mxu0 %v3119
      %v3430 = vpop.f32.mrf.mxu0
      %v3431 = vadd.f32 %v3318, %v3430
      %3432 = vmatmul.f32.gmra.mxu0 %v3121
      %v3433 = vpop.f32.mrf.mxu0
      %v3434 = vadd.f32 %v3321, %v3433
      %3435 = vmatmul.f32.gmra.mxu0 %v3123
      %v3436 = vpop.f32.mrf.mxu0
      %v3437 = vadd.f32 %v3324, %v3436
      %3438 = vmatmul.f32.gmra.mxu0 %v3125
      %v3439 = vpop.f32.mrf.mxu0
      %v3440 = vadd.f32 %v3327, %v3439
      %3441 = vmatmul.f32.gmra.mxu0 %v3127
      %v3442 = vpop.f32.mrf.mxu0
      %v3443 = vadd.f32 %v3330, %v3442
      %3444 = vmatmul.f32.gmra.mxu0 %v3129
      %v3445 = vpop.f32.mrf.mxu0
      %v3446 = vadd.f32 %v3333, %v3445
      %3447 = vmatmul.f32.gmra.mxu0 %v3131
      %v3448 = vpop.f32.mrf.mxu0
      %v3449 = vadd.f32 %v3336, %v3448
      %3450 = vmatmul.f32.gmra.mxu0 %v3133
      %v3451 = vpop.f32.mrf.mxu0
      %v3452 = vadd.f32 %v3339, %v3451
      %3453 = vmatmul.f32.gmra.mxu0 %v3135
      %v3454 = vpop.f32.mrf.mxu0
      %v3455 = vadd.f32 %v3342, %v3454
      %3456 = vmatmul.f32.gmra.mxu0 %v3137
      %v3457 = vpop.f32.mrf.mxu0
      %v3458 = vadd.f32 %v3345, %v3457
      %3459 = vdwg.mxu0
      %3460 = vst.msk [vmem:[%s242] sm:$0xff] %vm755, %v3365
      %3461 = vst.msk [vmem:[%s242 + $0x8] sm:$0xff] %vm755, %v3368
      %3462 = vst.msk [vmem:[%s242 + $0x10] sm:$0xff] %vm755, %v3371
      %3463 = vst.msk [vmem:[%s242 + $0x18] sm:$0xff] %vm755, %v3374
      %3464 = vst.msk [vmem:[%s242 + $0x20] sm:$0xff] %vm755, %v3377
      %3465 = vst.msk [vmem:[%s242 + $0x28] sm:$0xff] %vm755, %v3380
      %3466 = vst.msk [vmem:[%s242 + $0x30] sm:$0xff] %vm755, %v3383
      %3467 = vst.msk [vmem:[%s242 + $0x38] sm:$0xff] %vm755, %v3386
      %3468 = vst.msk [vmem:[%s242 + $0x40] sm:$0xff] %vm755, %v3389
      %3469 = vst.msk [vmem:[%s242 + $0x48] sm:$0xff] %vm755, %v3392
      %3470 = vst.msk [vmem:[%s242 + $0x50] sm:$0xff] %vm755, %v3395
      %3471 = vst.msk [vmem:[%s242 + $0x58] sm:$0xff] %vm755, %v3398
      %3472 = vst.msk [vmem:[%s242 + $0x60] sm:$0xff] %vm755, %v3401
      %3473 = vst.msk [vmem:[%s242 + $0x68] sm:$0xff] %vm755, %v3404
      %3474 = vst.msk [vmem:[%s242 + $0x70] sm:$0xff] %vm755, %v3407
      %3475 = vst.msk [vmem:[%s242 + $0x78] sm:$0xff] %vm755, %v3410
      %3476 = vst.msk [vmem:[%s242 + $0x80] sm:$0xff] %vm755, %v3413
      %3477 = vst.msk [vmem:[%s242 + $0x88] sm:$0xff] %vm755, %v3416
      %3478 = vst.msk [vmem:[%s242 + $0x90] sm:$0xff] %vm755, %v3419
      %3479 = vst.msk [vmem:[%s242 + $0x98] sm:$0xff] %vm755, %v3422
      %3480 = vst.msk [vmem:[%s242 + $0xa0] sm:$0xff] %vm755, %v3425
      %3481 = vst.msk [vmem:[%s242 + $0xa8] sm:$0xff] %vm755, %v3428
      %3482 = vst.msk [vmem:[%s242 + $0xb0] sm:$0xff] %vm755, %v3431
      %3483 = vst.msk [vmem:[%s242 + $0xb8] sm:$0xff] %vm755, %v3434
      %3484 = vst.msk [vmem:[%s242 + $0xc0] sm:$0xff] %vm755, %v3437
      %3485 = vst.msk [vmem:[%s242 + $0xc8] sm:$0xff] %vm755, %v3440
      %3486 = vst.msk [vmem:[%s242 + $0xd0] sm:$0xff] %vm755, %v3443
      %3487 = vst.msk [vmem:[%s242 + $0xd8] sm:$0xff] %vm755, %v3446
      %3488 = vst.msk [vmem:[%s242 + $0xe0] sm:$0xff] %vm755, %v3449
      %3489 = vst.msk [vmem:[%s242 + $0xe8] sm:$0xff] %vm755, %v3452
      %3490 = vst.msk [vmem:[%s242 + $0xf0] sm:$0xff] %vm755, %v3455
      %3491 = vst.msk [vmem:[%s242 + $0xf8] sm:$0xff] %vm755, %v3458
      %s3492 = sadd.s32 %s20, %s21
      %s3493 = smul.u32 32, %s3492
      %p3494 = scmp.lt.s32.totalorder %s3493, 63
      %s3495 = scalar_select %p3494, %s3493, 63
      %s3496 = smul.addr %s3495, 8
      %s3497 = scalar_lea.vmem %s5, %s3496
      // Predicated region
      $region41: #{tpu_custom_call.1} parent=39 // pred_check
        %p3498 = pneg %p158
      $region42: #{tpu_custom_call.1} parent=39 // pred_check_branch
        %3500 = sbr.rel (%p3498) target = $region44
      $region43: #{tpu_custom_call.1} parent=39 // pred_region
        %s3501 = sadd.s32 %s20, %s21
        %s3502 = smul.u32 32, %s3501
      $region44: #{tpu_custom_call.1} parent=39 // pred_fallthru
        _
    $region40: #{tpu_custom_call.1} parent=5 // pred_fallthru
      _
    %p3503 = scmp.le.s32.totalorder 2, %s11
    // Predicated region
    $region45: #{tpu_custom_call.1} parent=5 // pred_check
      %p3504 = pneg %p3503
    $region46: #{tpu_custom_call.1} parent=5 // pred_check_branch
      %3506 = sbr.rel (%p3504) target = $region48
    $region47: #{tpu_custom_call.1} parent=5 // pred_region
      %s3507 = ssub.s32 %s11, 2
      // Predicated region
      $region49: #{tpu_custom_call.1} parent=47 // pred_check
        %p3508 = pneg %p164
      $region50: #{tpu_custom_call.1} parent=47 // pred_check_branch
        %3510 = sbr.rel (%p3508) target = $region52
      $region51: #{tpu_custom_call.1} parent=47 // pred_region
        %s3511 = sadd.s32 %s22, %s23
        %s3512 = smul.u32 32, %s3511
        %p3513 = scmp.lt.s32.totalorder %s3512, 63
        %s3514 = scalar_select %p3513, %s3512, 63
        %s3515 = smul.addr %s3514, 8
        %s3516 = scalar_lea.vmem %s5, %s3515
      $region52: #{tpu_custom_call.1} parent=47 // pred_fallthru
        _
    $region48: #{tpu_custom_call.1} parent=5 // pred_fallthru
      _
  $region6: #{tpu_custom_call.1} parent=0 // loop_footer
    %s15 = sadd.s32 1, %s11
  $region7: #{tpu_custom_call.1} parent=0 // loop_footer_branch
    %10 = sbr.rel target = $region3
  $region8: #{tpu_custom_call.1} parent=0 // loop_exit
    _

</llo_original>
